<compile_context>
chip_gen: v6e
topology: v6e:2x2x1
jax: 0.10.0
libtpu: 0.0.40
codegen_flags: <defaults>
</compile_context>

<pallas_src>
import jax
import jax.numpy as jnp
from jax import lax
from jax.experimental import pallas as pl
from jax.experimental.pallas import tpu as pltpu

# Keep XLA reference matmuls in true f32 so it matches the kernel's f32 MXU math.
jax.config.update("jax_default_matmul_precision", "highest")


def _make_vae_kernel(n_total, hidden, latent, in_ch, neg_slope=0.01, bn_eps=1e-5):
    inv_n = 1.0 / float(n_total)
    two_l = 2 * latent

    def kernel(x_ref, eps_ref, w1_ref, wmv_ref, wdi_ref, wd_ref, vec_ref,
               zout_ref, zinv_ref, mu_ref, logvar_ref,
               stat1_ref, stat2_ref):
        phase = pl.program_id(0)
        i = pl.program_id(1)
        last_i = pl.num_programs(1) - 1

        # packed parameter vectors (rows of vec_ref):
        #   0: b1   1: gamma1   2: beta1   3: [b_mu | b_var]
        #   4: b_dec_in   5: b_dec   6: gamma2   7: beta2
        def encoder_pre_bn():
            x = x_ref[...]
            return (jnp.dot(x, w1_ref[...], preferred_element_type=jnp.float32)
                    + vec_ref[0:1, :hidden])

        def up_to_decoder_linear():
            h1 = encoder_pre_bn()
            # BN1 as a fused scale/shift (finalized in phase 0)
            h1n = h1 * stat1_ref[0:1, :] + stat1_ref[1:2, :]
            a1 = jnp.where(h1n >= 0.0, h1n, neg_slope * h1n)          # LeakyReLU
            # fused mu / log_var heads: (TN, H) @ (H, 2L)
            mv = (jnp.dot(a1, wmv_ref[...], preferred_element_type=jnp.float32)
                  + vec_ref[3:4, :two_l])
            mu = mv[:, :latent]
            log_var = mv[:, latent:]
            std = jnp.exp(0.5 * log_var)
            z = eps_ref[...] * std + mu
            z_inv = std + mu
            d = (jnp.dot(z, wdi_ref[...], preferred_element_type=jnp.float32)
                 + vec_ref[4:5, :hidden])
            h2 = (jnp.dot(d, wd_ref[...], preferred_element_type=jnp.float32)
                  + vec_ref[5:6, :in_ch])
            return mu, log_var, z_inv, h2

        # ---------------- phase 0: BN1 statistics ----------------
        @pl.when(phase == 0)
        def _phase0():
            @pl.when(i == 0)
            def _():
                stat1_ref[...] = jnp.zeros_like(stat1_ref)

            h1 = encoder_pre_bn()
            stat1_ref[0:1, :] += jnp.sum(h1, axis=0, keepdims=True)
            stat1_ref[1:2, :] += jnp.sum(h1 * h1, axis=0, keepdims=True)

            @pl.when(i == last_i)
            def _():
                mean = stat1_ref[0:1, :] * inv_n
                var = stat1_ref[1:2, :] * inv_n - mean * mean          # biased var
                invstd = lax.rsqrt(var + bn_eps)
                scale = vec_ref[1:2, :hidden] * invstd
                shift = vec_ref[2:3, :hidden] - mean * scale
                stat1_ref[0:1, :] = scale
                stat1_ref[1:2, :] = shift

        # ---------------- phase 1: BN2 statistics ----------------
        @pl.when(phase == 1)
        def _phase1():
            @pl.when(i == 0)
            def _():
                stat2_ref[...] = jnp.zeros_like(stat2_ref)

            _, _, _, h2 = up_to_decoder_linear()
            stat2_ref[0:1, :] += jnp.sum(h2, axis=0, keepdims=True)
            stat2_ref[1:2, :] += jnp.sum(h2 * h2, axis=0, keepdims=True)

            @pl.when(i == last_i)
            def _():
                mean = stat2_ref[0:1, :] * inv_n
                var = stat2_ref[1:2, :] * inv_n - mean * mean
                invstd = lax.rsqrt(var + bn_eps)
                scale = vec_ref[6:7, :in_ch] * invstd
                shift = vec_ref[7:8, :in_ch] - mean * scale
                stat2_ref[0:1, :] = scale
                stat2_ref[1:2, :] = shift

        # ---------------- phase 2: emit outputs ----------------
        @pl.when(phase == 2)
        def _phase2():
            mu, log_var, z_inv, h2 = up_to_decoder_linear()
            mu_ref[...] = mu
            logvar_ref[...] = log_var
            zinv_ref[...] = z_inv
            h2n = h2 * stat2_ref[0:1, :] + stat2_ref[1:2, :]
            zout_ref[...] = 1.0 / (1.0 + jnp.exp(-h2n))                # Sigmoid

    return kernel


def vae_forward(x, eps, w1, b1, g1, be1, wmu, bmu, wvar, bvar,
                wdi, bdi, wd, bd, g2, be2, *, tile_n=256):
    """x: (N, C) f32; eps: (N, L) f32; weights in PyTorch (out, in) layout."""
    x = jnp.asarray(x, jnp.float32)
    eps = jnp.asarray(eps, jnp.float32)
    n, in_ch = x.shape
    hidden = w1.shape[0]
    latent = wmu.shape[0]

    # Row-tile size: multiple of 8 (sublane) dividing N, else one full block.
    tn = min(tile_n, n)
    if n % tn != 0 or (tn != n and tn % 8 != 0):
        tn = n
    n_tiles = n // tn

    # Pre-transpose weights to (in, out) so kernel does plain x @ W.
    w1t = jnp.asarray(w1, jnp.float32).T                               # (C, H)
    wmvt = jnp.concatenate([jnp.asarray(wmu, jnp.float32).T,
                            jnp.asarray(wvar, jnp.float32).T], axis=1)  # (H, 2L)
    wdit = jnp.asarray(wdi, jnp.float32).T                             # (L, H)
    wdt = jnp.asarray(wd, jnp.float32).T                               # (H, C)

    # Pack all small vectors (biases / BN affine params) into one buffer.
    vdim = max(hidden, 2 * latent, in_ch)

    def row(v):
        v = jnp.asarray(v, jnp.float32).reshape(-1)
        return jnp.pad(v, (0, vdim - v.shape[0]))

    bmv = jnp.concatenate([jnp.asarray(bmu, jnp.float32).reshape(-1),
                           jnp.asarray(bvar, jnp.float32).reshape(-1)])
    vec = jnp.stack([row(b1), row(g1), row(be1), row(bmv),
                     row(bdi), row(bd), row(g2), row(be2)])            # (8, Vdim)

    kernel = _make_vae_kernel(n, hidden, latent, in_ch)

    rows = lambda p, i: (i, 0)     # row-tiled arrays
    full = lambda p, i: (0, 0)     # resident parameters

    z_out, z_inv, mu, log_var = pl.pallas_call(
        kernel,
        out_shape=(jax.ShapeDtypeStruct((n, in_ch), jnp.float32),
                   jax.ShapeDtypeStruct((n, latent), jnp.float32),
                   jax.ShapeDtypeStruct((n, latent), jnp.float32),
                   jax.ShapeDtypeStruct((n, latent), jnp.float32)),
        grid_spec=pltpu.PrefetchScalarGridSpec(
            num_scalar_prefetch=0,
            grid=(3, n_tiles),                      # (phase, row tile)
            in_specs=[pl.BlockSpec((tn, in_ch), rows),        # x
                      pl.BlockSpec((tn, latent), rows),       # eps noise
                      pl.BlockSpec((in_ch, hidden), full),    # W1
                      pl.BlockSpec((hidden, 2 * latent), full),  # [Wmu|Wvar]
                      pl.BlockSpec((latent, hidden), full),   # W_dec_in
                      pl.BlockSpec((hidden, in_ch), full),    # W_dec
                      pl.BlockSpec((8, vdim), full)],         # packed vectors
            out_specs=(pl.BlockSpec((tn, in_ch), rows),       # z_out
                       pl.BlockSpec((tn, latent), rows),      # z_inv
                       pl.BlockSpec((tn, latent), rows),      # mu
                       pl.BlockSpec((tn, latent), rows)),     # log_var
            scratch_shapes=[pltpu.VMEM((2, hidden), jnp.float32),   # BN1 stats
                            pltpu.VMEM((2, in_ch), jnp.float32)]),  # BN2 stats
        compiler_params=pltpu.CompilerParams(
            # both axes are sequential: phase ordering + cross-tile BN stats
            dimension_semantics=("arbitrary", "arbitrary")),
    )(x, eps, w1t, wmvt, wdit, wdt, vec)

    return [z_out, z_inv, x, mu, log_var]


def _reference(x, eps, w1, b1, g1, be1, wmu, bmu, wvar, bvar,
               wdi, bdi, wd, bd, g2, be2):
    def bn(h, g, b):
        mean = jnp.mean(h, axis=0, keepdims=True)
        var = jnp.mean((h - mean) ** 2, axis=0, keepdims=True)   # biased, like BN
        return (h - mean) / jnp.sqrt(var + 1e-5) * g + b

    h1 = x @ w1.T + b1
    a1 = jax.nn.leaky_relu(bn(h1, g1, be1), negative_slope=0.01)
    mu = a1 @ wmu.T + bmu
    log_var = a1 @ wvar.T + bvar
    std = jnp.exp(0.5 * log_var)
    z = eps * std + mu
    z_inv = std + mu
    d = z @ wdi.T + bdi
    h2 = d @ wd.T + bd
    z_out = jax.nn.sigmoid(bn(h2, g2, be2))
    return z_out, z_inv, mu, log_var


if __name__ == "__main__":
    in_channel, hidden_dim, latent_dim = 32, 64, 16
    N = 16  # batch (>1 required by BatchNorm1d)

    key = jax.random.PRNGKey(0)
    ks = jax.random.split(key, 16)

    def rn(k, shape, s=0.1):
        return jax.random.normal(k, shape, jnp.float32) * s

    # Parameters in PyTorch layout ((out, in) weights, 1-D biases/affines).
    w1, b1 = rn(ks[0], (hidden_dim, in_channel)), rn(ks[1], (hidden_dim,))
    g1, be1 = 1.0 + rn(ks[2], (hidden_dim,)), rn(ks[3], (hidden_dim,))
    wmu, bmu = rn(ks[4], (latent_dim, hidden_dim)), rn(ks[5], (latent_dim,))
    wvar, bvar = rn(ks[6], (latent_dim, hidden_dim)), rn(ks[7], (latent_dim,))
    wdi, bdi = rn(ks[8], (hidden_dim, latent_dim)), rn(ks[9], (hidden_dim,))
    wd, bd = rn(ks[10], (in_channel, hidden_dim)), rn(ks[11], (in_channel,))
    g2, be2 = 1.0 + rn(ks[12], (in_channel,)), rn(ks[13], (in_channel,))

    x = jax.random.normal(ks[14], (N, in_channel), jnp.float32)
    eps = jax.random.normal(ks[15], (N, latent_dim), jnp.float32)  # randn_like(std)

    outs = vae_forward(x, eps, w1, b1, g1, be1, wmu, bmu, wvar, bvar,
                       wdi, bdi, wd, bd, g2, be2, tile_n=8)  # 2 row tiles
    outs = jax.block_until_ready(outs)
    z_out, z_inv, x_pass, mu, log_var = outs

    r_zout, r_zinv, r_mu, r_logvar = _reference(
        x, eps, w1, b1, g1, be1, wmu, bmu, wvar, bvar, wdi, bdi, wd, bd, g2, be2)

    assert z_out.shape == (N, in_channel)
    assert z_inv.shape == (N, latent_dim)
    assert mu.shape == (N, latent_dim) and log_var.shape == (N, latent_dim)
    tol = dict(atol=2e-4, rtol=2e-4)
    assert jnp.allclose(mu, r_mu, **tol), "mu mismatch"
    assert jnp.allclose(log_var, r_logvar, **tol), "log_var mismatch"
    assert jnp.allclose(z_inv, r_zinv, **tol), "z_inv mismatch"
    assert jnp.allclose(z_out, r_zout, **tol), "z_out mismatch"
    assert jnp.allclose(x_pass, x), "input passthrough mismatch"

    print("KERNEL_OK")
</pallas_src>

<mosaic_0001>
module attributes {stable_mosaic.version = 11 : i64} {
  func.func @kernel(%arg0: i32, %arg1: i32, %arg2: memref<8x32xf32, #tpu.memory_space<vmem>>, %arg3: memref<8x16xf32, #tpu.memory_space<vmem>>, %arg4: memref<32x64xf32, #tpu.memory_space<vmem>>, %arg5: memref<64x32xf32, #tpu.memory_space<vmem>>, %arg6: memref<16x64xf32, #tpu.memory_space<vmem>>, %arg7: memref<64x32xf32, #tpu.memory_space<vmem>>, %arg8: memref<8x64xf32, #tpu.memory_space<vmem>>, %arg9: memref<8x32xf32, #tpu.memory_space<vmem>>, %arg10: memref<8x16xf32, #tpu.memory_space<vmem>>, %arg11: memref<8x16xf32, #tpu.memory_space<vmem>>, %arg12: memref<8x16xf32, #tpu.memory_space<vmem>>, %arg13: memref<2x64xf32, #tpu.memory_space<vmem>>, %arg14: memref<2x32xf32, #tpu.memory_space<vmem>>) attributes {dimension_semantics = [#tpu.dimension_semantics<arbitrary>, #tpu.dimension_semantics<arbitrary>], iteration_bounds = array<i64: 3, 2>, scalar_prefetch = 0 : i64, scratch_operands = 2 : i64, tpu.core_type = #tpu.core_type<tc>, window_params = [{transform_indices = @transform_0, window_bounds = array<i64: 8, 32>}, {transform_indices = @transform_1, window_bounds = array<i64: 8, 16>}, {pipeline_mode = #tpu.pipeline_mode<synchronous>, transform_indices = @transform_2, window_bounds = array<i64: 32, 64>}, {pipeline_mode = #tpu.pipeline_mode<synchronous>, transform_indices = @transform_3, window_bounds = array<i64: 64, 32>}, {pipeline_mode = #tpu.pipeline_mode<synchronous>, transform_indices = @transform_4, window_bounds = array<i64: 16, 64>}, {pipeline_mode = #tpu.pipeline_mode<synchronous>, transform_indices = @transform_5, window_bounds = array<i64: 64, 32>}, {pipeline_mode = #tpu.pipeline_mode<synchronous>, transform_indices = @transform_6, window_bounds = array<i64: 8, 64>}, {transform_indices = @transform_7, window_bounds = array<i64: 8, 32>}, {transform_indices = @transform_8, window_bounds = array<i64: 8, 16>}, {transform_indices = @transform_9, window_bounds = array<i64: 8, 16>}, {transform_indices = @transform_10, window_bounds = array<i64: 8, 16>}]} {
    %c0_i32 = arith.constant 0 : i32
    %0 = arith.cmpi eq, %arg0, %c0_i32 : i32
    %1 = arith.extui %0 : i1 to i32
    %c0_i32_0 = arith.constant 0 : i32
    %2 = arith.cmpi ne, %1, %c0_i32_0 : i32
    scf.if %2 {
      %c0_i32_3 = arith.constant 0 : i32
      %9 = arith.cmpi eq, %arg1, %c0_i32_3 : i32
      %10 = arith.extui %9 : i1 to i32
      %c0_i32_4 = arith.constant 0 : i32
      %11 = arith.cmpi ne, %10, %c0_i32_4 : i32
      scf.if %11 {
        %cst_21 = arith.constant 0.000000e+00 : f32
        %32 = vector.broadcast %cst_21 : f32 to vector<2x64xf32>
        %c0_22 = arith.constant 0 : index
        %c0_23 = arith.constant 0 : index
        %33 = vector.load %arg13[%c0_22, %c0_23] : memref<2x64xf32, #tpu.memory_space<vmem>>, vector<2x64xf32>
        tpu.vector_store %arg13[%c0_22, %c0_23], %32 {strides = array<i32>} : memref<2x64xf32, #tpu.memory_space<vmem>>, vector<2x64xf32>,
      } else {
      }
      %c0 = arith.constant 0 : index
      %c0_5 = arith.constant 0 : index
      %12 = vector.load %arg2[%c0, %c0_5] : memref<8x32xf32, #tpu.memory_space<vmem>>, vector<8x32xf32>
      %c0_6 = arith.constant 0 : index
      %c0_7 = arith.constant 0 : index
      %13 = vector.load %arg4[%c0_6, %c0_7] : memref<32x64xf32, #tpu.memory_space<vmem>>, vector<32x64xf32>
      %cst = arith.constant dense<0.000000e+00> : vector<8x64xf32>
      %14 = tpu.matmul %12, %13, %cst {dimension_numbers = #tpu.dot_dimension_numbers<[1], [0], [0], [1], [0, 0, 1, 1], [], []>, precision = #tpu.contract_precision<fp32>} : vector<8x32xf32>, vector<32x64xf32>, vector<8x64xf32> -> vector<8x64xf32>
      %c0_8 = arith.constant 0 : index
      %c0_9 = arith.constant 0 : index
      %15 = vector.load %arg8[%c0_8, %c0_9] : memref<8x64xf32, #tpu.memory_space<vmem>>, vector<1x64xf32>
      %16 = vector.broadcast %15 : vector<1x64xf32> to vector<8x64xf32>
      %17 = arith.addf %14, %16 : vector<8x64xf32>
      %c0_10 = arith.constant 0 : index
      %c0_11 = arith.constant 0 : index
      %18 = vector.load %arg13[%c0_10, %c0_11] : memref<2x64xf32, #tpu.memory_space<vmem>>, vector<1x64xf32>
      %cst_12 = arith.constant dense<0.000000e+00> : vector<64xf32>
      %19 = vector.multi_reduction <add>, %17, %cst_12 [0] : vector<8x64xf32> to vector<64xf32>
      %20 = vector.shape_cast %19 : vector<64xf32> to vector<1x64xf32>
      %21 = arith.addf %18, %20 : vector<1x64xf32>
      %c0_13 = arith.constant 0 : index
      %c0_14 = arith.constant 0 : index
      %22 = vector.load %arg13[%c0_13, %c0_14] : memref<2x64xf32, #tpu.memory_space<vmem>>, vector<1x64xf32>
      tpu.vector_store %arg13[%c0_13, %c0_14], %21 {strides = array<i32>} : memref<2x64xf32, #tpu.memory_space<vmem>>, vector<1x64xf32>,
      %c1 = arith.constant 1 : index
      %c0_15 = arith.constant 0 : index
      %23 = vector.load %arg13[%c1, %c0_15] : memref<2x64xf32, #tpu.memory_space<vmem>>, vector<1x64xf32>
      %24 = arith.mulf %17, %17 : vector<8x64xf32>
      %cst_16 = arith.constant dense<0.000000e+00> : vector<64xf32>
      %25 = vector.multi_reduction <add>, %24, %cst_16 [0] : vector<8x64xf32> to vector<64xf32>
      %26 = vector.shape_cast %25 : vector<64xf32> to vector<1x64xf32>
      %27 = arith.addf %23, %26 : vector<1x64xf32>
      %c1_17 = arith.constant 1 : index
      %c0_18 = arith.constant 0 : index
      %28 = vector.load %arg13[%c1_17, %c0_18] : memref<2x64xf32, #tpu.memory_space<vmem>>, vector<1x64xf32>
      tpu.vector_store %arg13[%c1_17, %c0_18], %27 {strides = array<i32>} : memref<2x64xf32, #tpu.memory_space<vmem>>, vector<1x64xf32>,
      %c1_i32_19 = arith.constant 1 : i32
      %29 = arith.cmpi eq, %arg1, %c1_i32_19 : i32
      %30 = arith.extui %29 : i1 to i32
      %c0_i32_20 = arith.constant 0 : i32
      %31 = arith.cmpi ne, %30, %c0_i32_20 : i32
      scf.if %31 {
        %c0_21 = arith.constant 0 : index
        %c0_22 = arith.constant 0 : index
        %32 = vector.load %arg13[%c0_21, %c0_22] : memref<2x64xf32, #tpu.memory_space<vmem>>, vector<1x64xf32>
        %cst_23 = arith.constant 6.250000e-02 : f32
        %33 = vector.broadcast %cst_23 : f32 to vector<1x64xf32>
        %34 = arith.mulf %32, %33 : vector<1x64xf32>
        %c1_24 = arith.constant 1 : index
        %c0_25 = arith.constant 0 : index
        %35 = vector.load %arg13[%c1_24, %c0_25] : memref<2x64xf32, #tpu.memory_space<vmem>>, vector<1x64xf32>
        %cst_26 = arith.constant 6.250000e-02 : f32
        %36 = vector.broadcast %cst_26 : f32 to vector<1x64xf32>
        %37 = arith.mulf %35, %36 : vector<1x64xf32>
        %38 = arith.mulf %34, %34 : vector<1x64xf32>
        %39 = arith.subf %37, %38 : vector<1x64xf32>
        %cst_27 = arith.constant 9.99999974E-6 : f32
        %40 = vector.broadcast %cst_27 : f32 to vector<1x64xf32>
        %41 = arith.addf %39, %40 : vector<1x64xf32>
        %42 = math.rsqrt %41 : vector<1x64xf32>
        %c1_28 = arith.constant 1 : index
        %c0_29 = arith.constant 0 : index
        %43 = vector.load %arg8[%c1_28, %c0_29] : memref<8x64xf32, #tpu.memory_space<vmem>>, vector<1x64xf32>
        %44 = arith.mulf %43, %42 : vector<1x64xf32>
        %c2 = arith.constant 2 : index
        %c0_30 = arith.constant 0 : index
        %45 = vector.load %arg8[%c2, %c0_30] : memref<8x64xf32, #tpu.memory_space<vmem>>, vector<1x64xf32>
        %46 = arith.mulf %34, %44 : vector<1x64xf32>
        %47 = arith.subf %45, %46 : vector<1x64xf32>
        %c0_31 = arith.constant 0 : index
        %c0_32 = arith.constant 0 : index
        %48 = vector.load %arg13[%c0_31, %c0_32] : memref<2x64xf32, #tpu.memory_space<vmem>>, vector<1x64xf32>
        tpu.vector_store %arg13[%c0_31, %c0_32], %44 {strides = array<i32>} : memref<2x64xf32, #tpu.memory_space<vmem>>, vector<1x64xf32>,
        %c1_33 = arith.constant 1 : index
        %c0_34 = arith.constant 0 : index
        %49 = vector.load %arg13[%c1_33, %c0_34] : memref<2x64xf32, #tpu.memory_space<vmem>>, vector<1x64xf32>
        tpu.vector_store %arg13[%c1_33, %c0_34], %47 {strides = array<i32>} : memref<2x64xf32, #tpu.memory_space<vmem>>, vector<1x64xf32>,
      } else {
      }
    } else {
    }
    %c1_i32 = arith.constant 1 : i32
    %3 = arith.cmpi eq, %arg0, %c1_i32 : i32
    %4 = arith.extui %3 : i1 to i32
    %c0_i32_1 = arith.constant 0 : i32
    %5 = arith.cmpi ne, %4, %c0_i32_1 : i32
    scf.if %5 {
      %c0_i32_3 = arith.constant 0 : i32
      %9 = arith.cmpi eq, %arg1, %c0_i32_3 : i32
      %10 = arith.extui %9 : i1 to i32
      %c0_i32_4 = arith.constant 0 : i32
      %11 = arith.cmpi ne, %10, %c0_i32_4 : i32
      scf.if %11 {
        %cst_42 = arith.constant 0.000000e+00 : f32
        %66 = vector.broadcast %cst_42 : f32 to vector<2x32xf32>
        %c0_43 = arith.constant 0 : index
        %c0_44 = arith.constant 0 : index
        %67 = vector.load %arg14[%c0_43, %c0_44] : memref<2x32xf32, #tpu.memory_space<vmem>>, vector<2x32xf32>
        tpu.vector_store %arg14[%c0_43, %c0_44], %66 {strides = array<i32>} : memref<2x32xf32, #tpu.memory_space<vmem>>, vector<2x32xf32>,
      } else {
      }
      %c0 = arith.constant 0 : index
      %c0_5 = arith.constant 0 : index
      %12 = vector.load %arg2[%c0, %c0_5] : memref<8x32xf32, #tpu.memory_space<vmem>>, vector<8x32xf32>
      %c0_6 = arith.constant 0 : index
      %c0_7 = arith.constant 0 : index
      %13 = vector.load %arg4[%c0_6, %c0_7] : memref<32x64xf32, #tpu.memory_space<vmem>>, vector<32x64xf32>
      %cst = arith.constant dense<0.000000e+00> : vector<8x64xf32>
      %14 = tpu.matmul %12, %13, %cst {dimension_numbers = #tpu.dot_dimension_numbers<[1], [0], [0], [1], [0, 0, 1, 1], [], []>, precision = #tpu.contract_precision<fp32>} : vector<8x32xf32>, vector<32x64xf32>, vector<8x64xf32> -> vector<8x64xf32>
      %c0_8 = arith.constant 0 : index
      %c0_9 = arith.constant 0 : index
      %15 = vector.load %arg8[%c0_8, %c0_9] : memref<8x64xf32, #tpu.memory_space<vmem>>, vector<1x64xf32>
      %16 = vector.broadcast %15 : vector<1x64xf32> to vector<8x64xf32>
      %17 = arith.addf %14, %16 : vector<8x64xf32>
      %c0_10 = arith.constant 0 : index
      %c0_11 = arith.constant 0 : index
      %18 = vector.load %arg13[%c0_10, %c0_11] : memref<2x64xf32, #tpu.memory_space<vmem>>, vector<1x64xf32>
      %19 = vector.broadcast %18 : vector<1x64xf32> to vector<8x64xf32>
      %20 = arith.mulf %17, %19 : vector<8x64xf32>
      %c1 = arith.constant 1 : index
      %c0_12 = arith.constant 0 : index
      %21 = vector.load %arg13[%c1, %c0_12] : memref<2x64xf32, #tpu.memory_space<vmem>>, vector<1x64xf32>
      %22 = vector.broadcast %21 : vector<1x64xf32> to vector<8x64xf32>
      %23 = arith.addf %20, %22 : vector<8x64xf32>
      %cst_13 = arith.constant 0.000000e+00 : f32
      %24 = vector.broadcast %cst_13 : f32 to vector<8x64xf32>
      %25 = arith.cmpf oge, %23, %24 : vector<8x64xf32>
      %cst_14 = arith.constant 0.00999999977 : f32
      %26 = vector.broadcast %cst_14 : f32 to vector<8x64xf32>
      %27 = arith.mulf %26, %23 : vector<8x64xf32>
      %28 = arith.select %25, %23, %27 : vector<8x64xi1>, vector<8x64xf32>
      %c0_15 = arith.constant 0 : index
      %c0_16 = arith.constant 0 : index
      %29 = vector.load %arg5[%c0_15, %c0_16] : memref<64x32xf32, #tpu.memory_space<vmem>>, vector<64x32xf32>
      %cst_17 = arith.constant dense<0.000000e+00> : vector<8x32xf32>
      %30 = tpu.matmul %28, %29, %cst_17 {dimension_numbers = #tpu.dot_dimension_numbers<[1], [0], [0], [1], [0, 0, 1, 1], [], []>, precision = #tpu.contract_precision<fp32>} : vector<8x64xf32>, vector<64x32xf32>, vector<8x32xf32> -> vector<8x32xf32>
      %c3 = arith.constant 3 : index
      %c0_18 = arith.constant 0 : index
      %31 = vector.load %arg8[%c3, %c0_18] : memref<8x64xf32, #tpu.memory_space<vmem>>, vector<1x32xf32>
      %32 = vector.broadcast %31 : vector<1x32xf32> to vector<8x32xf32>
      %33 = arith.addf %30, %32 : vector<8x32xf32>
      %34 = vector.extract_strided_slice %33 {offsets = [0, 0], sizes = [8, 16], strides = [1, 1]} : vector<8x32xf32> to vector<8x16xf32>
      %35 = vector.extract_strided_slice %33 {offsets = [0, 16], sizes = [8, 16], strides = [1, 1]} : vector<8x32xf32> to vector<8x16xf32>
      %cst_19 = arith.constant 5.000000e-01 : f32
      %36 = vector.broadcast %cst_19 : f32 to vector<8x16xf32>
      %37 = arith.mulf %36, %35 : vector<8x16xf32>
      %38 = math.exp %37 : vector<8x16xf32>
      %c0_20 = arith.constant 0 : index
      %c0_21 = arith.constant 0 : index
      %39 = vector.load %arg3[%c0_20, %c0_21] : memref<8x16xf32, #tpu.memory_space<vmem>>, vector<8x16xf32>
      %40 = arith.mulf %39, %38 : vector<8x16xf32>
      %41 = arith.addf %40, %34 : vector<8x16xf32>
      %c0_22 = arith.constant 0 : index
      %c0_23 = arith.constant 0 : index
      %42 = vector.load %arg6[%c0_22, %c0_23] : memref<16x64xf32, #tpu.memory_space<vmem>>, vector<16x64xf32>
      %cst_24 = arith.constant dense<0.000000e+00> : vector<8x64xf32>
      %43 = tpu.matmul %41, %42, %cst_24 {dimension_numbers = #tpu.dot_dimension_numbers<[1], [0], [0], [1], [0, 0, 1, 1], [], []>, precision = #tpu.contract_precision<fp32>} : vector<8x16xf32>, vector<16x64xf32>, vector<8x64xf32> -> vector<8x64xf32>
      %c4 = arith.constant 4 : index
      %c0_25 = arith.constant 0 : index
      %44 = vector.load %arg8[%c4, %c0_25] : memref<8x64xf32, #tpu.memory_space<vmem>>, vector<1x64xf32>
      %45 = vector.broadcast %44 : vector<1x64xf32> to vector<8x64xf32>
      %46 = arith.addf %43, %45 : vector<8x64xf32>
      %c0_26 = arith.constant 0 : index
      %c0_27 = arith.constant 0 : index
      %47 = vector.load %arg7[%c0_26, %c0_27] : memref<64x32xf32, #tpu.memory_space<vmem>>, vector<64x32xf32>
      %cst_28 = arith.constant dense<0.000000e+00> : vector<8x32xf32>
      %48 = tpu.matmul %46, %47, %cst_28 {dimension_numbers = #tpu.dot_dimension_numbers<[1], [0], [0], [1], [0, 0, 1, 1], [], []>, precision = #tpu.contract_precision<fp32>} : vector<8x64xf32>, vector<64x32xf32>, vector<8x32xf32> -> vector<8x32xf32>
      %c5 = arith.constant 5 : index
      %c0_29 = arith.constant 0 : index
      %49 = vector.load %arg8[%c5, %c0_29] : memref<8x64xf32, #tpu.memory_space<vmem>>, vector<1x32xf32>
      %50 = vector.broadcast %49 : vector<1x32xf32> to vector<8x32xf32>
      %51 = arith.addf %48, %50 : vector<8x32xf32>
      %c0_30 = arith.constant 0 : index
      %c0_31 = arith.constant 0 : index
      %52 = vector.load %arg14[%c0_30, %c0_31] : memref<2x32xf32, #tpu.memory_space<vmem>>, vector<1x32xf32>
      %cst_32 = arith.constant dense<0.000000e+00> : vector<32xf32>
      %53 = vector.multi_reduction <add>, %51, %cst_32 [0] : vector<8x32xf32> to vector<32xf32>
      %54 = vector.shape_cast %53 : vector<32xf32> to vector<1x32xf32>
      %55 = arith.addf %52, %54 : vector<1x32xf32>
      %c0_33 = arith.constant 0 : index
      %c0_34 = arith.constant 0 : index
      %56 = vector.load %arg14[%c0_33, %c0_34] : memref<2x32xf32, #tpu.memory_space<vmem>>, vector<1x32xf32>
      tpu.vector_store %arg14[%c0_33, %c0_34], %55 {strides = array<i32>} : memref<2x32xf32, #tpu.memory_space<vmem>>, vector<1x32xf32>,
      %c1_35 = arith.constant 1 : index
      %c0_36 = arith.constant 0 : index
      %57 = vector.load %arg14[%c1_35, %c0_36] : memref<2x32xf32, #tpu.memory_space<vmem>>, vector<1x32xf32>
      %58 = arith.mulf %51, %51 : vector<8x32xf32>
      %cst_37 = arith.constant dense<0.000000e+00> : vector<32xf32>
      %59 = vector.multi_reduction <add>, %58, %cst_37 [0] : vector<8x32xf32> to vector<32xf32>
      %60 = vector.shape_cast %59 : vector<32xf32> to vector<1x32xf32>
      %61 = arith.addf %57, %60 : vector<1x32xf32>
      %c1_38 = arith.constant 1 : index
      %c0_39 = arith.constant 0 : index
      %62 = vector.load %arg14[%c1_38, %c0_39] : memref<2x32xf32, #tpu.memory_space<vmem>>, vector<1x32xf32>
      tpu.vector_store %arg14[%c1_38, %c0_39], %61 {strides = array<i32>} : memref<2x32xf32, #tpu.memory_space<vmem>>, vector<1x32xf32>,
      %c1_i32_40 = arith.constant 1 : i32
      %63 = arith.cmpi eq, %arg1, %c1_i32_40 : i32
      %64 = arith.extui %63 : i1 to i32
      %c0_i32_41 = arith.constant 0 : i32
      %65 = arith.cmpi ne, %64, %c0_i32_41 : i32
      scf.if %65 {
        %c0_42 = arith.constant 0 : index
        %c0_43 = arith.constant 0 : index
        %66 = vector.load %arg14[%c0_42, %c0_43] : memref<2x32xf32, #tpu.memory_space<vmem>>, vector<1x32xf32>
        %cst_44 = arith.constant 6.250000e-02 : f32
        %67 = vector.broadcast %cst_44 : f32 to vector<1x32xf32>
        %68 = arith.mulf %66, %67 : vector<1x32xf32>
        %c1_45 = arith.constant 1 : index
        %c0_46 = arith.constant 0 : index
        %69 = vector.load %arg14[%c1_45, %c0_46] : memref<2x32xf32, #tpu.memory_space<vmem>>, vector<1x32xf32>
        %cst_47 = arith.constant 6.250000e-02 : f32
        %70 = vector.broadcast %cst_47 : f32 to vector<1x32xf32>
        %71 = arith.mulf %69, %70 : vector<1x32xf32>
        %72 = arith.mulf %68, %68 : vector<1x32xf32>
        %73 = arith.subf %71, %72 : vector<1x32xf32>
        %cst_48 = arith.constant 9.99999974E-6 : f32
        %74 = vector.broadcast %cst_48 : f32 to vector<1x32xf32>
        %75 = arith.addf %73, %74 : vector<1x32xf32>
        %76 = math.rsqrt %75 : vector<1x32xf32>
        %c6 = arith.constant 6 : index
        %c0_49 = arith.constant 0 : index
        %77 = vector.load %arg8[%c6, %c0_49] : memref<8x64xf32, #tpu.memory_space<vmem>>, vector<1x32xf32>
        %78 = arith.mulf %77, %76 : vector<1x32xf32>
        %c7 = arith.constant 7 : index
        %c0_50 = arith.constant 0 : index
        %79 = vector.load %arg8[%c7, %c0_50] : memref<8x64xf32, #tpu.memory_space<vmem>>, vector<1x32xf32>
        %80 = arith.mulf %68, %78 : vector<1x32xf32>
        %81 = arith.subf %79, %80 : vector<1x32xf32>
        %c0_51 = arith.constant 0 : index
        %c0_52 = arith.constant 0 : index
        %82 = vector.load %arg14[%c0_51, %c0_52] : memref<2x32xf32, #tpu.memory_space<vmem>>, vector<1x32xf32>
        tpu.vector_store %arg14[%c0_51, %c0_52], %78 {strides = array<i32>} : memref<2x32xf32, #tpu.memory_space<vmem>>, vector<1x32xf32>,
        %c1_53 = arith.constant 1 : index
        %c0_54 = arith.constant 0 : index
        %83 = vector.load %arg14[%c1_53, %c0_54] : memref<2x32xf32, #tpu.memory_space<vmem>>, vector<1x32xf32>
        tpu.vector_store %arg14[%c1_53, %c0_54], %81 {strides = array<i32>} : memref<2x32xf32, #tpu.memory_space<vmem>>, vector<1x32xf32>,
      } else {
      }
    } else {
    }
    %c2_i32 = arith.constant 2 : i32
    %6 = arith.cmpi eq, %arg0, %c2_i32 : i32
    %7 = arith.extui %6 : i1 to i32
    %c0_i32_2 = arith.constant 0 : i32
    %8 = arith.cmpi ne, %7, %c0_i32_2 : i32
    scf.if %8 {
      %c0 = arith.constant 0 : index
      %c0_3 = arith.constant 0 : index
      %9 = vector.load %arg2[%c0, %c0_3] : memref<8x32xf32, #tpu.memory_space<vmem>>, vector<8x32xf32>
      %c0_4 = arith.constant 0 : index
      %c0_5 = arith.constant 0 : index
      %10 = vector.load %arg4[%c0_4, %c0_5] : memref<32x64xf32, #tpu.memory_space<vmem>>, vector<32x64xf32>
      %cst = arith.constant dense<0.000000e+00> : vector<8x64xf32>
      %11 = tpu.matmul %9, %10, %cst {dimension_numbers = #tpu.dot_dimension_numbers<[1], [0], [0], [1], [0, 0, 1, 1], [], []>, precision = #tpu.contract_precision<fp32>} : vector<8x32xf32>, vector<32x64xf32>, vector<8x64xf32> -> vector<8x64xf32>
      %c0_6 = arith.constant 0 : index
      %c0_7 = arith.constant 0 : index
      %12 = vector.load %arg8[%c0_6, %c0_7] : memref<8x64xf32, #tpu.memory_space<vmem>>, vector<1x64xf32>
      %13 = vector.broadcast %12 : vector<1x64xf32> to vector<8x64xf32>
      %14 = arith.addf %11, %13 : vector<8x64xf32>
      %c0_8 = arith.constant 0 : index
      %c0_9 = arith.constant 0 : index
      %15 = vector.load %arg13[%c0_8, %c0_9] : memref<2x64xf32, #tpu.memory_space<vmem>>, vector<1x64xf32>
      %16 = vector.broadcast %15 : vector<1x64xf32> to vector<8x64xf32>
      %17 = arith.mulf %14, %16 : vector<8x64xf32>
      %c1 = arith.constant 1 : index
      %c0_10 = arith.constant 0 : index
      %18 = vector.load %arg13[%c1, %c0_10] : memref<2x64xf32, #tpu.memory_space<vmem>>, vector<1x64xf32>
      %19 = vector.broadcast %18 : vector<1x64xf32> to vector<8x64xf32>
      %20 = arith.addf %17, %19 : vector<8x64xf32>
      %cst_11 = arith.constant 0.000000e+00 : f32
      %21 = vector.broadcast %cst_11 : f32 to vector<8x64xf32>
      %22 = arith.cmpf oge, %20, %21 : vector<8x64xf32>
      %cst_12 = arith.constant 0.00999999977 : f32
      %23 = vector.broadcast %cst_12 : f32 to vector<8x64xf32>
      %24 = arith.mulf %23, %20 : vector<8x64xf32>
      %25 = arith.select %22, %20, %24 : vector<8x64xi1>, vector<8x64xf32>
      %c0_13 = arith.constant 0 : index
      %c0_14 = arith.constant 0 : index
      %26 = vector.load %arg5[%c0_13, %c0_14] : memref<64x32xf32, #tpu.memory_space<vmem>>, vector<64x32xf32>
      %cst_15 = arith.constant dense<0.000000e+00> : vector<8x32xf32>
      %27 = tpu.matmul %25, %26, %cst_15 {dimension_numbers = #tpu.dot_dimension_numbers<[1], [0], [0], [1], [0, 0, 1, 1], [], []>, precision = #tpu.contract_precision<fp32>} : vector<8x64xf32>, vector<64x32xf32>, vector<8x32xf32> -> vector<8x32xf32>
      %c3 = arith.constant 3 : index
      %c0_16 = arith.constant 0 : index
      %28 = vector.load %arg8[%c3, %c0_16] : memref<8x64xf32, #tpu.memory_space<vmem>>, vector<1x32xf32>
      %29 = vector.broadcast %28 : vector<1x32xf32> to vector<8x32xf32>
      %30 = arith.addf %27, %29 : vector<8x32xf32>
      %31 = vector.extract_strided_slice %30 {offsets = [0, 0], sizes = [8, 16], strides = [1, 1]} : vector<8x32xf32> to vector<8x16xf32>
      %32 = vector.extract_strided_slice %30 {offsets = [0, 16], sizes = [8, 16], strides = [1, 1]} : vector<8x32xf32> to vector<8x16xf32>
      %cst_17 = arith.constant 5.000000e-01 : f32
      %33 = vector.broadcast %cst_17 : f32 to vector<8x16xf32>
      %34 = arith.mulf %33, %32 : vector<8x16xf32>
      %35 = math.exp %34 : vector<8x16xf32>
      %c0_18 = arith.constant 0 : index
      %c0_19 = arith.constant 0 : index
      %36 = vector.load %arg3[%c0_18, %c0_19] : memref<8x16xf32, #tpu.memory_space<vmem>>, vector<8x16xf32>
      %37 = arith.mulf %36, %35 : vector<8x16xf32>
      %38 = arith.addf %37, %31 : vector<8x16xf32>
      %39 = arith.addf %35, %31 : vector<8x16xf32>
      %c0_20 = arith.constant 0 : index
      %c0_21 = arith.constant 0 : index
      %40 = vector.load %arg6[%c0_20, %c0_21] : memref<16x64xf32, #tpu.memory_space<vmem>>, vector<16x64xf32>
      %cst_22 = arith.constant dense<0.000000e+00> : vector<8x64xf32>
      %41 = tpu.matmul %38, %40, %cst_22 {dimension_numbers = #tpu.dot_dimension_numbers<[1], [0], [0], [1], [0, 0, 1, 1], [], []>, precision = #tpu.contract_precision<fp32>} : vector<8x16xf32>, vector<16x64xf32>, vector<8x64xf32> -> vector<8x64xf32>
      %c4 = arith.constant 4 : index
      %c0_23 = arith.constant 0 : index
      %42 = vector.load %arg8[%c4, %c0_23] : memref<8x64xf32, #tpu.memory_space<vmem>>, vector<1x64xf32>
      %43 = vector.broadcast %42 : vector<1x64xf32> to vector<8x64xf32>
      %44 = arith.addf %41, %43 : vector<8x64xf32>
      %c0_24 = arith.constant 0 : index
      %c0_25 = arith.constant 0 : index
      %45 = vector.load %arg7[%c0_24, %c0_25] : memref<64x32xf32, #tpu.memory_space<vmem>>, vector<64x32xf32>
      %cst_26 = arith.constant dense<0.000000e+00> : vector<8x32xf32>
      %46 = tpu.matmul %44, %45, %cst_26 {dimension_numbers = #tpu.dot_dimension_numbers<[1], [0], [0], [1], [0, 0, 1, 1], [], []>, precision = #tpu.contract_precision<fp32>} : vector<8x64xf32>, vector<64x32xf32>, vector<8x32xf32> -> vector<8x32xf32>
      %c5 = arith.constant 5 : index
      %c0_27 = arith.constant 0 : index
      %47 = vector.load %arg8[%c5, %c0_27] : memref<8x64xf32, #tpu.memory_space<vmem>>, vector<1x32xf32>
      %48 = vector.broadcast %47 : vector<1x32xf32> to vector<8x32xf32>
      %49 = arith.addf %46, %48 : vector<8x32xf32>
      %c0_28 = arith.constant 0 : index
      %c0_29 = arith.constant 0 : index
      %50 = vector.load %arg11[%c0_28, %c0_29] : memref<8x16xf32, #tpu.memory_space<vmem>>, vector<8x16xf32>
      tpu.vector_store %arg11[%c0_28, %c0_29], %31 {strides = array<i32>} : memref<8x16xf32, #tpu.memory_space<vmem>>, vector<8x16xf32>,
      %c0_30 = arith.constant 0 : index
      %c0_31 = arith.constant 0 : index
      %51 = vector.load %arg12[%c0_30, %c0_31] : memref<8x16xf32, #tpu.memory_space<vmem>>, vector<8x16xf32>
      tpu.vector_store %arg12[%c0_30, %c0_31], %32 {strides = array<i32>} : memref<8x16xf32, #tpu.memory_space<vmem>>, vector<8x16xf32>,
      %c0_32 = arith.constant 0 : index
      %c0_33 = arith.constant 0 : index
      %52 = vector.load %arg10[%c0_32, %c0_33] : memref<8x16xf32, #tpu.memory_space<vmem>>, vector<8x16xf32>
      tpu.vector_store %arg10[%c0_32, %c0_33], %39 {strides = array<i32>} : memref<8x16xf32, #tpu.memory_space<vmem>>, vector<8x16xf32>,
      %c0_34 = arith.constant 0 : index
      %c0_35 = arith.constant 0 : index
      %53 = vector.load %arg14[%c0_34, %c0_35] : memref<2x32xf32, #tpu.memory_space<vmem>>, vector<1x32xf32>
      %54 = vector.broadcast %53 : vector<1x32xf32> to vector<8x32xf32>
      %55 = arith.mulf %49, %54 : vector<8x32xf32>
      %c1_36 = arith.constant 1 : index
      %c0_37 = arith.constant 0 : index
      %56 = vector.load %arg14[%c1_36, %c0_37] : memref<2x32xf32, #tpu.memory_space<vmem>>, vector<1x32xf32>
      %57 = vector.broadcast %56 : vector<1x32xf32> to vector<8x32xf32>
      %58 = arith.addf %55, %57 : vector<8x32xf32>
      %cst_38 = arith.constant 0.000000e+00 : f32
      %59 = vector.broadcast %cst_38 : f32 to vector<8x32xf32>
      %60 = arith.subf %59, %58 : vector<8x32xf32>
      %61 = math.exp %60 : vector<8x32xf32>
      %cst_39 = arith.constant 1.000000e+00 : f32
      %62 = vector.broadcast %cst_39 : f32 to vector<8x32xf32>
      %63 = arith.addf %62, %61 : vector<8x32xf32>
      %cst_40 = arith.constant 1.000000e+00 : f32
      %64 = vector.broadcast %cst_40 : f32 to vector<8x32xf32>
      %65 = arith.divf %64, %63 : vector<8x32xf32>
      %c0_41 = arith.constant 0 : index
      %c0_42 = arith.constant 0 : index
      %66 = vector.load %arg9[%c0_41, %c0_42] : memref<8x32xf32, #tpu.memory_space<vmem>>, vector<8x32xf32>
      tpu.vector_store %arg9[%c0_41, %c0_42], %65 {strides = array<i32>} : memref<8x32xf32, #tpu.memory_space<vmem>>, vector<8x32xf32>,
    } else {
    }
    return
  }
  func.func @transform_0(%arg0: i32, %arg1: i32) -> (i32, i32) {
    %c0_i32 = arith.constant 0 : i32
    %c0_i32_0 = arith.constant 0 : i32
    return %arg1, %c0_i32 : i32, i32
  }
  func.func @transform_1(%arg0: i32, %arg1: i32) -> (i32, i32) {
    %c0_i32 = arith.constant 0 : i32
    %c0_i32_0 = arith.constant 0 : i32
    return %arg1, %c0_i32 : i32, i32
  }
  func.func @transform_2(%arg0: i32, %arg1: i32) -> (i32, i32) {
    %c0_i32 = arith.constant 0 : i32
    %c0_i32_0 = arith.constant 0 : i32
    %c0_i32_1 = arith.constant 0 : i32
    return %c0_i32, %c0_i32_0 : i32, i32
  }
  func.func @transform_3(%arg0: i32, %arg1: i32) -> (i32, i32) {
    %c0_i32 = arith.constant 0 : i32
    %c0_i32_0 = arith.constant 0 : i32
    %c0_i32_1 = arith.constant 0 : i32
    return %c0_i32, %c0_i32_0 : i32, i32
  }
  func.func @transform_4(%arg0: i32, %arg1: i32) -> (i32, i32) {
    %c0_i32 = arith.constant 0 : i32
    %c0_i32_0 = arith.constant 0 : i32
    %c0_i32_1 = arith.constant 0 : i32
    return %c0_i32, %c0_i32_0 : i32, i32
  }
  func.func @transform_5(%arg0: i32, %arg1: i32) -> (i32, i32) {
    %c0_i32 = arith.constant 0 : i32
    %c0_i32_0 = arith.constant 0 : i32
    %c0_i32_1 = arith.constant 0 : i32
    return %c0_i32, %c0_i32_0 : i32, i32
  }
  func.func @transform_6(%arg0: i32, %arg1: i32) -> (i32, i32) {
    %c0_i32 = arith.constant 0 : i32
    %c0_i32_0 = arith.constant 0 : i32
    %c0_i32_1 = arith.constant 0 : i32
    return %c0_i32, %c0_i32_0 : i32, i32
  }
  func.func @transform_7(%arg0: i32, %arg1: i32) -> (i32, i32) {
    %c0_i32 = arith.constant 0 : i32
    %c0_i32_0 = arith.constant 0 : i32
    return %arg1, %c0_i32 : i32, i32
  }
  func.func @transform_8(%arg0: i32, %arg1: i32) -> (i32, i32) {
    %c0_i32 = arith.constant 0 : i32
    %c0_i32_0 = arith.constant 0 : i32
    return %arg1, %c0_i32 : i32, i32
  }
  func.func @transform_9(%arg0: i32, %arg1: i32) -> (i32, i32) {
    %c0_i32 = arith.constant 0 : i32
    %c0_i32_0 = arith.constant 0 : i32
    return %arg1, %c0_i32 : i32, i32
  }
  func.func @transform_10(%arg0: i32, %arg1: i32) -> (i32, i32) {
    %c0_i32 = arith.constant 0 : i32
    %c0_i32_0 = arith.constant 0 : i32
    return %arg1, %c0_i32 : i32, i32
  }
}

</mosaic_0001>

<llo_original>
// kernel: tpu_custom_call.1
$region0: #{tpu_custom_call.1}
  #allocation0 [shape = 'u32[]', space=smem, size = 0x4, offset = 0x4, fixed_abs, tag = 'smem constant byte address 0x4 - core index']
  #allocation1 [shape = 'u32[144,128]{1,0:T(1,128)}', space=vmem, size = 0x12000, scoped, tag = 'internal scratch']
  #allocation2 [shape = 'f32[2,64]{1,0:T(2,128)}', space=vmem, size = 0x400, scoped, tag = 'scratch operand']
  #allocation3 [shape = 'f32[2,32]{1,0:T(2,128)}', space=vmem, size = 0x400, scoped, tag = 'scratch operand']
  %s0 = inlined_call_operand.vmem [shape: f32[16,32], index: 0, kind: input, shape index: {}]
  %s1 = inlined_call_operand.vmem [shape: f32[16,16], index: 1, kind: input, shape index: {}]
  %s2 = inlined_call_operand.vmem [shape: f32[32,64], index: 2, kind: input, shape index: {}]
  %s3 = inlined_call_operand.vmem [shape: f32[64,32], index: 3, kind: input, shape index: {}]
  %s4 = inlined_call_operand.vmem [shape: f32[16,64], index: 4, kind: input, shape index: {}]
  %s5 = inlined_call_operand.vmem [shape: f32[64,32], index: 5, kind: input, shape index: {}]
  %s6 = inlined_call_operand.vmem [shape: f32[8,64], index: 6, kind: input, shape index: {}]
  %s7 = inlined_call_operand.hbm [shape: f32[16,32], index: 7, kind: output, shape index: {0}]
  %s8 = inlined_call_operand.hbm [shape: f32[16,16], index: 8, kind: output, shape index: {1}]
  %s9 = inlined_call_operand.hbm [shape: f32[16,16], index: 9, kind: output, shape index: {2}]
  %s10 = inlined_call_operand.hbm [shape: f32[16,16], index: 10, kind: output, shape index: {3}]
  %11 = xla_tuple %s7, %s8, %s9, %s10
  %s12 = sld [smem:[#allocation0]]
  $region113: #{tpu_custom_call.1} parent=0
    _
  %s14 = ssub.s32 1, %s12
  %s15 = scalar_select 0, %s14, %s12
  $region1: #{tpu_custom_call.1} parent=0
    #allocation4 [shape = 'u8[8192]{0}', space=vmem, size = 0x2000, scoped, tag = 'output window, operand 0']
    #allocation5 [shape = 's32[2]{0}', space=sflag, size = 0x8, scoped, tag = 'scoped memory for tpu_custom_call.1']
    #allocation6 [shape = 'u8[8192]{0}', space=vmem, size = 0x2000, scoped, tag = 'output window, operand 1']
    #allocation7 [shape = 's32[2]{0}', space=sflag, size = 0x8, scoped, tag = 'scoped memory for tpu_custom_call.1']
    #allocation8 [shape = 'u8[8192]{0}', space=vmem, size = 0x2000, scoped, tag = 'output window, operand 2']
    #allocation9 [shape = 'u8[8192]{0}', space=vmem, size = 0x2000, scoped, tag = 'output window, operand 3']
    #allocation10 [shape = 's32[2]{0}', space=sflag, size = 0x8, scoped, tag = 'scoped memory for tpu_custom_call.1']
    %16 = vsyncpa [#allocation5], 0
    %s17 = scalar_lea.sflag [#allocation5], 1
    %18 = vsyncpa %s17, 0
    %19 = vsyncpa [#allocation7], 0
    %s20 = scalar_lea.sflag [#allocation7], 1
    %21 = vsyncpa %s20, 0
    %22 = vsyncpa [#allocation10], 0
    %s23 = scalar_lea.sflag [#allocation10], 1
    %24 = vsyncpa %s23, 0
    loop: start=0, step=1, limit=8
    $region2: #{tpu_custom_call.1} parent=1 // loop_pre_header
      _
    $region3: #{tpu_custom_call.1} parent=1 // loop_header
      %s26 = sphi 0, %s30
      %p27 = scmp.ge.s32.totalorder %s26, 8
      %s33 = sphi 0, %s45
      %s34 = sphi 0, %s41
      %s35 = sphi 0, %s33
      %s36 = sphi 0, %s34
      %s37 = sphi 0, %s35
      %s38 = sphi 0, %s36
      %s48 = sphi 0, %s50
      %s51 = sphi 0, %s48
      %s52 = sphi 0, %s51
      %s68 = sphi 0, %s52
      %s74 = sphi 0, %s76
      %s77 = sphi 0, %s74
      %s78 = sphi 0, %s77
      %s94 = sphi 0, %s78
      %s98 = sphi 0, %s98
      %s100 = sphi 0, %s98
      %s101 = sphi 0, %s100
      %s115 = sphi 0, %s101
      %s119 = sphi 0, %s119
      %s121 = sphi 0, %s119
      %s122 = sphi 0, %s121
      %s136 = sphi 0, %s122
      %s140 = sphi 0, %s140
      %s142 = sphi 0, %s140
      %s143 = sphi 0, %s142
      %s157 = sphi 0, %s143
      %s161 = sphi 0, %s161
      %s163 = sphi 0, %s161
      %s164 = sphi 0, %s163
      %s178 = sphi 0, %s164
      %s182 = sphi 0, %s182
      %s184 = sphi 0, %s182
      %s185 = sphi 0, %s184
      %s199 = sphi 0, %s185
      %s205 = sphi 0, %s207
      %s208 = sphi 0, %s205
      %s209 = sphi 0, %s208
      %s225 = sphi 0, %s209
      %s231 = sphi 0, %s233
      %s234 = sphi 0, %s231
      %s235 = sphi 0, %s234
      %s251 = sphi 0, %s235
      %s257 = sphi 0, %s259
      %s260 = sphi 0, %s257
      %s261 = sphi 0, %s260
      %s277 = sphi 0, %s261
      %s283 = sphi 0, %s285
      %s286 = sphi 0, %s283
      %s287 = sphi 0, %s286
      %s303 = sphi 0, %s287
    $region4: #{tpu_custom_call.1} parent=1 // loop_header_branch
      %29 = sbr.rel (%p27) target = $region8
    $region5: #{tpu_custom_call.1} parent=1 // loop_body
      %s31 = ssub.s32 %s26, 1
      %s32 = ssub.s32 %s26, 2
      %s39 = sadd.s32 1, %s34
      %p40 = scmp.ge.s32.totalorder %s39, 2
      %s41 = scalar_select %p40, 0, %s39
      %s42 = sadd.s32 1, %s33
      %s43 = scalar_select %p40, %s42, %s33
      %p44 = scmp.ge.s32.totalorder %s43, 3
      %s45 = scalar_select %p44, 0, %s43
      %s46 = ssub.s32 %s34, %s41
      %p47 = scmp.eq.s32.totalorder %s46, 0
      %s49 = sadd.s32 %s48, 1
      %s50 = scalar_select %p47, %s48, %s49
      %p53 = pneg %p47
      %p54 = scmp.eq.s32.totalorder %s26, 5
      %p55 = por %p53, %p54
      %p56 = scmp.ne.s32.totalorder %s48, %s51
      %p57 = scmp.eq.s32.totalorder %s26, 0
      %p58 = por %p56, %p57
      %p59 = scmp.ne.s32.totalorder %s48, %s51
      %p60 = scmp.eq.s32.totalorder %s31, 5
      %p61 = por %p59, %p60
      %p62 = scmp.ne.s32.totalorder %s51, %s52
      %p63 = scmp.eq.s32.totalorder %s31, 0
      %p64 = por %p62, %p63
      %p65 = scmp.ne.s32.totalorder %s51, %s52
      %p66 = scmp.eq.s32.totalorder %s32, 5
      %p67 = por %p65, %p66
      %p69 = scmp.ne.s32.totalorder %s52, %s68
      %p70 = scmp.eq.s32.totalorder %s32, 0
      %p71 = por %p69, %p70
      %s72 = ssub.s32 %s34, %s41
      %p73 = scmp.eq.s32.totalorder %s72, 0
      %s75 = sadd.s32 %s74, 1
      %s76 = scalar_select %p73, %s74, %s75
      %p79 = pneg %p73
      %p80 = scmp.eq.s32.totalorder %s26, 5
      %p81 = por %p79, %p80
      %p82 = scmp.ne.s32.totalorder %s74, %s77
      %p83 = scmp.eq.s32.totalorder %s26, 0
      %p84 = por %p82, %p83
      %p85 = scmp.ne.s32.totalorder %s74, %s77
      %p86 = scmp.eq.s32.totalorder %s31, 5
      %p87 = por %p85, %p86
      %p88 = scmp.ne.s32.totalorder %s77, %s78
      %p89 = scmp.eq.s32.totalorder %s31, 0
      %p90 = por %p88, %p89
      %p91 = scmp.ne.s32.totalorder %s77, %s78
      %p92 = scmp.eq.s32.totalorder %s32, 5
      %p93 = por %p91, %p92
      %p95 = scmp.ne.s32.totalorder %s78, %s94
      %p96 = scmp.eq.s32.totalorder %s32, 0
      %p97 = por %p95, %p96
      %s99 = sadd.s32 %s98, 1
      %p102 = scmp.eq.s32.totalorder %s26, 5
      %p103 = scmp.ne.s32.totalorder %s98, %s100
      %p104 = scmp.eq.s32.totalorder %s26, 0
      %p105 = por %p103, %p104
      %p106 = scmp.ne.s32.totalorder %s98, %s100
      %p107 = scmp.eq.s32.totalorder %s31, 5
      %p108 = por %p106, %p107
      %p109 = scmp.ne.s32.totalorder %s100, %s101
      %p110 = scmp.eq.s32.totalorder %s31, 0
      %p111 = por %p109, %p110
      %p112 = scmp.ne.s32.totalorder %s100, %s101
      %p113 = scmp.eq.s32.totalorder %s32, 5
      %p114 = por %p112, %p113
      %p116 = scmp.ne.s32.totalorder %s101, %s115
      %p117 = scmp.eq.s32.totalorder %s32, 0
      %p118 = por %p116, %p117
      %s120 = sadd.s32 %s119, 1
      %p123 = scmp.eq.s32.totalorder %s26, 5
      %p124 = scmp.ne.s32.totalorder %s119, %s121
      %p125 = scmp.eq.s32.totalorder %s26, 0
      %p126 = por %p124, %p125
      %p127 = scmp.ne.s32.totalorder %s119, %s121
      %p128 = scmp.eq.s32.totalorder %s31, 5
      %p129 = por %p127, %p128
      %p130 = scmp.ne.s32.totalorder %s121, %s122
      %p131 = scmp.eq.s32.totalorder %s31, 0
      %p132 = por %p130, %p131
      %p133 = scmp.ne.s32.totalorder %s121, %s122
      %p134 = scmp.eq.s32.totalorder %s32, 5
      %p135 = por %p133, %p134
      %p137 = scmp.ne.s32.totalorder %s122, %s136
      %p138 = scmp.eq.s32.totalorder %s32, 0
      %p139 = por %p137, %p138
      %s141 = sadd.s32 %s140, 1
      %p144 = scmp.eq.s32.totalorder %s26, 5
      %p145 = scmp.ne.s32.totalorder %s140, %s142
      %p146 = scmp.eq.s32.totalorder %s26, 0
      %p147 = por %p145, %p146
      %p148 = scmp.ne.s32.totalorder %s140, %s142
      %p149 = scmp.eq.s32.totalorder %s31, 5
      %p150 = por %p148, %p149
      %p151 = scmp.ne.s32.totalorder %s142, %s143
      %p152 = scmp.eq.s32.totalorder %s31, 0
      %p153 = por %p151, %p152
      %p154 = scmp.ne.s32.totalorder %s142, %s143
      %p155 = scmp.eq.s32.totalorder %s32, 5
      %p156 = por %p154, %p155
      %p158 = scmp.ne.s32.totalorder %s143, %s157
      %p159 = scmp.eq.s32.totalorder %s32, 0
      %p160 = por %p158, %p159
      %s162 = sadd.s32 %s161, 1
      %p165 = scmp.eq.s32.totalorder %s26, 5
      %p166 = scmp.ne.s32.totalorder %s161, %s163
      %p167 = scmp.eq.s32.totalorder %s26, 0
      %p168 = por %p166, %p167
      %p169 = scmp.ne.s32.totalorder %s161, %s163
      %p170 = scmp.eq.s32.totalorder %s31, 5
      %p171 = por %p169, %p170
      %p172 = scmp.ne.s32.totalorder %s163, %s164
      %p173 = scmp.eq.s32.totalorder %s31, 0
      %p174 = por %p172, %p173
      %p175 = scmp.ne.s32.totalorder %s163, %s164
      %p176 = scmp.eq.s32.totalorder %s32, 5
      %p177 = por %p175, %p176
      %p179 = scmp.ne.s32.totalorder %s164, %s178
      %p180 = scmp.eq.s32.totalorder %s32, 0
      %p181 = por %p179, %p180
      %s183 = sadd.s32 %s182, 1
      %p186 = scmp.eq.s32.totalorder %s26, 5
      %p187 = scmp.ne.s32.totalorder %s182, %s184
      %p188 = scmp.eq.s32.totalorder %s26, 0
      %p189 = por %p187, %p188
      %p190 = scmp.ne.s32.totalorder %s182, %s184
      %p191 = scmp.eq.s32.totalorder %s31, 5
      %p192 = por %p190, %p191
      %p193 = scmp.ne.s32.totalorder %s184, %s185
      %p194 = scmp.eq.s32.totalorder %s31, 0
      %p195 = por %p193, %p194
      %p196 = scmp.ne.s32.totalorder %s184, %s185
      %p197 = scmp.eq.s32.totalorder %s32, 5
      %p198 = por %p196, %p197
      %p200 = scmp.ne.s32.totalorder %s185, %s199
      %p201 = scmp.eq.s32.totalorder %s32, 0
      %p202 = por %p200, %p201
      %s203 = ssub.s32 %s34, %s41
      %p204 = scmp.eq.s32.totalorder %s203, 0
      %s206 = sadd.s32 %s205, 1
      %s207 = scalar_select %p204, %s205, %s206
      %p210 = pneg %p204
      %p211 = scmp.eq.s32.totalorder %s26, 5
      %p212 = por %p210, %p211
      %p213 = scmp.ne.s32.totalorder %s205, %s208
      %p214 = scmp.eq.s32.totalorder %s26, 0
      %p215 = por %p213, %p214
      %p216 = scmp.ne.s32.totalorder %s205, %s208
      %p217 = scmp.eq.s32.totalorder %s31, 5
      %p218 = por %p216, %p217
      %p219 = scmp.ne.s32.totalorder %s208, %s209
      %p220 = scmp.eq.s32.totalorder %s31, 0
      %p221 = por %p219, %p220
      %p222 = scmp.ne.s32.totalorder %s208, %s209
      %p223 = scmp.eq.s32.totalorder %s32, 5
      %p224 = por %p222, %p223
      %p226 = scmp.ne.s32.totalorder %s209, %s225
      %p227 = scmp.eq.s32.totalorder %s32, 0
      %p228 = por %p226, %p227
      %s229 = ssub.s32 %s34, %s41
      %p230 = scmp.eq.s32.totalorder %s229, 0
      %s232 = sadd.s32 %s231, 1
      %s233 = scalar_select %p230, %s231, %s232
      %p236 = pneg %p230
      %p237 = scmp.eq.s32.totalorder %s26, 5
      %p238 = por %p236, %p237
      %p239 = scmp.ne.s32.totalorder %s231, %s234
      %p240 = scmp.eq.s32.totalorder %s26, 0
      %p241 = por %p239, %p240
      %p242 = scmp.ne.s32.totalorder %s231, %s234
      %p243 = scmp.eq.s32.totalorder %s31, 5
      %p244 = por %p242, %p243
      %p245 = scmp.ne.s32.totalorder %s234, %s235
      %p246 = scmp.eq.s32.totalorder %s31, 0
      %p247 = por %p245, %p246
      %p248 = scmp.ne.s32.totalorder %s234, %s235
      %p249 = scmp.eq.s32.totalorder %s32, 5
      %p250 = por %p248, %p249
      %p252 = scmp.ne.s32.totalorder %s235, %s251
      %p253 = scmp.eq.s32.totalorder %s32, 0
      %p254 = por %p252, %p253
      %s255 = ssub.s32 %s34, %s41
      %p256 = scmp.eq.s32.totalorder %s255, 0
      %s258 = sadd.s32 %s257, 1
      %s259 = scalar_select %p256, %s257, %s258
      %p262 = pneg %p256
      %p263 = scmp.eq.s32.totalorder %s26, 5
      %p264 = por %p262, %p263
      %p265 = scmp.ne.s32.totalorder %s257, %s260
      %p266 = scmp.eq.s32.totalorder %s26, 0
      %p267 = por %p265, %p266
      %p268 = scmp.ne.s32.totalorder %s257, %s260
      %p269 = scmp.eq.s32.totalorder %s31, 5
      %p270 = por %p268, %p269
      %p271 = scmp.ne.s32.totalorder %s260, %s261
      %p272 = scmp.eq.s32.totalorder %s31, 0
      %p273 = por %p271, %p272
      %p274 = scmp.ne.s32.totalorder %s260, %s261
      %p275 = scmp.eq.s32.totalorder %s32, 5
      %p276 = por %p274, %p275
      %p278 = scmp.ne.s32.totalorder %s261, %s277
      %p279 = scmp.eq.s32.totalorder %s32, 0
      %p280 = por %p278, %p279
      %s281 = ssub.s32 %s34, %s41
      %p282 = scmp.eq.s32.totalorder %s281, 0
      %s284 = sadd.s32 %s283, 1
      %s285 = scalar_select %p282, %s283, %s284
      %p288 = pneg %p282
      %p289 = scmp.eq.s32.totalorder %s26, 5
      %p290 = por %p288, %p289
      %p291 = scmp.ne.s32.totalorder %s283, %s286
      %p292 = scmp.eq.s32.totalorder %s26, 0
      %p293 = por %p291, %p292
      %p294 = scmp.ne.s32.totalorder %s283, %s286
      %p295 = scmp.eq.s32.totalorder %s31, 5
      %p296 = por %p294, %p295
      %p297 = scmp.ne.s32.totalorder %s286, %s287
      %p298 = scmp.eq.s32.totalorder %s31, 0
      %p299 = por %p297, %p298
      %p300 = scmp.ne.s32.totalorder %s286, %s287
      %p301 = scmp.eq.s32.totalorder %s32, 5
      %p302 = por %p300, %p301
      %p304 = scmp.ne.s32.totalorder %s287, %s303
      %p305 = scmp.eq.s32.totalorder %s32, 0
      %p306 = por %p304, %p305
      %p307 = scmp.le.s32.totalorder 1, %s26
      %p308 = scmp.lt.s32.totalorder %s26, 7
      %p309 = pnand %p307, %p308
      %p310 = pneg %p309
      // Predicated region
      $region9: #{tpu_custom_call.1} parent=5 // pred_check
        _
      $region10: #{tpu_custom_call.1} parent=5 // pred_check_branch
        %312 = sbr.rel (%p309) target = $region12
      $region11: #{tpu_custom_call.1} parent=5 // pred_region
        %s313 = ssub.s32 %s26, 1
        // Predicated region
        $region13: #{tpu_custom_call.1} parent=11 // pred_check
          %p314 = pneg %p111
        $region14: #{tpu_custom_call.1} parent=11 // pred_check_branch
          %316 = sbr.rel (%p314) target = $region16
        $region15: #{tpu_custom_call.1} parent=11 // pred_region
          _
        $region16: #{tpu_custom_call.1} parent=11 // pred_fallthru
          _
        // Predicated region
        $region17: #{tpu_custom_call.1} parent=11 // pred_check
          %p317 = pneg %p132
        $region18: #{tpu_custom_call.1} parent=11 // pred_check_branch
          %319 = sbr.rel (%p317) target = $region20
        $region19: #{tpu_custom_call.1} parent=11 // pred_region
          _
        $region20: #{tpu_custom_call.1} parent=11 // pred_fallthru
          _
        // Predicated region
        $region21: #{tpu_custom_call.1} parent=11 // pred_check
          %p320 = pneg %p153
        $region22: #{tpu_custom_call.1} parent=11 // pred_check_branch
          %322 = sbr.rel (%p320) target = $region24
        $region23: #{tpu_custom_call.1} parent=11 // pred_region
          _
        $region24: #{tpu_custom_call.1} parent=11 // pred_fallthru
          _
        // Predicated region
        $region25: #{tpu_custom_call.1} parent=11 // pred_check
          %p323 = pneg %p174
        $region26: #{tpu_custom_call.1} parent=11 // pred_check_branch
          %325 = sbr.rel (%p323) target = $region28
        $region27: #{tpu_custom_call.1} parent=11 // pred_region
          _
        $region28: #{tpu_custom_call.1} parent=11 // pred_fallthru
          _
        // Predicated region
        $region29: #{tpu_custom_call.1} parent=11 // pred_check
          %p326 = pneg %p195
        $region30: #{tpu_custom_call.1} parent=11 // pred_check_branch
          %328 = sbr.rel (%p326) target = $region32
        $region31: #{tpu_custom_call.1} parent=11 // pred_region
          _
        $region32: #{tpu_custom_call.1} parent=11 // pred_fallthru
          _
      $region12: #{tpu_custom_call.1} parent=5 // pred_fallthru
        _
      %p329 = scmp.lt.s32.totalorder %s26, 6
      // Predicated region
      $region33: #{tpu_custom_call.1} parent=5 // pred_check
        %p330 = pneg %p329
      $region34: #{tpu_custom_call.1} parent=5 // pred_check_branch
        %332 = sbr.rel (%p330) target = $region36
      $region35: #{tpu_custom_call.1} parent=5 // pred_region
        // Predicated region
        $region37: #{tpu_custom_call.1} parent=35 // pred_check
          %p333 = pneg %p58
        $region38: #{tpu_custom_call.1} parent=35 // pred_check_branch
          %335 = sbr.rel (%p333) target = $region40
        $region39: #{tpu_custom_call.1} parent=35 // pred_region
          %p336 = scmp.lt.s32.totalorder %s34, 1
          %s337 = scalar_select %p336, %s34, 1
          %s338 = smul.addr %s337, 8
          %s339 = scalar_lea.vmem %s0, %s338
        $region40: #{tpu_custom_call.1} parent=35 // pred_fallthru
          _
        // Predicated region
        $region41: #{tpu_custom_call.1} parent=35 // pred_check
          %p340 = pneg %p84
        $region42: #{tpu_custom_call.1} parent=35 // pred_check_branch
          %342 = sbr.rel (%p340) target = $region44
        $region43: #{tpu_custom_call.1} parent=35 // pred_region
          %p343 = scmp.lt.s32.totalorder %s34, 1
          %s344 = scalar_select %p343, %s34, 1
          %s345 = smul.addr %s344, 8
          %s346 = scalar_lea.vmem %s1, %s345
        $region44: #{tpu_custom_call.1} parent=35 // pred_fallthru
          _
      $region36: #{tpu_custom_call.1} parent=5 // pred_fallthru
        _
      %p347 = scmp.le.s32.totalorder 1, %s26
      %p348 = scmp.lt.s32.totalorder %s26, 7
      %p349 = pnand %p347, %p348
      %p350 = pneg %p349
      // Predicated region
      $region45: #{tpu_custom_call.1} parent=5 // pred_check
        _
      $region46: #{tpu_custom_call.1} parent=5 // pred_check_branch
        %352 = sbr.rel (%p349) target = $region48
      $region47: #{tpu_custom_call.1} parent=5 // pred_region
        %s353 = ssub.s32 %s26, 1
        %p354 = scmp.lt.s32.totalorder %s36, 1
        %s355 = scalar_select %p354, %s36, 1
        %s356 = smul.addr %s355, 8
        %s357 = scalar_lea.vmem %s0, %s356
        %p358 = pneg %p64
        %p359 = pneg %p61
        %p360 = scmp.lt.s32.totalorder %s36, 1
        %s361 = scalar_select %p360, %s36, 1
        %s362 = smul.addr %s361, 8
        %s363 = scalar_lea.vmem %s1, %s362
        %p364 = pneg %p90
        %p365 = pneg %p87
        %p366 = pneg %p111
        %p367 = pneg %p108
        %p368 = pneg %p132
        %p369 = pneg %p129
        %p370 = pneg %p153
        %p371 = pneg %p150
        %p372 = pneg %p174
        %p373 = pneg %p171
        %p374 = pneg %p195
        %p375 = pneg %p192
        %p376 = pneg %p221
        %p377 = pneg %p218
        %s378 = sand.u32 %s208, 1
        %s379 = scalar_lea.sflag [#allocation5], %s378
        %s380 = sand.u32 %s208, 1
        %s381 = smul.addr %s380, 8
        %s382 = scalar_lea.vmem [#allocation4], %s381
        %p383 = pneg %p247
        %p384 = pneg %p244
        %s385 = sand.u32 %s31, 1
        %s386 = scalar_lea.sflag [#allocation7], %s385
        %s387 = sand.u32 %s234, 1
        %s388 = smul.addr %s387, 8
        %s389 = scalar_lea.vmem [#allocation6], %s388
        %p390 = pneg %p273
        %p391 = pneg %p270
        %s392 = sand.u32 %s31, 1
        %s393 = scalar_lea.sflag [#allocation7], %s392
        %s394 = sand.u32 %s260, 1
        %s395 = smul.addr %s394, 8
        %s396 = scalar_lea.vmem [#allocation8], %s395
        %p397 = pneg %p299
        %p398 = pneg %p296
        %s399 = sand.u32 %s286, 1
        %s400 = scalar_lea.sflag [#allocation10], %s399
        %s401 = sand.u32 %s286, 1
        %s402 = smul.addr %s401, 8
        %s403 = scalar_lea.vmem [#allocation9], %s402
        %p404 = scmp.lt.s32.totalorder %s36, 1
        %s405 = scalar_select %p404, %s36, 1
        %s406 = smul.addr %s405, 8
        %s407 = scalar_lea.vmem %s0, %s406
        %p408 = scmp.lt.s32.totalorder %s36, 1
        %s409 = scalar_select %p408, %s36, 1
        %s410 = smul.addr %s409, 8
        %s411 = scalar_lea.vmem %s1, %s410
        %p412 = scmp.eq.s32.totalorder %s35, 0
        // Predicated region
        $region49: #{tpu_custom_call.1} parent=47 // pred_check
          %p413 = pneg %p412
        $region50: #{tpu_custom_call.1} parent=47 // pred_check_branch
          %415 = sbr.rel (%p413) target = $region52
        $region51: #{tpu_custom_call.1} parent=47 // pred_region
          %p416 = scmp.eq.s32.totalorder %s36, 0
          // Predicated region
          $region53: #{tpu_custom_call.1} parent=51 // pred_check
            %p417 = pneg %p416
          $region54: #{tpu_custom_call.1} parent=51 // pred_check_branch
            %419 = sbr.rel (%p417) target = $region56
          $region55: #{tpu_custom_call.1} parent=51 // pred_region
            %vm420 = vcmask 517120
            %421 = vst.msk [vmem:[#allocation2] sm:$0x3] %vm420, 0.0
          $region56: #{tpu_custom_call.1} parent=51 // pred_fallthru
            _
          %v422 = vld [vmem:[%s407] sm:$0xff]
          %v423 = vld [vmem:[%s2] sm:$0xff]
          %v424 = vld [vmem:[%s2 + $0x8] sm:$0xff]
          %v425 = vld [vmem:[%s2 + $0x10] sm:$0xff]
          %v426 = vld [vmem:[%s2 + $0x18] sm:$0xff]
          %v427 = vld [vmem:[%s6] sm:$0x1]
          %v428 = vlaneseq
          %v429 = vshrl.u32 %v428, 7
          %v430 = vsub.s32 0, %v429
          %v431 = vrot.slane %v427, %v430
          %vm432 = vcmask 261120
          %v434 = vsel %vm432, %v422, 0
          %436 = vmatprep.subr.mxu0 0.0
          %437 = vmatpush1.msra.mxu0 0.0
          %438 = vmatprep.subr.mxu0 0.0
          %439 = vmatpush1.msra.mxu0 0.0
          %440 = vmatprep.subr.mxu0 0.0
          %441 = vmatpush1.msra.mxu0 0.0
          %442 = vmatprep.subr.mxu0 0.0
          %443 = vmatpush1.msra.mxu0 0.0
          %444 = vmatprep.subr.mxu0 0.0
          %445 = vmatpush1.msra.mxu0 0.0
          %446 = vmatprep.subr.mxu0 0.0
          %447 = vmatpush1.msra.mxu0 0.0
          %448 = vmatprep.subr.mxu0 0.0
          %449 = vmatpush1.msra.mxu0 0.0
          %450 = vmatprep.subr.mxu0 0.0
          %451 = vmatpush1.msra.mxu0 0.0
          %452 = vmatprep.subr.mxu0 0.0
          %453 = vmatpush1.msra.mxu0 0.0
          %454 = vmatprep.subr.mxu0 0.0
          %455 = vmatpush1.msra.mxu0 0.0
          %456 = vmatprep.subr.mxu0 0.0
          %457 = vmatpush1.msra.mxu0 0.0
          %458 = vmatprep.subr.mxu0 0.0
          %459 = vmatpush1.msra.mxu0 0.0
          %460 = vmatprep.subr.mxu0 0.0
          %v461 = vand.u32 %v426, 4294901760
          %462 = vmatpush1.msra.mxu0 %v461
          %463 = vmatprep.subr.mxu0 0.0
          %v464 = vand.u32 %v425, 4294901760
          %465 = vmatpush1.msra.mxu0 %v464
          %466 = vmatprep.subr.mxu0 0.0
          %v467 = vand.u32 %v424, 4294901760
          %468 = vmatpush1.msra.mxu0 %v467
          %469 = vmatprep.subr.mxu0 0.0
          %v470 = vand.u32 %v423, 4294901760
          %471 = vmatpush1.msra.mxu0 %v470
          %472 = vmatprep.subr.mxu0 0.0
          %473 = vmatpush2.msra.mxu0 0.0
          %474 = vmatprep.subr.mxu0 0.0
          %475 = vmatpush2.msra.mxu0 0.0
          %476 = vmatprep.subr.mxu0 0.0
          %477 = vmatpush2.msra.mxu0 0.0
          %478 = vmatprep.subr.mxu0 0.0
          %479 = vmatpush2.msra.mxu0 0.0
          %480 = vmatprep.subr.mxu0 0.0
          %481 = vmatpush2.msra.mxu0 0.0
          %482 = vmatprep.subr.mxu0 0.0
          %483 = vmatpush2.msra.mxu0 0.0
          %484 = vmatprep.subr.mxu0 0.0
          %485 = vmatpush2.msra.mxu0 0.0
          %486 = vmatprep.subr.mxu0 0.0
          %487 = vmatpush2.msra.mxu0 0.0
          %488 = vmatprep.subr.mxu0 0.0
          %489 = vmatpush2.msra.mxu0 0.0
          %490 = vmatprep.subr.mxu0 0.0
          %491 = vmatpush2.msra.mxu0 0.0
          %492 = vmatprep.subr.mxu0 0.0
          %493 = vmatpush2.msra.mxu0 0.0
          %494 = vmatprep.subr.mxu0 0.0
          %495 = vmatpush2.msra.mxu0 0.0
          %496 = vmatprep.subr.mxu0 0.0
          %497 = vmatpush2.msra.mxu0 0.0
          %498 = vmatprep.subr.mxu0 0.0
          %499 = vmatpush2.msra.mxu0 0.0
          %500 = vmatprep.subr.mxu0 0.0
          %501 = vmatpush2.msra.mxu0 0.0
          %502 = vmatprep.subr.mxu0 0.0
          %503 = vmatpush2.msra.mxu0 0.0
          %504 = vmatprep.mubr.f32.mxu0 0.0
          %v505 = vand.u32 %v434, 4294901760
          %v506 = vsub.f32 %v434, %v505
          %v507 = vand.u32 %v506, 4294901760
          %v508 = vsub.f32 %v506, %v507
          %v509 = vand.u32 %v508, 4294901760
          %510 = vmatmul.mubr.f32.gmra.mxu0 %v509
          %v511 = vpop.f32.mrf.mxu0
          %v512 = vadd.f32 %v431, %v511
          %v513 = vpop.f32.mrf.mxu0
          %514 = vdwg.mxu0
          %515 = vmatprep.subr.mxu0 0.0
          %516 = vmatpush1.msra.mxu0 0.0
          %517 = vmatprep.subr.mxu0 0.0
          %518 = vmatpush1.msra.mxu0 0.0
          %519 = vmatprep.subr.mxu0 0.0
          %520 = vmatpush1.msra.mxu0 0.0
          %521 = vmatprep.subr.mxu0 0.0
          %522 = vmatpush1.msra.mxu0 0.0
          %523 = vmatprep.subr.mxu0 0.0
          %524 = vmatpush1.msra.mxu0 0.0
          %525 = vmatprep.subr.mxu0 0.0
          %526 = vmatpush1.msra.mxu0 0.0
          %527 = vmatprep.subr.mxu0 0.0
          %528 = vmatpush1.msra.mxu0 0.0
          %529 = vmatprep.subr.mxu0 0.0
          %530 = vmatpush1.msra.mxu0 0.0
          %531 = vmatprep.subr.mxu0 0.0
          %532 = vmatpush1.msra.mxu0 0.0
          %533 = vmatprep.subr.mxu0 0.0
          %534 = vmatpush1.msra.mxu0 0.0
          %535 = vmatprep.subr.mxu0 0.0
          %536 = vmatpush1.msra.mxu0 0.0
          %537 = vmatprep.subr.mxu0 0.0
          %538 = vmatpush1.msra.mxu0 0.0
          %539 = vmatprep.subr.mxu0 0.0
          %v540 = vand.u32 %v426, 4294901760
          %v541 = vsub.f32 %v426, %v540
          %v542 = vand.u32 %v541, 4294901760
          %v543 = vsub.f32 %v541, %v542
          %v544 = vand.u32 %v543, 4294901760
          %545 = vmatpush1.msra.mxu0 %v544
          %546 = vmatprep.subr.mxu0 0.0
          %v547 = vand.u32 %v425, 4294901760
          %v548 = vsub.f32 %v425, %v547
          %v549 = vand.u32 %v548, 4294901760
          %v550 = vsub.f32 %v548, %v549
          %v551 = vand.u32 %v550, 4294901760
          %552 = vmatpush1.msra.mxu0 %v551
          %553 = vmatprep.subr.mxu0 0.0
          %v554 = vand.u32 %v424, 4294901760
          %v555 = vsub.f32 %v424, %v554
          %v556 = vand.u32 %v555, 4294901760
          %v557 = vsub.f32 %v555, %v556
          %v558 = vand.u32 %v557, 4294901760
          %559 = vmatpush1.msra.mxu0 %v558
          %560 = vmatprep.subr.mxu0 0.0
          %v561 = vand.u32 %v423, 4294901760
          %v562 = vsub.f32 %v423, %v561
          %v563 = vand.u32 %v562, 4294901760
          %v564 = vsub.f32 %v562, %v563
          %v565 = vand.u32 %v564, 4294901760
          %566 = vmatpush1.msra.mxu0 %v565
          %567 = vmatprep.subr.mxu0 0.0
          %568 = vmatpush2.msra.mxu0 0.0
          %569 = vmatprep.subr.mxu0 0.0
          %570 = vmatpush2.msra.mxu0 0.0
          %571 = vmatprep.subr.mxu0 0.0
          %572 = vmatpush2.msra.mxu0 0.0
          %573 = vmatprep.subr.mxu0 0.0
          %574 = vmatpush2.msra.mxu0 0.0
          %575 = vmatprep.subr.mxu0 0.0
          %576 = vmatpush2.msra.mxu0 0.0
          %577 = vmatprep.subr.mxu0 0.0
          %578 = vmatpush2.msra.mxu0 0.0
          %579 = vmatprep.subr.mxu0 0.0
          %580 = vmatpush2.msra.mxu0 0.0
          %581 = vmatprep.subr.mxu0 0.0
          %582 = vmatpush2.msra.mxu0 0.0
          %583 = vmatprep.subr.mxu0 0.0
          %584 = vmatpush2.msra.mxu0 0.0
          %585 = vmatprep.subr.mxu0 0.0
          %586 = vmatpush2.msra.mxu0 0.0
          %587 = vmatprep.subr.mxu0 0.0
          %588 = vmatpush2.msra.mxu0 0.0
          %589 = vmatprep.subr.mxu0 0.0
          %590 = vmatpush2.msra.mxu0 0.0
          %591 = vmatprep.subr.mxu0 0.0
          %592 = vmatpush2.msra.mxu0 0.0
          %593 = vmatprep.subr.mxu0 0.0
          %594 = vmatpush2.msra.mxu0 0.0
          %595 = vmatprep.subr.mxu0 0.0
          %596 = vmatpush2.msra.mxu0 0.0
          %597 = vmatprep.subr.mxu0 0.0
          %598 = vmatpush2.msra.mxu0 0.0
          %599 = vmatprep.mubr.f32.mxu0 0.0
          %v600 = vand.u32 %v434, 4294901760
          %601 = vmatmul.mubr.f32.gmra.mxu0 %v600
          %v602 = vpop.f32.mrf.mxu0
          %v603 = vadd.f32 %v512, %v602
          %v604 = vpop.f32.mrf.mxu0
          %605 = vdwg.mxu0
          %606 = vmatprep.subr.mxu0 0.0
          %607 = vmatpush1.msra.mxu0 0.0
          %608 = vmatprep.subr.mxu0 0.0
          %609 = vmatpush1.msra.mxu0 0.0
          %610 = vmatprep.subr.mxu0 0.0
          %611 = vmatpush1.msra.mxu0 0.0
          %612 = vmatprep.subr.mxu0 0.0
          %613 = vmatpush1.msra.mxu0 0.0
          %614 = vmatprep.subr.mxu0 0.0
          %615 = vmatpush1.msra.mxu0 0.0
          %616 = vmatprep.subr.mxu0 0.0
          %617 = vmatpush1.msra.mxu0 0.0
          %618 = vmatprep.subr.mxu0 0.0
          %619 = vmatpush1.msra.mxu0 0.0
          %620 = vmatprep.subr.mxu0 0.0
          %621 = vmatpush1.msra.mxu0 0.0
          %622 = vmatprep.subr.mxu0 0.0
          %623 = vmatpush1.msra.mxu0 0.0
          %624 = vmatprep.subr.mxu0 0.0
          %625 = vmatpush1.msra.mxu0 0.0
          %626 = vmatprep.subr.mxu0 0.0
          %627 = vmatpush1.msra.mxu0 0.0
          %628 = vmatprep.subr.mxu0 0.0
          %629 = vmatpush1.msra.mxu0 0.0
          %630 = vmatprep.subr.mxu0 0.0
          %v631 = vand.u32 %v426, 4294901760
          %v632 = vsub.f32 %v426, %v631
          %633 = vmatpush1.msra.mxu0 %v632
          %634 = vmatprep.subr.mxu0 0.0
          %v635 = vand.u32 %v425, 4294901760
          %v636 = vsub.f32 %v425, %v635
          %637 = vmatpush1.msra.mxu0 %v636
          %638 = vmatprep.subr.mxu0 0.0
          %v639 = vand.u32 %v424, 4294901760
          %v640 = vsub.f32 %v424, %v639
          %641 = vmatpush1.msra.mxu0 %v640
          %642 = vmatprep.subr.mxu0 0.0
          %v643 = vand.u32 %v423, 4294901760
          %v644 = vsub.f32 %v423, %v643
          %645 = vmatpush1.msra.mxu0 %v644
          %646 = vmatprep.subr.mxu0 0.0
          %647 = vmatpush2.msra.mxu0 0.0
          %648 = vmatprep.subr.mxu0 0.0
          %649 = vmatpush2.msra.mxu0 0.0
          %650 = vmatprep.subr.mxu0 0.0
          %651 = vmatpush2.msra.mxu0 0.0
          %652 = vmatprep.subr.mxu0 0.0
          %653 = vmatpush2.msra.mxu0 0.0
          %654 = vmatprep.subr.mxu0 0.0
          %655 = vmatpush2.msra.mxu0 0.0
          %656 = vmatprep.subr.mxu0 0.0
          %657 = vmatpush2.msra.mxu0 0.0
          %658 = vmatprep.subr.mxu0 0.0
          %659 = vmatpush2.msra.mxu0 0.0
          %660 = vmatprep.subr.mxu0 0.0
          %661 = vmatpush2.msra.mxu0 0.0
          %662 = vmatprep.subr.mxu0 0.0
          %663 = vmatpush2.msra.mxu0 0.0
          %664 = vmatprep.subr.mxu0 0.0
          %665 = vmatpush2.msra.mxu0 0.0
          %666 = vmatprep.subr.mxu0 0.0
          %667 = vmatpush2.msra.mxu0 0.0
          %668 = vmatprep.subr.mxu0 0.0
          %669 = vmatpush2.msra.mxu0 0.0
          %670 = vmatprep.subr.mxu0 0.0
          %671 = vmatpush2.msra.mxu0 0.0
          %672 = vmatprep.subr.mxu0 0.0
          %673 = vmatpush2.msra.mxu0 0.0
          %674 = vmatprep.subr.mxu0 0.0
          %675 = vmatpush2.msra.mxu0 0.0
          %676 = vmatprep.subr.mxu0 0.0
          %677 = vmatpush2.msra.mxu0 0.0
          %678 = vmatprep.mubr.f32.mxu0 0.0
          %v679 = vand.u32 %v434, 4294901760
          %v680 = vsub.f32 %v434, %v679
          %681 = vmatmul.mubr.f32.gmra.mxu0 %v680
          %v682 = vpop.f32.mrf.mxu0
          %v683 = vadd.f32 %v603, %v682
          %v684 = vpop.f32.mrf.mxu0
          %685 = vdwg.mxu0
          %686 = vmatprep.subr.mxu0 0.0
          %687 = vmatpush1.msra.mxu0 0.0
          %688 = vmatprep.subr.mxu0 0.0
          %689 = vmatpush1.msra.mxu0 0.0
          %690 = vmatprep.subr.mxu0 0.0
          %691 = vmatpush1.msra.mxu0 0.0
          %692 = vmatprep.subr.mxu0 0.0
          %693 = vmatpush1.msra.mxu0 0.0
          %694 = vmatprep.subr.mxu0 0.0
          %695 = vmatpush1.msra.mxu0 0.0
          %696 = vmatprep.subr.mxu0 0.0
          %697 = vmatpush1.msra.mxu0 0.0
          %698 = vmatprep.subr.mxu0 0.0
          %699 = vmatpush1.msra.mxu0 0.0
          %700 = vmatprep.subr.mxu0 0.0
          %701 = vmatpush1.msra.mxu0 0.0
          %702 = vmatprep.subr.mxu0 0.0
          %703 = vmatpush1.msra.mxu0 0.0
          %704 = vmatprep.subr.mxu0 0.0
          %705 = vmatpush1.msra.mxu0 0.0
          %706 = vmatprep.subr.mxu0 0.0
          %707 = vmatpush1.msra.mxu0 0.0
          %708 = vmatprep.subr.mxu0 0.0
          %709 = vmatpush1.msra.mxu0 0.0
          %710 = vmatprep.subr.mxu0 0.0
          %v711 = vand.u32 %v426, 4294901760
          %712 = vmatpush1.msra.mxu0 %v711
          %713 = vmatprep.subr.mxu0 0.0
          %v714 = vand.u32 %v425, 4294901760
          %715 = vmatpush1.msra.mxu0 %v714
          %716 = vmatprep.subr.mxu0 0.0
          %v717 = vand.u32 %v424, 4294901760
          %718 = vmatpush1.msra.mxu0 %v717
          %719 = vmatprep.subr.mxu0 0.0
          %v720 = vand.u32 %v423, 4294901760
          %721 = vmatpush1.msra.mxu0 %v720
          %722 = vmatprep.subr.mxu0 0.0
          %723 = vmatpush2.msra.mxu0 0.0
          %724 = vmatprep.subr.mxu0 0.0
          %725 = vmatpush2.msra.mxu0 0.0
          %726 = vmatprep.subr.mxu0 0.0
          %727 = vmatpush2.msra.mxu0 0.0
          %728 = vmatprep.subr.mxu0 0.0
          %729 = vmatpush2.msra.mxu0 0.0
          %730 = vmatprep.subr.mxu0 0.0
          %731 = vmatpush2.msra.mxu0 0.0
          %732 = vmatprep.subr.mxu0 0.0
          %733 = vmatpush2.msra.mxu0 0.0
          %734 = vmatprep.subr.mxu0 0.0
          %735 = vmatpush2.msra.mxu0 0.0
          %736 = vmatprep.subr.mxu0 0.0
          %737 = vmatpush2.msra.mxu0 0.0
          %738 = vmatprep.subr.mxu0 0.0
          %739 = vmatpush2.msra.mxu0 0.0
          %740 = vmatprep.subr.mxu0 0.0
          %741 = vmatpush2.msra.mxu0 0.0
          %742 = vmatprep.subr.mxu0 0.0
          %743 = vmatpush2.msra.mxu0 0.0
          %744 = vmatprep.subr.mxu0 0.0
          %745 = vmatpush2.msra.mxu0 0.0
          %746 = vmatprep.subr.mxu0 0.0
          %747 = vmatpush2.msra.mxu0 0.0
          %748 = vmatprep.subr.mxu0 0.0
          %749 = vmatpush2.msra.mxu0 0.0
          %750 = vmatprep.subr.mxu0 0.0
          %751 = vmatpush2.msra.mxu0 0.0
          %752 = vmatprep.subr.mxu0 0.0
          %753 = vmatpush2.msra.mxu0 0.0
          %754 = vmatprep.mubr.f32.mxu0 0.0
          %v755 = vand.u32 %v434, 4294901760
          %v756 = vsub.f32 %v434, %v755
          %v757 = vand.u32 %v756, 4294901760
          %758 = vmatmul.mubr.f32.gmra.mxu0 %v757
          %v759 = vpop.f32.mrf.mxu0
          %v760 = vadd.f32 %v683, %v759
          %v761 = vpop.f32.mrf.mxu0
          %762 = vdwg.mxu0
          %763 = vmatprep.subr.mxu0 0.0
          %764 = vmatpush1.msra.mxu0 0.0
          %765 = vmatprep.subr.mxu0 0.0
          %766 = vmatpush1.msra.mxu0 0.0
          %767 = vmatprep.subr.mxu0 0.0
          %768 = vmatpush1.msra.mxu0 0.0
          %769 = vmatprep.subr.mxu0 0.0
          %770 = vmatpush1.msra.mxu0 0.0
          %771 = vmatprep.subr.mxu0 0.0
          %772 = vmatpush1.msra.mxu0 0.0
          %773 = vmatprep.subr.mxu0 0.0
          %774 = vmatpush1.msra.mxu0 0.0
          %775 = vmatprep.subr.mxu0 0.0
          %776 = vmatpush1.msra.mxu0 0.0
          %777 = vmatprep.subr.mxu0 0.0
          %778 = vmatpush1.msra.mxu0 0.0
          %779 = vmatprep.subr.mxu0 0.0
          %780 = vmatpush1.msra.mxu0 0.0
          %781 = vmatprep.subr.mxu0 0.0
          %782 = vmatpush1.msra.mxu0 0.0
          %783 = vmatprep.subr.mxu0 0.0
          %784 = vmatpush1.msra.mxu0 0.0
          %785 = vmatprep.subr.mxu0 0.0
          %786 = vmatpush1.msra.mxu0 0.0
          %787 = vmatprep.subr.mxu0 0.0
          %v788 = vand.u32 %v426, 4294901760
          %v789 = vsub.f32 %v426, %v788
          %v790 = vand.u32 %v789, 4294901760
          %791 = vmatpush1.msra.mxu0 %v790
          %792 = vmatprep.subr.mxu0 0.0
          %v793 = vand.u32 %v425, 4294901760
          %v794 = vsub.f32 %v425, %v793
          %v795 = vand.u32 %v794, 4294901760
          %796 = vmatpush1.msra.mxu0 %v795
          %797 = vmatprep.subr.mxu0 0.0
          %v798 = vand.u32 %v424, 4294901760
          %v799 = vsub.f32 %v424, %v798
          %v800 = vand.u32 %v799, 4294901760
          %801 = vmatpush1.msra.mxu0 %v800
          %802 = vmatprep.subr.mxu0 0.0
          %v803 = vand.u32 %v423, 4294901760
          %v804 = vsub.f32 %v423, %v803
          %v805 = vand.u32 %v804, 4294901760
          %806 = vmatpush1.msra.mxu0 %v805
          %807 = vmatprep.subr.mxu0 0.0
          %808 = vmatpush2.msra.mxu0 0.0
          %809 = vmatprep.subr.mxu0 0.0
          %810 = vmatpush2.msra.mxu0 0.0
          %811 = vmatprep.subr.mxu0 0.0
          %812 = vmatpush2.msra.mxu0 0.0
          %813 = vmatprep.subr.mxu0 0.0
          %814 = vmatpush2.msra.mxu0 0.0
          %815 = vmatprep.subr.mxu0 0.0
          %816 = vmatpush2.msra.mxu0 0.0
          %817 = vmatprep.subr.mxu0 0.0
          %818 = vmatpush2.msra.mxu0 0.0
          %819 = vmatprep.subr.mxu0 0.0
          %820 = vmatpush2.msra.mxu0 0.0
          %821 = vmatprep.subr.mxu0 0.0
          %822 = vmatpush2.msra.mxu0 0.0
          %823 = vmatprep.subr.mxu0 0.0
          %824 = vmatpush2.msra.mxu0 0.0
          %825 = vmatprep.subr.mxu0 0.0
          %826 = vmatpush2.msra.mxu0 0.0
          %827 = vmatprep.subr.mxu0 0.0
          %828 = vmatpush2.msra.mxu0 0.0
          %829 = vmatprep.subr.mxu0 0.0
          %830 = vmatpush2.msra.mxu0 0.0
          %831 = vmatprep.subr.mxu0 0.0
          %832 = vmatpush2.msra.mxu0 0.0
          %833 = vmatprep.subr.mxu0 0.0
          %834 = vmatpush2.msra.mxu0 0.0
          %835 = vmatprep.subr.mxu0 0.0
          %836 = vmatpush2.msra.mxu0 0.0
          %837 = vmatprep.subr.mxu0 0.0
          %838 = vmatpush2.msra.mxu0 0.0
          %839 = vmatprep.mubr.f32.mxu0 0.0
          %v840 = vand.u32 %v434, 4294901760
          %841 = vmatmul.mubr.f32.gmra.mxu0 %v840
          %v842 = vpop.f32.mrf.mxu0
          %v843 = vadd.f32 %v760, %v842
          %v844 = vpop.f32.mrf.mxu0
          %845 = vdwg.mxu0
          %846 = vmatprep.subr.mxu0 0.0
          %847 = vmatpush1.msra.mxu0 0.0
          %848 = vmatprep.subr.mxu0 0.0
          %849 = vmatpush1.msra.mxu0 0.0
          %850 = vmatprep.subr.mxu0 0.0
          %851 = vmatpush1.msra.mxu0 0.0
          %852 = vmatprep.subr.mxu0 0.0
          %853 = vmatpush1.msra.mxu0 0.0
          %854 = vmatprep.subr.mxu0 0.0
          %855 = vmatpush1.msra.mxu0 0.0
          %856 = vmatprep.subr.mxu0 0.0
          %857 = vmatpush1.msra.mxu0 0.0
          %858 = vmatprep.subr.mxu0 0.0
          %859 = vmatpush1.msra.mxu0 0.0
          %860 = vmatprep.subr.mxu0 0.0
          %861 = vmatpush1.msra.mxu0 0.0
          %862 = vmatprep.subr.mxu0 0.0
          %863 = vmatpush1.msra.mxu0 0.0
          %864 = vmatprep.subr.mxu0 0.0
          %865 = vmatpush1.msra.mxu0 0.0
          %866 = vmatprep.subr.mxu0 0.0
          %867 = vmatpush1.msra.mxu0 0.0
          %868 = vmatprep.subr.mxu0 0.0
          %869 = vmatpush1.msra.mxu0 0.0
          %870 = vmatprep.subr.mxu0 0.0
          %v871 = vand.u32 %v426, 4294901760
          %872 = vmatpush1.msra.mxu0 %v871
          %873 = vmatprep.subr.mxu0 0.0
          %v874 = vand.u32 %v425, 4294901760
          %875 = vmatpush1.msra.mxu0 %v874
          %876 = vmatprep.subr.mxu0 0.0
          %v877 = vand.u32 %v424, 4294901760
          %878 = vmatpush1.msra.mxu0 %v877
          %879 = vmatprep.subr.mxu0 0.0
          %v880 = vand.u32 %v423, 4294901760
          %881 = vmatpush1.msra.mxu0 %v880
          %882 = vmatprep.subr.mxu0 0.0
          %883 = vmatpush2.msra.mxu0 0.0
          %884 = vmatprep.subr.mxu0 0.0
          %885 = vmatpush2.msra.mxu0 0.0
          %886 = vmatprep.subr.mxu0 0.0
          %887 = vmatpush2.msra.mxu0 0.0
          %888 = vmatprep.subr.mxu0 0.0
          %889 = vmatpush2.msra.mxu0 0.0
          %890 = vmatprep.subr.mxu0 0.0
          %891 = vmatpush2.msra.mxu0 0.0
          %892 = vmatprep.subr.mxu0 0.0
          %893 = vmatpush2.msra.mxu0 0.0
          %894 = vmatprep.subr.mxu0 0.0
          %895 = vmatpush2.msra.mxu0 0.0
          %896 = vmatprep.subr.mxu0 0.0
          %897 = vmatpush2.msra.mxu0 0.0
          %898 = vmatprep.subr.mxu0 0.0
          %899 = vmatpush2.msra.mxu0 0.0
          %900 = vmatprep.subr.mxu0 0.0
          %901 = vmatpush2.msra.mxu0 0.0
          %902 = vmatprep.subr.mxu0 0.0
          %903 = vmatpush2.msra.mxu0 0.0
          %904 = vmatprep.subr.mxu0 0.0
          %905 = vmatpush2.msra.mxu0 0.0
          %906 = vmatprep.subr.mxu0 0.0
          %907 = vmatpush2.msra.mxu0 0.0
          %908 = vmatprep.subr.mxu0 0.0
          %909 = vmatpush2.msra.mxu0 0.0
          %910 = vmatprep.subr.mxu0 0.0
          %911 = vmatpush2.msra.mxu0 0.0
          %912 = vmatprep.subr.mxu0 0.0
          %913 = vmatpush2.msra.mxu0 0.0
          %914 = vmatprep.mubr.f32.mxu0 0.0
          %v915 = vand.u32 %v434, 4294901760
          %916 = vmatmul.mubr.f32.gmra.mxu0 %v915
          %v917 = vpop.f32.mrf.mxu0
          %v918 = vadd.f32 %v843, %v917
          %v919 = vpop.f32.mrf.mxu0
          %920 = vdwg.mxu0
          %v921 = vld [vmem:[#allocation2] sm:$0x1]
          %vm922 = vcmask 523264
          %v923 = vsel %vm922, %v918, 0.0
          %v924 = vrot.slane %v923, 4
          %v925 = vadd.f32 %v923, %v924
          %v926 = vrot.slane %v925, 2
          %v927 = vadd.f32 %v925, %v926
          %v928 = vrot.slane %v927, 1
          %v929 = vadd.f32 %v927, %v928
          %v930 = vadd.f32 %v921, %v929
          %vm931 = vcmask 516096
          %932 = vst.msk [vmem:[#allocation2] sm:$0x1] %vm931, %v930
          %v933 = vld [vmem:[#allocation2 + $0x1] sm:$0x1]
          %v934 = vmul.f32 %v918, %v918
          %v935 = vsel %vm922, %v934, 0.0
          %v936 = vrot.slane %v935, 4
          %v937 = vadd.f32 %v935, %v936
          %v938 = vrot.slane %v937, 2
          %v939 = vadd.f32 %v937, %v938
          %v940 = vrot.slane %v939, 1
          %v941 = vadd.f32 %v939, %v940
          %v942 = vadd.f32 %v933, %v941
          %943 = vst.msk [vmem:[#allocation2 + $0x1] sm:$0x1] %vm931, %v942
          %p944 = scmp.eq.s32.totalorder %s36, 1
          // Predicated region
          $region57: #{tpu_custom_call.1} parent=51 // pred_check
            %p945 = pneg %p944
          $region58: #{tpu_custom_call.1} parent=51 // pred_check_branch
            %947 = sbr.rel (%p945) target = $region60
          $region59: #{tpu_custom_call.1} parent=51 // pred_region
            %v948 = vld [vmem:[#allocation2] sm:$0x1]
            %v949 = vmul.f32 %v948, 0.0625
            %v950 = vld [vmem:[#allocation2 + $0x1] sm:$0x1]
            %v951 = vmul.f32 %v950, 0.0625
            %v952 = vmul.f32 %v949, %v949
            %v953 = vsub.f32 %v951, %v952
            %v954 = vadd.f32 %v953, 1e-05
            %v955 = vrsqrt.pop %v954
            %v956 = vld [vmem:[%s6 + $0x1] sm:$0x1]
            %v957 = vmul.f32 %v956, %v955
            %v958 = vld [vmem:[%s6 + $0x2] sm:$0x1]
            %v959 = vmul.f32 %v949, %v957
            %v960 = vsub.f32 %v958, %v959
            %961 = vst.msk [vmem:[#allocation2] sm:$0x1] %vm931, %v957
            %962 = vst.msk [vmem:[#allocation2 + $0x1] sm:$0x1] %vm931, %v960
          $region60: #{tpu_custom_call.1} parent=51 // pred_fallthru
            _
        $region52: #{tpu_custom_call.1} parent=47 // pred_fallthru
          _
        %p963 = scmp.eq.s32.totalorder %s35, 1
        // Predicated region
        $region61: #{tpu_custom_call.1} parent=47 // pred_check
          %p964 = pneg %p963
        $region62: #{tpu_custom_call.1} parent=47 // pred_check_branch
          %966 = sbr.rel (%p964) target = $region64
        $region63: #{tpu_custom_call.1} parent=47 // pred_region
          %p967 = scmp.eq.s32.totalorder %s36, 0
          // Predicated region
          $region65: #{tpu_custom_call.1} parent=63 // pred_check
            %p968 = pneg %p967
          $region66: #{tpu_custom_call.1} parent=63 // pred_check_branch
            %970 = sbr.rel (%p968) target = $region68
          $region67: #{tpu_custom_call.1} parent=63 // pred_region
            %vm971 = vcmask 254976
            %972 = vst.msk [vmem:[#allocation3] sm:$0x3] %vm971, 0.0
          $region68: #{tpu_custom_call.1} parent=63 // pred_fallthru
            _
          %v973 = vld [vmem:[%s407] sm:$0xff]
          %v974 = vld [vmem:[%s2] sm:$0xff]
          %v975 = vld [vmem:[%s2 + $0x8] sm:$0xff]
          %v976 = vld [vmem:[%s2 + $0x10] sm:$0xff]
          %v977 = vld [vmem:[%s2 + $0x18] sm:$0xff]
          %v978 = vld [vmem:[%s6] sm:$0x1]
          %v979 = vlaneseq
          %v980 = vshrl.u32 %v979, 7
          %v981 = vsub.s32 0, %v980
          %v982 = vrot.slane %v978, %v981
          %vm983 = vcmask 261120
          %v985 = vsel %vm983, %v973, 0
          %987 = vmatprep.subr.mxu0 0.0
          %988 = vmatpush1.msra.mxu0 0.0
          %989 = vmatprep.subr.mxu0 0.0
          %990 = vmatpush1.msra.mxu0 0.0
          %991 = vmatprep.subr.mxu0 0.0
          %992 = vmatpush1.msra.mxu0 0.0
          %993 = vmatprep.subr.mxu0 0.0
          %994 = vmatpush1.msra.mxu0 0.0
          %995 = vmatprep.subr.mxu0 0.0
          %996 = vmatpush1.msra.mxu0 0.0
          %997 = vmatprep.subr.mxu0 0.0
          %998 = vmatpush1.msra.mxu0 0.0
          %999 = vmatprep.subr.mxu0 0.0
          %1000 = vmatpush1.msra.mxu0 0.0
          %1001 = vmatprep.subr.mxu0 0.0
          %1002 = vmatpush1.msra.mxu0 0.0
          %1003 = vmatprep.subr.mxu0 0.0
          %1004 = vmatpush1.msra.mxu0 0.0
          %1005 = vmatprep.subr.mxu0 0.0
          %1006 = vmatpush1.msra.mxu0 0.0
          %1007 = vmatprep.subr.mxu0 0.0
          %1008 = vmatpush1.msra.mxu0 0.0
          %1009 = vmatprep.subr.mxu0 0.0
          %1010 = vmatpush1.msra.mxu0 0.0
          %1011 = vmatprep.subr.mxu0 0.0
          %v1012 = vand.u32 %v977, 4294901760
          %1013 = vmatpush1.msra.mxu0 %v1012
          %1014 = vmatprep.subr.mxu0 0.0
          %v1015 = vand.u32 %v976, 4294901760
          %1016 = vmatpush1.msra.mxu0 %v1015
          %1017 = vmatprep.subr.mxu0 0.0
          %v1018 = vand.u32 %v975, 4294901760
          %1019 = vmatpush1.msra.mxu0 %v1018
          %1020 = vmatprep.subr.mxu0 0.0
          %v1021 = vand.u32 %v974, 4294901760
          %1022 = vmatpush1.msra.mxu0 %v1021
          %1023 = vmatprep.subr.mxu0 0.0
          %1024 = vmatpush2.msra.mxu0 0.0
          %1025 = vmatprep.subr.mxu0 0.0
          %1026 = vmatpush2.msra.mxu0 0.0
          %1027 = vmatprep.subr.mxu0 0.0
          %1028 = vmatpush2.msra.mxu0 0.0
          %1029 = vmatprep.subr.mxu0 0.0
          %1030 = vmatpush2.msra.mxu0 0.0
          %1031 = vmatprep.subr.mxu0 0.0
          %1032 = vmatpush2.msra.mxu0 0.0
          %1033 = vmatprep.subr.mxu0 0.0
          %1034 = vmatpush2.msra.mxu0 0.0
          %1035 = vmatprep.subr.mxu0 0.0
          %1036 = vmatpush2.msra.mxu0 0.0
          %1037 = vmatprep.subr.mxu0 0.0
          %1038 = vmatpush2.msra.mxu0 0.0
          %1039 = vmatprep.subr.mxu0 0.0
          %1040 = vmatpush2.msra.mxu0 0.0
          %1041 = vmatprep.subr.mxu0 0.0
          %1042 = vmatpush2.msra.mxu0 0.0
          %1043 = vmatprep.subr.mxu0 0.0
          %1044 = vmatpush2.msra.mxu0 0.0
          %1045 = vmatprep.subr.mxu0 0.0
          %1046 = vmatpush2.msra.mxu0 0.0
          %1047 = vmatprep.subr.mxu0 0.0
          %1048 = vmatpush2.msra.mxu0 0.0
          %1049 = vmatprep.subr.mxu0 0.0
          %1050 = vmatpush2.msra.mxu0 0.0
          %1051 = vmatprep.subr.mxu0 0.0
          %1052 = vmatpush2.msra.mxu0 0.0
          %1053 = vmatprep.subr.mxu0 0.0
          %1054 = vmatpush2.msra.mxu0 0.0
          %1055 = vmatprep.mubr.f32.mxu0 0.0
          %v1056 = vand.u32 %v985, 4294901760
          %v1057 = vsub.f32 %v985, %v1056
          %v1058 = vand.u32 %v1057, 4294901760
          %v1059 = vsub.f32 %v1057, %v1058
          %v1060 = vand.u32 %v1059, 4294901760
          %1061 = vmatmul.mubr.f32.gmra.mxu0 %v1060
          %v1062 = vpop.f32.mrf.mxu0
          %v1063 = vadd.f32 %v982, %v1062
          %v1064 = vpop.f32.mrf.mxu0
          %1065 = vdwg.mxu0
          %1066 = vmatprep.subr.mxu0 0.0
          %1067 = vmatpush1.msra.mxu0 0.0
          %1068 = vmatprep.subr.mxu0 0.0
          %1069 = vmatpush1.msra.mxu0 0.0
          %1070 = vmatprep.subr.mxu0 0.0
          %1071 = vmatpush1.msra.mxu0 0.0
          %1072 = vmatprep.subr.mxu0 0.0
          %1073 = vmatpush1.msra.mxu0 0.0
          %1074 = vmatprep.subr.mxu0 0.0
          %1075 = vmatpush1.msra.mxu0 0.0
          %1076 = vmatprep.subr.mxu0 0.0
          %1077 = vmatpush1.msra.mxu0 0.0
          %1078 = vmatprep.subr.mxu0 0.0
          %1079 = vmatpush1.msra.mxu0 0.0
          %1080 = vmatprep.subr.mxu0 0.0
          %1081 = vmatpush1.msra.mxu0 0.0
          %1082 = vmatprep.subr.mxu0 0.0
          %1083 = vmatpush1.msra.mxu0 0.0
          %1084 = vmatprep.subr.mxu0 0.0
          %1085 = vmatpush1.msra.mxu0 0.0
          %1086 = vmatprep.subr.mxu0 0.0
          %1087 = vmatpush1.msra.mxu0 0.0
          %1088 = vmatprep.subr.mxu0 0.0
          %1089 = vmatpush1.msra.mxu0 0.0
          %1090 = vmatprep.subr.mxu0 0.0
          %v1091 = vand.u32 %v977, 4294901760
          %v1092 = vsub.f32 %v977, %v1091
          %v1093 = vand.u32 %v1092, 4294901760
          %v1094 = vsub.f32 %v1092, %v1093
          %v1095 = vand.u32 %v1094, 4294901760
          %1096 = vmatpush1.msra.mxu0 %v1095
          %1097 = vmatprep.subr.mxu0 0.0
          %v1098 = vand.u32 %v976, 4294901760
          %v1099 = vsub.f32 %v976, %v1098
          %v1100 = vand.u32 %v1099, 4294901760
          %v1101 = vsub.f32 %v1099, %v1100
          %v1102 = vand.u32 %v1101, 4294901760
          %1103 = vmatpush1.msra.mxu0 %v1102
          %1104 = vmatprep.subr.mxu0 0.0
          %v1105 = vand.u32 %v975, 4294901760
          %v1106 = vsub.f32 %v975, %v1105
          %v1107 = vand.u32 %v1106, 4294901760
          %v1108 = vsub.f32 %v1106, %v1107
          %v1109 = vand.u32 %v1108, 4294901760
          %1110 = vmatpush1.msra.mxu0 %v1109
          %1111 = vmatprep.subr.mxu0 0.0
          %v1112 = vand.u32 %v974, 4294901760
          %v1113 = vsub.f32 %v974, %v1112
          %v1114 = vand.u32 %v1113, 4294901760
          %v1115 = vsub.f32 %v1113, %v1114
          %v1116 = vand.u32 %v1115, 4294901760
          %1117 = vmatpush1.msra.mxu0 %v1116
          %1118 = vmatprep.subr.mxu0 0.0
          %1119 = vmatpush2.msra.mxu0 0.0
          %1120 = vmatprep.subr.mxu0 0.0
          %1121 = vmatpush2.msra.mxu0 0.0
          %1122 = vmatprep.subr.mxu0 0.0
          %1123 = vmatpush2.msra.mxu0 0.0
          %1124 = vmatprep.subr.mxu0 0.0
          %1125 = vmatpush2.msra.mxu0 0.0
          %1126 = vmatprep.subr.mxu0 0.0
          %1127 = vmatpush2.msra.mxu0 0.0
          %1128 = vmatprep.subr.mxu0 0.0
          %1129 = vmatpush2.msra.mxu0 0.0
          %1130 = vmatprep.subr.mxu0 0.0
          %1131 = vmatpush2.msra.mxu0 0.0
          %1132 = vmatprep.subr.mxu0 0.0
          %1133 = vmatpush2.msra.mxu0 0.0
          %1134 = vmatprep.subr.mxu0 0.0
          %1135 = vmatpush2.msra.mxu0 0.0
          %1136 = vmatprep.subr.mxu0 0.0
          %1137 = vmatpush2.msra.mxu0 0.0
          %1138 = vmatprep.subr.mxu0 0.0
          %1139 = vmatpush2.msra.mxu0 0.0
          %1140 = vmatprep.subr.mxu0 0.0
          %1141 = vmatpush2.msra.mxu0 0.0
          %1142 = vmatprep.subr.mxu0 0.0
          %1143 = vmatpush2.msra.mxu0 0.0
          %1144 = vmatprep.subr.mxu0 0.0
          %1145 = vmatpush2.msra.mxu0 0.0
          %1146 = vmatprep.subr.mxu0 0.0
          %1147 = vmatpush2.msra.mxu0 0.0
          %1148 = vmatprep.subr.mxu0 0.0
          %1149 = vmatpush2.msra.mxu0 0.0
          %1150 = vmatprep.mubr.f32.mxu0 0.0
          %v1151 = vand.u32 %v985, 4294901760
          %1152 = vmatmul.mubr.f32.gmra.mxu0 %v1151
          %v1153 = vpop.f32.mrf.mxu0
          %v1154 = vadd.f32 %v1063, %v1153
          %v1155 = vpop.f32.mrf.mxu0
          %1156 = vdwg.mxu0
          %1157 = vmatprep.subr.mxu0 0.0
          %1158 = vmatpush1.msra.mxu0 0.0
          %1159 = vmatprep.subr.mxu0 0.0
          %1160 = vmatpush1.msra.mxu0 0.0
          %1161 = vmatprep.subr.mxu0 0.0
          %1162 = vmatpush1.msra.mxu0 0.0
          %1163 = vmatprep.subr.mxu0 0.0
          %1164 = vmatpush1.msra.mxu0 0.0
          %1165 = vmatprep.subr.mxu0 0.0
          %1166 = vmatpush1.msra.mxu0 0.0
          %1167 = vmatprep.subr.mxu0 0.0
          %1168 = vmatpush1.msra.mxu0 0.0
          %1169 = vmatprep.subr.mxu0 0.0
          %1170 = vmatpush1.msra.mxu0 0.0
          %1171 = vmatprep.subr.mxu0 0.0
          %1172 = vmatpush1.msra.mxu0 0.0
          %1173 = vmatprep.subr.mxu0 0.0
          %1174 = vmatpush1.msra.mxu0 0.0
          %1175 = vmatprep.subr.mxu0 0.0
          %1176 = vmatpush1.msra.mxu0 0.0
          %1177 = vmatprep.subr.mxu0 0.0
          %1178 = vmatpush1.msra.mxu0 0.0
          %1179 = vmatprep.subr.mxu0 0.0
          %1180 = vmatpush1.msra.mxu0 0.0
          %1181 = vmatprep.subr.mxu0 0.0
          %v1182 = vand.u32 %v977, 4294901760
          %v1183 = vsub.f32 %v977, %v1182
          %1184 = vmatpush1.msra.mxu0 %v1183
          %1185 = vmatprep.subr.mxu0 0.0
          %v1186 = vand.u32 %v976, 4294901760
          %v1187 = vsub.f32 %v976, %v1186
          %1188 = vmatpush1.msra.mxu0 %v1187
          %1189 = vmatprep.subr.mxu0 0.0
          %v1190 = vand.u32 %v975, 4294901760
          %v1191 = vsub.f32 %v975, %v1190
          %1192 = vmatpush1.msra.mxu0 %v1191
          %1193 = vmatprep.subr.mxu0 0.0
          %v1194 = vand.u32 %v974, 4294901760
          %v1195 = vsub.f32 %v974, %v1194
          %1196 = vmatpush1.msra.mxu0 %v1195
          %1197 = vmatprep.subr.mxu0 0.0
          %1198 = vmatpush2.msra.mxu0 0.0
          %1199 = vmatprep.subr.mxu0 0.0
          %1200 = vmatpush2.msra.mxu0 0.0
          %1201 = vmatprep.subr.mxu0 0.0
          %1202 = vmatpush2.msra.mxu0 0.0
          %1203 = vmatprep.subr.mxu0 0.0
          %1204 = vmatpush2.msra.mxu0 0.0
          %1205 = vmatprep.subr.mxu0 0.0
          %1206 = vmatpush2.msra.mxu0 0.0
          %1207 = vmatprep.subr.mxu0 0.0
          %1208 = vmatpush2.msra.mxu0 0.0
          %1209 = vmatprep.subr.mxu0 0.0
          %1210 = vmatpush2.msra.mxu0 0.0
          %1211 = vmatprep.subr.mxu0 0.0
          %1212 = vmatpush2.msra.mxu0 0.0
          %1213 = vmatprep.subr.mxu0 0.0
          %1214 = vmatpush2.msra.mxu0 0.0
          %1215 = vmatprep.subr.mxu0 0.0
          %1216 = vmatpush2.msra.mxu0 0.0
          %1217 = vmatprep.subr.mxu0 0.0
          %1218 = vmatpush2.msra.mxu0 0.0
          %1219 = vmatprep.subr.mxu0 0.0
          %1220 = vmatpush2.msra.mxu0 0.0
          %1221 = vmatprep.subr.mxu0 0.0
          %1222 = vmatpush2.msra.mxu0 0.0
          %1223 = vmatprep.subr.mxu0 0.0
          %1224 = vmatpush2.msra.mxu0 0.0
          %1225 = vmatprep.subr.mxu0 0.0
          %1226 = vmatpush2.msra.mxu0 0.0
          %1227 = vmatprep.subr.mxu0 0.0
          %1228 = vmatpush2.msra.mxu0 0.0
          %1229 = vmatprep.mubr.f32.mxu0 0.0
          %v1230 = vand.u32 %v985, 4294901760
          %v1231 = vsub.f32 %v985, %v1230
          %1232 = vmatmul.mubr.f32.gmra.mxu0 %v1231
          %v1233 = vpop.f32.mrf.mxu0
          %v1234 = vadd.f32 %v1154, %v1233
          %v1235 = vpop.f32.mrf.mxu0
          %1236 = vdwg.mxu0
          %1237 = vmatprep.subr.mxu0 0.0
          %1238 = vmatpush1.msra.mxu0 0.0
          %1239 = vmatprep.subr.mxu0 0.0
          %1240 = vmatpush1.msra.mxu0 0.0
          %1241 = vmatprep.subr.mxu0 0.0
          %1242 = vmatpush1.msra.mxu0 0.0
          %1243 = vmatprep.subr.mxu0 0.0
          %1244 = vmatpush1.msra.mxu0 0.0
          %1245 = vmatprep.subr.mxu0 0.0
          %1246 = vmatpush1.msra.mxu0 0.0
          %1247 = vmatprep.subr.mxu0 0.0
          %1248 = vmatpush1.msra.mxu0 0.0
          %1249 = vmatprep.subr.mxu0 0.0
          %1250 = vmatpush1.msra.mxu0 0.0
          %1251 = vmatprep.subr.mxu0 0.0
          %1252 = vmatpush1.msra.mxu0 0.0
          %1253 = vmatprep.subr.mxu0 0.0
          %1254 = vmatpush1.msra.mxu0 0.0
          %1255 = vmatprep.subr.mxu0 0.0
          %1256 = vmatpush1.msra.mxu0 0.0
          %1257 = vmatprep.subr.mxu0 0.0
          %1258 = vmatpush1.msra.mxu0 0.0
          %1259 = vmatprep.subr.mxu0 0.0
          %1260 = vmatpush1.msra.mxu0 0.0
          %1261 = vmatprep.subr.mxu0 0.0
          %v1262 = vand.u32 %v977, 4294901760
          %1263 = vmatpush1.msra.mxu0 %v1262
          %1264 = vmatprep.subr.mxu0 0.0
          %v1265 = vand.u32 %v976, 4294901760
          %1266 = vmatpush1.msra.mxu0 %v1265
          %1267 = vmatprep.subr.mxu0 0.0
          %v1268 = vand.u32 %v975, 4294901760
          %1269 = vmatpush1.msra.mxu0 %v1268
          %1270 = vmatprep.subr.mxu0 0.0
          %v1271 = vand.u32 %v974, 4294901760
          %1272 = vmatpush1.msra.mxu0 %v1271
          %1273 = vmatprep.subr.mxu0 0.0
          %1274 = vmatpush2.msra.mxu0 0.0
          %1275 = vmatprep.subr.mxu0 0.0
          %1276 = vmatpush2.msra.mxu0 0.0
          %1277 = vmatprep.subr.mxu0 0.0
          %1278 = vmatpush2.msra.mxu0 0.0
          %1279 = vmatprep.subr.mxu0 0.0
          %1280 = vmatpush2.msra.mxu0 0.0
          %1281 = vmatprep.subr.mxu0 0.0
          %1282 = vmatpush2.msra.mxu0 0.0
          %1283 = vmatprep.subr.mxu0 0.0
          %1284 = vmatpush2.msra.mxu0 0.0
          %1285 = vmatprep.subr.mxu0 0.0
          %1286 = vmatpush2.msra.mxu0 0.0
          %1287 = vmatprep.subr.mxu0 0.0
          %1288 = vmatpush2.msra.mxu0 0.0
          %1289 = vmatprep.subr.mxu0 0.0
          %1290 = vmatpush2.msra.mxu0 0.0
          %1291 = vmatprep.subr.mxu0 0.0
          %1292 = vmatpush2.msra.mxu0 0.0
          %1293 = vmatprep.subr.mxu0 0.0
          %1294 = vmatpush2.msra.mxu0 0.0
          %1295 = vmatprep.subr.mxu0 0.0
          %1296 = vmatpush2.msra.mxu0 0.0
          %1297 = vmatprep.subr.mxu0 0.0
          %1298 = vmatpush2.msra.mxu0 0.0
          %1299 = vmatprep.subr.mxu0 0.0
          %1300 = vmatpush2.msra.mxu0 0.0
          %1301 = vmatprep.subr.mxu0 0.0
          %1302 = vmatpush2.msra.mxu0 0.0
          %1303 = vmatprep.subr.mxu0 0.0
          %1304 = vmatpush2.msra.mxu0 0.0
          %1305 = vmatprep.mubr.f32.mxu0 0.0
          %v1306 = vand.u32 %v985, 4294901760
          %v1307 = vsub.f32 %v985, %v1306
          %v1308 = vand.u32 %v1307, 4294901760
          %1309 = vmatmul.mubr.f32.gmra.mxu0 %v1308
          %v1310 = vpop.f32.mrf.mxu0
          %v1311 = vadd.f32 %v1234, %v1310
          %v1312 = vpop.f32.mrf.mxu0
          %1313 = vdwg.mxu0
          %1314 = vmatprep.subr.mxu0 0.0
          %1315 = vmatpush1.msra.mxu0 0.0
          %1316 = vmatprep.subr.mxu0 0.0
          %1317 = vmatpush1.msra.mxu0 0.0
          %1318 = vmatprep.subr.mxu0 0.0
          %1319 = vmatpush1.msra.mxu0 0.0
          %1320 = vmatprep.subr.mxu0 0.0
          %1321 = vmatpush1.msra.mxu0 0.0
          %1322 = vmatprep.subr.mxu0 0.0
          %1323 = vmatpush1.msra.mxu0 0.0
          %1324 = vmatprep.subr.mxu0 0.0
          %1325 = vmatpush1.msra.mxu0 0.0
          %1326 = vmatprep.subr.mxu0 0.0
          %1327 = vmatpush1.msra.mxu0 0.0
          %1328 = vmatprep.subr.mxu0 0.0
          %1329 = vmatpush1.msra.mxu0 0.0
          %1330 = vmatprep.subr.mxu0 0.0
          %1331 = vmatpush1.msra.mxu0 0.0
          %1332 = vmatprep.subr.mxu0 0.0
          %1333 = vmatpush1.msra.mxu0 0.0
          %1334 = vmatprep.subr.mxu0 0.0
          %1335 = vmatpush1.msra.mxu0 0.0
          %1336 = vmatprep.subr.mxu0 0.0
          %1337 = vmatpush1.msra.mxu0 0.0
          %1338 = vmatprep.subr.mxu0 0.0
          %v1339 = vand.u32 %v977, 4294901760
          %v1340 = vsub.f32 %v977, %v1339
          %v1341 = vand.u32 %v1340, 4294901760
          %1342 = vmatpush1.msra.mxu0 %v1341
          %1343 = vmatprep.subr.mxu0 0.0
          %v1344 = vand.u32 %v976, 4294901760
          %v1345 = vsub.f32 %v976, %v1344
          %v1346 = vand.u32 %v1345, 4294901760
          %1347 = vmatpush1.msra.mxu0 %v1346
          %1348 = vmatprep.subr.mxu0 0.0
          %v1349 = vand.u32 %v975, 4294901760
          %v1350 = vsub.f32 %v975, %v1349
          %v1351 = vand.u32 %v1350, 4294901760
          %1352 = vmatpush1.msra.mxu0 %v1351
          %1353 = vmatprep.subr.mxu0 0.0
          %v1354 = vand.u32 %v974, 4294901760
          %v1355 = vsub.f32 %v974, %v1354
          %v1356 = vand.u32 %v1355, 4294901760
          %1357 = vmatpush1.msra.mxu0 %v1356
          %1358 = vmatprep.subr.mxu0 0.0
          %1359 = vmatpush2.msra.mxu0 0.0
          %1360 = vmatprep.subr.mxu0 0.0
          %1361 = vmatpush2.msra.mxu0 0.0
          %1362 = vmatprep.subr.mxu0 0.0
          %1363 = vmatpush2.msra.mxu0 0.0
          %1364 = vmatprep.subr.mxu0 0.0
          %1365 = vmatpush2.msra.mxu0 0.0
          %1366 = vmatprep.subr.mxu0 0.0
          %1367 = vmatpush2.msra.mxu0 0.0
          %1368 = vmatprep.subr.mxu0 0.0
          %1369 = vmatpush2.msra.mxu0 0.0
          %1370 = vmatprep.subr.mxu0 0.0
          %1371 = vmatpush2.msra.mxu0 0.0
          %1372 = vmatprep.subr.mxu0 0.0
          %1373 = vmatpush2.msra.mxu0 0.0
          %1374 = vmatprep.subr.mxu0 0.0
          %1375 = vmatpush2.msra.mxu0 0.0
          %1376 = vmatprep.subr.mxu0 0.0
          %1377 = vmatpush2.msra.mxu0 0.0
          %1378 = vmatprep.subr.mxu0 0.0
          %1379 = vmatpush2.msra.mxu0 0.0
          %1380 = vmatprep.subr.mxu0 0.0
          %1381 = vmatpush2.msra.mxu0 0.0
          %1382 = vmatprep.subr.mxu0 0.0
          %1383 = vmatpush2.msra.mxu0 0.0
          %1384 = vmatprep.subr.mxu0 0.0
          %1385 = vmatpush2.msra.mxu0 0.0
          %1386 = vmatprep.subr.mxu0 0.0
          %1387 = vmatpush2.msra.mxu0 0.0
          %1388 = vmatprep.subr.mxu0 0.0
          %1389 = vmatpush2.msra.mxu0 0.0
          %1390 = vmatprep.mubr.f32.mxu0 0.0
          %v1391 = vand.u32 %v985, 4294901760
          %1392 = vmatmul.mubr.f32.gmra.mxu0 %v1391
          %v1393 = vpop.f32.mrf.mxu0
          %v1394 = vadd.f32 %v1311, %v1393
          %v1395 = vpop.f32.mrf.mxu0
          %1396 = vdwg.mxu0
          %1397 = vmatprep.subr.mxu0 0.0
          %1398 = vmatpush1.msra.mxu0 0.0
          %1399 = vmatprep.subr.mxu0 0.0
          %1400 = vmatpush1.msra.mxu0 0.0
          %1401 = vmatprep.subr.mxu0 0.0
          %1402 = vmatpush1.msra.mxu0 0.0
          %1403 = vmatprep.subr.mxu0 0.0
          %1404 = vmatpush1.msra.mxu0 0.0
          %1405 = vmatprep.subr.mxu0 0.0
          %1406 = vmatpush1.msra.mxu0 0.0
          %1407 = vmatprep.subr.mxu0 0.0
          %1408 = vmatpush1.msra.mxu0 0.0
          %1409 = vmatprep.subr.mxu0 0.0
          %1410 = vmatpush1.msra.mxu0 0.0
          %1411 = vmatprep.subr.mxu0 0.0
          %1412 = vmatpush1.msra.mxu0 0.0
          %1413 = vmatprep.subr.mxu0 0.0
          %1414 = vmatpush1.msra.mxu0 0.0
          %1415 = vmatprep.subr.mxu0 0.0
          %1416 = vmatpush1.msra.mxu0 0.0
          %1417 = vmatprep.subr.mxu0 0.0
          %1418 = vmatpush1.msra.mxu0 0.0
          %1419 = vmatprep.subr.mxu0 0.0
          %1420 = vmatpush1.msra.mxu0 0.0
          %1421 = vmatprep.subr.mxu0 0.0
          %v1422 = vand.u32 %v977, 4294901760
          %1423 = vmatpush1.msra.mxu0 %v1422
          %1424 = vmatprep.subr.mxu0 0.0
          %v1425 = vand.u32 %v976, 4294901760
          %1426 = vmatpush1.msra.mxu0 %v1425
          %1427 = vmatprep.subr.mxu0 0.0
          %v1428 = vand.u32 %v975, 4294901760
          %1429 = vmatpush1.msra.mxu0 %v1428
          %1430 = vmatprep.subr.mxu0 0.0
          %v1431 = vand.u32 %v974, 4294901760
          %1432 = vmatpush1.msra.mxu0 %v1431
          %1433 = vmatprep.subr.mxu0 0.0
          %1434 = vmatpush2.msra.mxu0 0.0
          %1435 = vmatprep.subr.mxu0 0.0
          %1436 = vmatpush2.msra.mxu0 0.0
          %1437 = vmatprep.subr.mxu0 0.0
          %1438 = vmatpush2.msra.mxu0 0.0
          %1439 = vmatprep.subr.mxu0 0.0
          %1440 = vmatpush2.msra.mxu0 0.0
          %1441 = vmatprep.subr.mxu0 0.0
          %1442 = vmatpush2.msra.mxu0 0.0
          %1443 = vmatprep.subr.mxu0 0.0
          %1444 = vmatpush2.msra.mxu0 0.0
          %1445 = vmatprep.subr.mxu0 0.0
          %1446 = vmatpush2.msra.mxu0 0.0
          %1447 = vmatprep.subr.mxu0 0.0
          %1448 = vmatpush2.msra.mxu0 0.0
          %1449 = vmatprep.subr.mxu0 0.0
          %1450 = vmatpush2.msra.mxu0 0.0
          %1451 = vmatprep.subr.mxu0 0.0
          %1452 = vmatpush2.msra.mxu0 0.0
          %1453 = vmatprep.subr.mxu0 0.0
          %1454 = vmatpush2.msra.mxu0 0.0
          %1455 = vmatprep.subr.mxu0 0.0
          %1456 = vmatpush2.msra.mxu0 0.0
          %1457 = vmatprep.subr.mxu0 0.0
          %1458 = vmatpush2.msra.mxu0 0.0
          %1459 = vmatprep.subr.mxu0 0.0
          %1460 = vmatpush2.msra.mxu0 0.0
          %1461 = vmatprep.subr.mxu0 0.0
          %1462 = vmatpush2.msra.mxu0 0.0
          %1463 = vmatprep.subr.mxu0 0.0
          %1464 = vmatpush2.msra.mxu0 0.0
          %1465 = vmatprep.mubr.f32.mxu0 0.0
          %v1466 = vand.u32 %v985, 4294901760
          %1467 = vmatmul.mubr.f32.gmra.mxu0 %v1466
          %v1468 = vpop.f32.mrf.mxu0
          %v1469 = vadd.f32 %v1394, %v1468
          %v1470 = vpop.f32.mrf.mxu0
          %1471 = vdwg.mxu0
          %v1472 = vld [vmem:[#allocation2] sm:$0x1]
          %v1473 = vlaneseq
          %v1474 = vshrl.u32 %v1473, 7
          %v1475 = vsub.s32 0, %v1474
          %v1476 = vrot.slane %v1472, %v1475
          %v1477 = vmul.f32 %v1469, %v1476
          %v1478 = vld [vmem:[#allocation2 + $0x1] sm:$0x1]
          %v1479 = vlaneseq
          %v1480 = vshrl.u32 %v1479, 7
          %v1481 = vsub.s32 0, %v1480
          %v1482 = vrot.slane %v1478, %v1481
          %v1483 = vadd.f32 %v1477, %v1482
          %vm1484 = vcmp.ge.f32.partialorder %v1483, 0.0
          %v1485 = vmul.f32 %v1483, 0.01
          %v1486 = vsel %vm1484, %v1483, %v1485
          %v1487 = vld [vmem:[%s3] sm:$0xff]
          %v1488 = vld [vmem:[%s3 + $0x8] sm:$0xff]
          %v1489 = vld [vmem:[%s3 + $0x10] sm:$0xff]
          %v1490 = vld [vmem:[%s3 + $0x18] sm:$0xff]
          %v1491 = vld [vmem:[%s3 + $0x20] sm:$0xff]
          %v1492 = vld [vmem:[%s3 + $0x28] sm:$0xff]
          %v1493 = vld [vmem:[%s3 + $0x30] sm:$0xff]
          %v1494 = vld [vmem:[%s3 + $0x38] sm:$0xff]
          %v1495 = vld [vmem:[%s6 + $0x3] sm:$0x1]
          %v1496 = vlaneseq
          %v1497 = vshrl.u32 %v1496, 7
          %v1498 = vsub.s32 0, %v1497
          %v1499 = vrot.slane %v1495, %v1498
          %vm1500 = vcmask 523264
          %v1502 = vsel %vm1500, %v1486, 0
          %1504 = vmatprep.subr.mxu0 0.0
          %1505 = vmatpush1.msra.mxu0 0.0
          %1506 = vmatprep.subr.mxu0 0.0
          %1507 = vmatpush1.msra.mxu0 0.0
          %1508 = vmatprep.subr.mxu0 0.0
          %1509 = vmatpush1.msra.mxu0 0.0
          %1510 = vmatprep.subr.mxu0 0.0
          %1511 = vmatpush1.msra.mxu0 0.0
          %1512 = vmatprep.subr.mxu0 0.0
          %1513 = vmatpush1.msra.mxu0 0.0
          %1514 = vmatprep.subr.mxu0 0.0
          %1515 = vmatpush1.msra.mxu0 0.0
          %1516 = vmatprep.subr.mxu0 0.0
          %1517 = vmatpush1.msra.mxu0 0.0
          %1518 = vmatprep.subr.mxu0 0.0
          %1519 = vmatpush1.msra.mxu0 0.0
          %1520 = vmatprep.subr.mxu0 0.0
          %v1521 = vand.u32 %v1494, 4294901760
          %1522 = vmatpush1.msra.mxu0 %v1521
          %1523 = vmatprep.subr.mxu0 0.0
          %v1524 = vand.u32 %v1493, 4294901760
          %1525 = vmatpush1.msra.mxu0 %v1524
          %1526 = vmatprep.subr.mxu0 0.0
          %v1527 = vand.u32 %v1492, 4294901760
          %1528 = vmatpush1.msra.mxu0 %v1527
          %1529 = vmatprep.subr.mxu0 0.0
          %v1530 = vand.u32 %v1491, 4294901760
          %1531 = vmatpush1.msra.mxu0 %v1530
          %1532 = vmatprep.subr.mxu0 0.0
          %v1533 = vand.u32 %v1490, 4294901760
          %1534 = vmatpush1.msra.mxu0 %v1533
          %1535 = vmatprep.subr.mxu0 0.0
          %v1536 = vand.u32 %v1489, 4294901760
          %1537 = vmatpush1.msra.mxu0 %v1536
          %1538 = vmatprep.subr.mxu0 0.0
          %v1539 = vand.u32 %v1488, 4294901760
          %1540 = vmatpush1.msra.mxu0 %v1539
          %1541 = vmatprep.subr.mxu0 0.0
          %v1542 = vand.u32 %v1487, 4294901760
          %1543 = vmatpush1.msra.mxu0 %v1542
          %1544 = vmatprep.subr.mxu0 0.0
          %1545 = vmatpush2.msra.mxu0 0.0
          %1546 = vmatprep.subr.mxu0 0.0
          %1547 = vmatpush2.msra.mxu0 0.0
          %1548 = vmatprep.subr.mxu0 0.0
          %1549 = vmatpush2.msra.mxu0 0.0
          %1550 = vmatprep.subr.mxu0 0.0
          %1551 = vmatpush2.msra.mxu0 0.0
          %1552 = vmatprep.subr.mxu0 0.0
          %1553 = vmatpush2.msra.mxu0 0.0
          %1554 = vmatprep.subr.mxu0 0.0
          %1555 = vmatpush2.msra.mxu0 0.0
          %1556 = vmatprep.subr.mxu0 0.0
          %1557 = vmatpush2.msra.mxu0 0.0
          %1558 = vmatprep.subr.mxu0 0.0
          %1559 = vmatpush2.msra.mxu0 0.0
          %1560 = vmatprep.subr.mxu0 0.0
          %1561 = vmatpush2.msra.mxu0 0.0
          %1562 = vmatprep.subr.mxu0 0.0
          %1563 = vmatpush2.msra.mxu0 0.0
          %1564 = vmatprep.subr.mxu0 0.0
          %1565 = vmatpush2.msra.mxu0 0.0
          %1566 = vmatprep.subr.mxu0 0.0
          %1567 = vmatpush2.msra.mxu0 0.0
          %1568 = vmatprep.subr.mxu0 0.0
          %1569 = vmatpush2.msra.mxu0 0.0
          %1570 = vmatprep.subr.mxu0 0.0
          %1571 = vmatpush2.msra.mxu0 0.0
          %1572 = vmatprep.subr.mxu0 0.0
          %1573 = vmatpush2.msra.mxu0 0.0
          %1574 = vmatprep.subr.mxu0 0.0
          %1575 = vmatpush2.msra.mxu0 0.0
          %1576 = vmatprep.mubr.f32.mxu0 0.0
          %v1577 = vand.u32 %v1502, 4294901760
          %v1578 = vsub.f32 %v1502, %v1577
          %v1579 = vand.u32 %v1578, 4294901760
          %v1580 = vsub.f32 %v1578, %v1579
          %v1581 = vand.u32 %v1580, 4294901760
          %1582 = vmatmul.mubr.f32.gmra.mxu0 %v1581
          %v1583 = vpop.f32.mrf.mxu0
          %v1584 = vadd.f32 %v1499, %v1583
          %v1585 = vpop.f32.mrf.mxu0
          %1586 = vdwg.mxu0
          %1587 = vmatprep.subr.mxu0 0.0
          %1588 = vmatpush1.msra.mxu0 0.0
          %1589 = vmatprep.subr.mxu0 0.0
          %1590 = vmatpush1.msra.mxu0 0.0
          %1591 = vmatprep.subr.mxu0 0.0
          %1592 = vmatpush1.msra.mxu0 0.0
          %1593 = vmatprep.subr.mxu0 0.0
          %1594 = vmatpush1.msra.mxu0 0.0
          %1595 = vmatprep.subr.mxu0 0.0
          %1596 = vmatpush1.msra.mxu0 0.0
          %1597 = vmatprep.subr.mxu0 0.0
          %1598 = vmatpush1.msra.mxu0 0.0
          %1599 = vmatprep.subr.mxu0 0.0
          %1600 = vmatpush1.msra.mxu0 0.0
          %1601 = vmatprep.subr.mxu0 0.0
          %1602 = vmatpush1.msra.mxu0 0.0
          %1603 = vmatprep.subr.mxu0 0.0
          %v1604 = vand.u32 %v1494, 4294901760
          %v1605 = vsub.f32 %v1494, %v1604
          %v1606 = vand.u32 %v1605, 4294901760
          %v1607 = vsub.f32 %v1605, %v1606
          %v1608 = vand.u32 %v1607, 4294901760
          %1609 = vmatpush1.msra.mxu0 %v1608
          %1610 = vmatprep.subr.mxu0 0.0
          %v1611 = vand.u32 %v1493, 4294901760
          %v1612 = vsub.f32 %v1493, %v1611
          %v1613 = vand.u32 %v1612, 4294901760
          %v1614 = vsub.f32 %v1612, %v1613
          %v1615 = vand.u32 %v1614, 4294901760
          %1616 = vmatpush1.msra.mxu0 %v1615
          %1617 = vmatprep.subr.mxu0 0.0
          %v1618 = vand.u32 %v1492, 4294901760
          %v1619 = vsub.f32 %v1492, %v1618
          %v1620 = vand.u32 %v1619, 4294901760
          %v1621 = vsub.f32 %v1619, %v1620
          %v1622 = vand.u32 %v1621, 4294901760
          %1623 = vmatpush1.msra.mxu0 %v1622
          %1624 = vmatprep.subr.mxu0 0.0
          %v1625 = vand.u32 %v1491, 4294901760
          %v1626 = vsub.f32 %v1491, %v1625
          %v1627 = vand.u32 %v1626, 4294901760
          %v1628 = vsub.f32 %v1626, %v1627
          %v1629 = vand.u32 %v1628, 4294901760
          %1630 = vmatpush1.msra.mxu0 %v1629
          %1631 = vmatprep.subr.mxu0 0.0
          %v1632 = vand.u32 %v1490, 4294901760
          %v1633 = vsub.f32 %v1490, %v1632
          %v1634 = vand.u32 %v1633, 4294901760
          %v1635 = vsub.f32 %v1633, %v1634
          %v1636 = vand.u32 %v1635, 4294901760
          %1637 = vmatpush1.msra.mxu0 %v1636
          %1638 = vmatprep.subr.mxu0 0.0
          %v1639 = vand.u32 %v1489, 4294901760
          %v1640 = vsub.f32 %v1489, %v1639
          %v1641 = vand.u32 %v1640, 4294901760
          %v1642 = vsub.f32 %v1640, %v1641
          %v1643 = vand.u32 %v1642, 4294901760
          %1644 = vmatpush1.msra.mxu0 %v1643
          %1645 = vmatprep.subr.mxu0 0.0
          %v1646 = vand.u32 %v1488, 4294901760
          %v1647 = vsub.f32 %v1488, %v1646
          %v1648 = vand.u32 %v1647, 4294901760
          %v1649 = vsub.f32 %v1647, %v1648
          %v1650 = vand.u32 %v1649, 4294901760
          %1651 = vmatpush1.msra.mxu0 %v1650
          %1652 = vmatprep.subr.mxu0 0.0
          %v1653 = vand.u32 %v1487, 4294901760
          %v1654 = vsub.f32 %v1487, %v1653
          %v1655 = vand.u32 %v1654, 4294901760
          %v1656 = vsub.f32 %v1654, %v1655
          %v1657 = vand.u32 %v1656, 4294901760
          %1658 = vmatpush1.msra.mxu0 %v1657
          %1659 = vmatprep.subr.mxu0 0.0
          %1660 = vmatpush2.msra.mxu0 0.0
          %1661 = vmatprep.subr.mxu0 0.0
          %1662 = vmatpush2.msra.mxu0 0.0
          %1663 = vmatprep.subr.mxu0 0.0
          %1664 = vmatpush2.msra.mxu0 0.0
          %1665 = vmatprep.subr.mxu0 0.0
          %1666 = vmatpush2.msra.mxu0 0.0
          %1667 = vmatprep.subr.mxu0 0.0
          %1668 = vmatpush2.msra.mxu0 0.0
          %1669 = vmatprep.subr.mxu0 0.0
          %1670 = vmatpush2.msra.mxu0 0.0
          %1671 = vmatprep.subr.mxu0 0.0
          %1672 = vmatpush2.msra.mxu0 0.0
          %1673 = vmatprep.subr.mxu0 0.0
          %1674 = vmatpush2.msra.mxu0 0.0
          %1675 = vmatprep.subr.mxu0 0.0
          %1676 = vmatpush2.msra.mxu0 0.0
          %1677 = vmatprep.subr.mxu0 0.0
          %1678 = vmatpush2.msra.mxu0 0.0
          %1679 = vmatprep.subr.mxu0 0.0
          %1680 = vmatpush2.msra.mxu0 0.0
          %1681 = vmatprep.subr.mxu0 0.0
          %1682 = vmatpush2.msra.mxu0 0.0
          %1683 = vmatprep.subr.mxu0 0.0
          %1684 = vmatpush2.msra.mxu0 0.0
          %1685 = vmatprep.subr.mxu0 0.0
          %1686 = vmatpush2.msra.mxu0 0.0
          %1687 = vmatprep.subr.mxu0 0.0
          %1688 = vmatpush2.msra.mxu0 0.0
          %1689 = vmatprep.subr.mxu0 0.0
          %1690 = vmatpush2.msra.mxu0 0.0
          %1691 = vmatprep.mubr.f32.mxu0 0.0
          %v1692 = vand.u32 %v1502, 4294901760
          %1693 = vmatmul.mubr.f32.gmra.mxu0 %v1692
          %v1694 = vpop.f32.mrf.mxu0
          %v1695 = vadd.f32 %v1584, %v1694
          %v1696 = vpop.f32.mrf.mxu0
          %1697 = vdwg.mxu0
          %1698 = vmatprep.subr.mxu0 0.0
          %1699 = vmatpush1.msra.mxu0 0.0
          %1700 = vmatprep.subr.mxu0 0.0
          %1701 = vmatpush1.msra.mxu0 0.0
          %1702 = vmatprep.subr.mxu0 0.0
          %1703 = vmatpush1.msra.mxu0 0.0
          %1704 = vmatprep.subr.mxu0 0.0
          %1705 = vmatpush1.msra.mxu0 0.0
          %1706 = vmatprep.subr.mxu0 0.0
          %1707 = vmatpush1.msra.mxu0 0.0
          %1708 = vmatprep.subr.mxu0 0.0
          %1709 = vmatpush1.msra.mxu0 0.0
          %1710 = vmatprep.subr.mxu0 0.0
          %1711 = vmatpush1.msra.mxu0 0.0
          %1712 = vmatprep.subr.mxu0 0.0
          %1713 = vmatpush1.msra.mxu0 0.0
          %1714 = vmatprep.subr.mxu0 0.0
          %v1715 = vand.u32 %v1494, 4294901760
          %v1716 = vsub.f32 %v1494, %v1715
          %1717 = vmatpush1.msra.mxu0 %v1716
          %1718 = vmatprep.subr.mxu0 0.0
          %v1719 = vand.u32 %v1493, 4294901760
          %v1720 = vsub.f32 %v1493, %v1719
          %1721 = vmatpush1.msra.mxu0 %v1720
          %1722 = vmatprep.subr.mxu0 0.0
          %v1723 = vand.u32 %v1492, 4294901760
          %v1724 = vsub.f32 %v1492, %v1723
          %1725 = vmatpush1.msra.mxu0 %v1724
          %1726 = vmatprep.subr.mxu0 0.0
          %v1727 = vand.u32 %v1491, 4294901760
          %v1728 = vsub.f32 %v1491, %v1727
          %1729 = vmatpush1.msra.mxu0 %v1728
          %1730 = vmatprep.subr.mxu0 0.0
          %v1731 = vand.u32 %v1490, 4294901760
          %v1732 = vsub.f32 %v1490, %v1731
          %1733 = vmatpush1.msra.mxu0 %v1732
          %1734 = vmatprep.subr.mxu0 0.0
          %v1735 = vand.u32 %v1489, 4294901760
          %v1736 = vsub.f32 %v1489, %v1735
          %1737 = vmatpush1.msra.mxu0 %v1736
          %1738 = vmatprep.subr.mxu0 0.0
          %v1739 = vand.u32 %v1488, 4294901760
          %v1740 = vsub.f32 %v1488, %v1739
          %1741 = vmatpush1.msra.mxu0 %v1740
          %1742 = vmatprep.subr.mxu0 0.0
          %v1743 = vand.u32 %v1487, 4294901760
          %v1744 = vsub.f32 %v1487, %v1743
          %1745 = vmatpush1.msra.mxu0 %v1744
          %1746 = vmatprep.subr.mxu0 0.0
          %1747 = vmatpush2.msra.mxu0 0.0
          %1748 = vmatprep.subr.mxu0 0.0
          %1749 = vmatpush2.msra.mxu0 0.0
          %1750 = vmatprep.subr.mxu0 0.0
          %1751 = vmatpush2.msra.mxu0 0.0
          %1752 = vmatprep.subr.mxu0 0.0
          %1753 = vmatpush2.msra.mxu0 0.0
          %1754 = vmatprep.subr.mxu0 0.0
          %1755 = vmatpush2.msra.mxu0 0.0
          %1756 = vmatprep.subr.mxu0 0.0
          %1757 = vmatpush2.msra.mxu0 0.0
          %1758 = vmatprep.subr.mxu0 0.0
          %1759 = vmatpush2.msra.mxu0 0.0
          %1760 = vmatprep.subr.mxu0 0.0
          %1761 = vmatpush2.msra.mxu0 0.0
          %1762 = vmatprep.subr.mxu0 0.0
          %1763 = vmatpush2.msra.mxu0 0.0
          %1764 = vmatprep.subr.mxu0 0.0
          %1765 = vmatpush2.msra.mxu0 0.0
          %1766 = vmatprep.subr.mxu0 0.0
          %1767 = vmatpush2.msra.mxu0 0.0
          %1768 = vmatprep.subr.mxu0 0.0
          %1769 = vmatpush2.msra.mxu0 0.0
          %1770 = vmatprep.subr.mxu0 0.0
          %1771 = vmatpush2.msra.mxu0 0.0
          %1772 = vmatprep.subr.mxu0 0.0
          %1773 = vmatpush2.msra.mxu0 0.0
          %1774 = vmatprep.subr.mxu0 0.0
          %1775 = vmatpush2.msra.mxu0 0.0
          %1776 = vmatprep.subr.mxu0 0.0
          %1777 = vmatpush2.msra.mxu0 0.0
          %1778 = vmatprep.mubr.f32.mxu0 0.0
          %v1779 = vand.u32 %v1502, 4294901760
          %v1780 = vsub.f32 %v1502, %v1779
          %1781 = vmatmul.mubr.f32.gmra.mxu0 %v1780
          %v1782 = vpop.f32.mrf.mxu0
          %v1783 = vadd.f32 %v1695, %v1782
          %v1784 = vpop.f32.mrf.mxu0
          %1785 = vdwg.mxu0
          %1786 = vmatprep.subr.mxu0 0.0
          %1787 = vmatpush1.msra.mxu0 0.0
          %1788 = vmatprep.subr.mxu0 0.0
          %1789 = vmatpush1.msra.mxu0 0.0
          %1790 = vmatprep.subr.mxu0 0.0
          %1791 = vmatpush1.msra.mxu0 0.0
          %1792 = vmatprep.subr.mxu0 0.0
          %1793 = vmatpush1.msra.mxu0 0.0
          %1794 = vmatprep.subr.mxu0 0.0
          %1795 = vmatpush1.msra.mxu0 0.0
          %1796 = vmatprep.subr.mxu0 0.0
          %1797 = vmatpush1.msra.mxu0 0.0
          %1798 = vmatprep.subr.mxu0 0.0
          %1799 = vmatpush1.msra.mxu0 0.0
          %1800 = vmatprep.subr.mxu0 0.0
          %1801 = vmatpush1.msra.mxu0 0.0
          %1802 = vmatprep.subr.mxu0 0.0
          %v1803 = vand.u32 %v1494, 4294901760
          %1804 = vmatpush1.msra.mxu0 %v1803
          %1805 = vmatprep.subr.mxu0 0.0
          %v1806 = vand.u32 %v1493, 4294901760
          %1807 = vmatpush1.msra.mxu0 %v1806
          %1808 = vmatprep.subr.mxu0 0.0
          %v1809 = vand.u32 %v1492, 4294901760
          %1810 = vmatpush1.msra.mxu0 %v1809
          %1811 = vmatprep.subr.mxu0 0.0
          %v1812 = vand.u32 %v1491, 4294901760
          %1813 = vmatpush1.msra.mxu0 %v1812
          %1814 = vmatprep.subr.mxu0 0.0
          %v1815 = vand.u32 %v1490, 4294901760
          %1816 = vmatpush1.msra.mxu0 %v1815
          %1817 = vmatprep.subr.mxu0 0.0
          %v1818 = vand.u32 %v1489, 4294901760
          %1819 = vmatpush1.msra.mxu0 %v1818
          %1820 = vmatprep.subr.mxu0 0.0
          %v1821 = vand.u32 %v1488, 4294901760
          %1822 = vmatpush1.msra.mxu0 %v1821
          %1823 = vmatprep.subr.mxu0 0.0
          %v1824 = vand.u32 %v1487, 4294901760
          %1825 = vmatpush1.msra.mxu0 %v1824
          %1826 = vmatprep.subr.mxu0 0.0
          %1827 = vmatpush2.msra.mxu0 0.0
          %1828 = vmatprep.subr.mxu0 0.0
          %1829 = vmatpush2.msra.mxu0 0.0
          %1830 = vmatprep.subr.mxu0 0.0
          %1831 = vmatpush2.msra.mxu0 0.0
          %1832 = vmatprep.subr.mxu0 0.0
          %1833 = vmatpush2.msra.mxu0 0.0
          %1834 = vmatprep.subr.mxu0 0.0
          %1835 = vmatpush2.msra.mxu0 0.0
          %1836 = vmatprep.subr.mxu0 0.0
          %1837 = vmatpush2.msra.mxu0 0.0
          %1838 = vmatprep.subr.mxu0 0.0
          %1839 = vmatpush2.msra.mxu0 0.0
          %1840 = vmatprep.subr.mxu0 0.0
          %1841 = vmatpush2.msra.mxu0 0.0
          %1842 = vmatprep.subr.mxu0 0.0
          %1843 = vmatpush2.msra.mxu0 0.0
          %1844 = vmatprep.subr.mxu0 0.0
          %1845 = vmatpush2.msra.mxu0 0.0
          %1846 = vmatprep.subr.mxu0 0.0
          %1847 = vmatpush2.msra.mxu0 0.0
          %1848 = vmatprep.subr.mxu0 0.0
          %1849 = vmatpush2.msra.mxu0 0.0
          %1850 = vmatprep.subr.mxu0 0.0
          %1851 = vmatpush2.msra.mxu0 0.0
          %1852 = vmatprep.subr.mxu0 0.0
          %1853 = vmatpush2.msra.mxu0 0.0
          %1854 = vmatprep.subr.mxu0 0.0
          %1855 = vmatpush2.msra.mxu0 0.0
          %1856 = vmatprep.subr.mxu0 0.0
          %1857 = vmatpush2.msra.mxu0 0.0
          %1858 = vmatprep.mubr.f32.mxu0 0.0
          %v1859 = vand.u32 %v1502, 4294901760
          %v1860 = vsub.f32 %v1502, %v1859
          %v1861 = vand.u32 %v1860, 4294901760
          %1862 = vmatmul.mubr.f32.gmra.mxu0 %v1861
          %v1863 = vpop.f32.mrf.mxu0
          %v1864 = vadd.f32 %v1783, %v1863
          %v1865 = vpop.f32.mrf.mxu0
          %1866 = vdwg.mxu0
          %1867 = vmatprep.subr.mxu0 0.0
          %1868 = vmatpush1.msra.mxu0 0.0
          %1869 = vmatprep.subr.mxu0 0.0
          %1870 = vmatpush1.msra.mxu0 0.0
          %1871 = vmatprep.subr.mxu0 0.0
          %1872 = vmatpush1.msra.mxu0 0.0
          %1873 = vmatprep.subr.mxu0 0.0
          %1874 = vmatpush1.msra.mxu0 0.0
          %1875 = vmatprep.subr.mxu0 0.0
          %1876 = vmatpush1.msra.mxu0 0.0
          %1877 = vmatprep.subr.mxu0 0.0
          %1878 = vmatpush1.msra.mxu0 0.0
          %1879 = vmatprep.subr.mxu0 0.0
          %1880 = vmatpush1.msra.mxu0 0.0
          %1881 = vmatprep.subr.mxu0 0.0
          %1882 = vmatpush1.msra.mxu0 0.0
          %1883 = vmatprep.subr.mxu0 0.0
          %v1884 = vand.u32 %v1494, 4294901760
          %v1885 = vsub.f32 %v1494, %v1884
          %v1886 = vand.u32 %v1885, 4294901760
          %1887 = vmatpush1.msra.mxu0 %v1886
          %1888 = vmatprep.subr.mxu0 0.0
          %v1889 = vand.u32 %v1493, 4294901760
          %v1890 = vsub.f32 %v1493, %v1889
          %v1891 = vand.u32 %v1890, 4294901760
          %1892 = vmatpush1.msra.mxu0 %v1891
          %1893 = vmatprep.subr.mxu0 0.0
          %v1894 = vand.u32 %v1492, 4294901760
          %v1895 = vsub.f32 %v1492, %v1894
          %v1896 = vand.u32 %v1895, 4294901760
          %1897 = vmatpush1.msra.mxu0 %v1896
          %1898 = vmatprep.subr.mxu0 0.0
          %v1899 = vand.u32 %v1491, 4294901760
          %v1900 = vsub.f32 %v1491, %v1899
          %v1901 = vand.u32 %v1900, 4294901760
          %1902 = vmatpush1.msra.mxu0 %v1901
          %1903 = vmatprep.subr.mxu0 0.0
          %v1904 = vand.u32 %v1490, 4294901760
          %v1905 = vsub.f32 %v1490, %v1904
          %v1906 = vand.u32 %v1905, 4294901760
          %1907 = vmatpush1.msra.mxu0 %v1906
          %1908 = vmatprep.subr.mxu0 0.0
          %v1909 = vand.u32 %v1489, 4294901760
          %v1910 = vsub.f32 %v1489, %v1909
          %v1911 = vand.u32 %v1910, 4294901760
          %1912 = vmatpush1.msra.mxu0 %v1911
          %1913 = vmatprep.subr.mxu0 0.0
          %v1914 = vand.u32 %v1488, 4294901760
          %v1915 = vsub.f32 %v1488, %v1914
          %v1916 = vand.u32 %v1915, 4294901760
          %1917 = vmatpush1.msra.mxu0 %v1916
          %1918 = vmatprep.subr.mxu0 0.0
          %v1919 = vand.u32 %v1487, 4294901760
          %v1920 = vsub.f32 %v1487, %v1919
          %v1921 = vand.u32 %v1920, 4294901760
          %1922 = vmatpush1.msra.mxu0 %v1921
          %1923 = vmatprep.subr.mxu0 0.0
          %1924 = vmatpush2.msra.mxu0 0.0
          %1925 = vmatprep.subr.mxu0 0.0
          %1926 = vmatpush2.msra.mxu0 0.0
          %1927 = vmatprep.subr.mxu0 0.0
          %1928 = vmatpush2.msra.mxu0 0.0
          %1929 = vmatprep.subr.mxu0 0.0
          %1930 = vmatpush2.msra.mxu0 0.0
          %1931 = vmatprep.subr.mxu0 0.0
          %1932 = vmatpush2.msra.mxu0 0.0
          %1933 = vmatprep.subr.mxu0 0.0
          %1934 = vmatpush2.msra.mxu0 0.0
          %1935 = vmatprep.subr.mxu0 0.0
          %1936 = vmatpush2.msra.mxu0 0.0
          %1937 = vmatprep.subr.mxu0 0.0
          %1938 = vmatpush2.msra.mxu0 0.0
          %1939 = vmatprep.subr.mxu0 0.0
          %1940 = vmatpush2.msra.mxu0 0.0
          %1941 = vmatprep.subr.mxu0 0.0
          %1942 = vmatpush2.msra.mxu0 0.0
          %1943 = vmatprep.subr.mxu0 0.0
          %1944 = vmatpush2.msra.mxu0 0.0
          %1945 = vmatprep.subr.mxu0 0.0
          %1946 = vmatpush2.msra.mxu0 0.0
          %1947 = vmatprep.subr.mxu0 0.0
          %1948 = vmatpush2.msra.mxu0 0.0
          %1949 = vmatprep.subr.mxu0 0.0
          %1950 = vmatpush2.msra.mxu0 0.0
          %1951 = vmatprep.subr.mxu0 0.0
          %1952 = vmatpush2.msra.mxu0 0.0
          %1953 = vmatprep.subr.mxu0 0.0
          %1954 = vmatpush2.msra.mxu0 0.0
          %1955 = vmatprep.mubr.f32.mxu0 0.0
          %v1956 = vand.u32 %v1502, 4294901760
          %1957 = vmatmul.mubr.f32.gmra.mxu0 %v1956
          %v1958 = vpop.f32.mrf.mxu0
          %v1959 = vadd.f32 %v1864, %v1958
          %v1960 = vpop.f32.mrf.mxu0
          %1961 = vdwg.mxu0
          %1962 = vmatprep.subr.mxu0 0.0
          %1963 = vmatpush1.msra.mxu0 0.0
          %1964 = vmatprep.subr.mxu0 0.0
          %1965 = vmatpush1.msra.mxu0 0.0
          %1966 = vmatprep.subr.mxu0 0.0
          %1967 = vmatpush1.msra.mxu0 0.0
          %1968 = vmatprep.subr.mxu0 0.0
          %1969 = vmatpush1.msra.mxu0 0.0
          %1970 = vmatprep.subr.mxu0 0.0
          %1971 = vmatpush1.msra.mxu0 0.0
          %1972 = vmatprep.subr.mxu0 0.0
          %1973 = vmatpush1.msra.mxu0 0.0
          %1974 = vmatprep.subr.mxu0 0.0
          %1975 = vmatpush1.msra.mxu0 0.0
          %1976 = vmatprep.subr.mxu0 0.0
          %1977 = vmatpush1.msra.mxu0 0.0
          %1978 = vmatprep.subr.mxu0 0.0
          %v1979 = vand.u32 %v1494, 4294901760
          %1980 = vmatpush1.msra.mxu0 %v1979
          %1981 = vmatprep.subr.mxu0 0.0
          %v1982 = vand.u32 %v1493, 4294901760
          %1983 = vmatpush1.msra.mxu0 %v1982
          %1984 = vmatprep.subr.mxu0 0.0
          %v1985 = vand.u32 %v1492, 4294901760
          %1986 = vmatpush1.msra.mxu0 %v1985
          %1987 = vmatprep.subr.mxu0 0.0
          %v1988 = vand.u32 %v1491, 4294901760
          %1989 = vmatpush1.msra.mxu0 %v1988
          %1990 = vmatprep.subr.mxu0 0.0
          %v1991 = vand.u32 %v1490, 4294901760
          %1992 = vmatpush1.msra.mxu0 %v1991
          %1993 = vmatprep.subr.mxu0 0.0
          %v1994 = vand.u32 %v1489, 4294901760
          %1995 = vmatpush1.msra.mxu0 %v1994
          %1996 = vmatprep.subr.mxu0 0.0
          %v1997 = vand.u32 %v1488, 4294901760
          %1998 = vmatpush1.msra.mxu0 %v1997
          %1999 = vmatprep.subr.mxu0 0.0
          %v2000 = vand.u32 %v1487, 4294901760
          %2001 = vmatpush1.msra.mxu0 %v2000
          %2002 = vmatprep.subr.mxu0 0.0
          %2003 = vmatpush2.msra.mxu0 0.0
          %2004 = vmatprep.subr.mxu0 0.0
          %2005 = vmatpush2.msra.mxu0 0.0
          %2006 = vmatprep.subr.mxu0 0.0
          %2007 = vmatpush2.msra.mxu0 0.0
          %2008 = vmatprep.subr.mxu0 0.0
          %2009 = vmatpush2.msra.mxu0 0.0
          %2010 = vmatprep.subr.mxu0 0.0
          %2011 = vmatpush2.msra.mxu0 0.0
          %2012 = vmatprep.subr.mxu0 0.0
          %2013 = vmatpush2.msra.mxu0 0.0
          %2014 = vmatprep.subr.mxu0 0.0
          %2015 = vmatpush2.msra.mxu0 0.0
          %2016 = vmatprep.subr.mxu0 0.0
          %2017 = vmatpush2.msra.mxu0 0.0
          %2018 = vmatprep.subr.mxu0 0.0
          %2019 = vmatpush2.msra.mxu0 0.0
          %2020 = vmatprep.subr.mxu0 0.0
          %2021 = vmatpush2.msra.mxu0 0.0
          %2022 = vmatprep.subr.mxu0 0.0
          %2023 = vmatpush2.msra.mxu0 0.0
          %2024 = vmatprep.subr.mxu0 0.0
          %2025 = vmatpush2.msra.mxu0 0.0
          %2026 = vmatprep.subr.mxu0 0.0
          %2027 = vmatpush2.msra.mxu0 0.0
          %2028 = vmatprep.subr.mxu0 0.0
          %2029 = vmatpush2.msra.mxu0 0.0
          %2030 = vmatprep.subr.mxu0 0.0
          %2031 = vmatpush2.msra.mxu0 0.0
          %2032 = vmatprep.subr.mxu0 0.0
          %2033 = vmatpush2.msra.mxu0 0.0
          %2034 = vmatprep.mubr.f32.mxu0 0.0
          %v2035 = vand.u32 %v1502, 4294901760
          %2036 = vmatmul.mubr.f32.gmra.mxu0 %v2035
          %v2037 = vpop.f32.mrf.mxu0
          %v2038 = vadd.f32 %v1959, %v2037
          %v2039 = vpop.f32.mrf.mxu0
          %2040 = vdwg.mxu0
          %v2041 = vmul.f32 %v2038, 0.5
          %v2042 = vmul.f32 %v2041, 1.442695
          %v2043 = vpow.pop %v2042
          %v2044 = vld [vmem:[%s411] sm:$0xff]
          %2046 = vrot.lane.b32.xlu0 %v2043, 112
          %v2047 = vpop.permute.xlu0 %2046
          %v2049 = vmul.f32 %v2044, %v2047
          %v2050 = vadd.f32 %v2049, %v2038
          %v2051 = vld [vmem:[%s4] sm:$0xff]
          %v2052 = vld [vmem:[%s4 + $0x8] sm:$0xff]
          %v2053 = vld [vmem:[%s6 + $0x4] sm:$0x1]
          %v2054 = vlaneseq
          %v2055 = vshrl.u32 %v2054, 7
          %v2056 = vsub.s32 0, %v2055
          %v2057 = vrot.slane %v2053, %v2056
          %vm2058 = vcmask 130048
          %v2060 = vsel %vm2058, %v2050, 0
          %2062 = vmatprep.subr.mxu0 0.0
          %2063 = vmatpush1.msra.mxu0 0.0
          %2064 = vmatprep.subr.mxu0 0.0
          %2065 = vmatpush1.msra.mxu0 0.0
          %2066 = vmatprep.subr.mxu0 0.0
          %2067 = vmatpush1.msra.mxu0 0.0
          %2068 = vmatprep.subr.mxu0 0.0
          %2069 = vmatpush1.msra.mxu0 0.0
          %2070 = vmatprep.subr.mxu0 0.0
          %2071 = vmatpush1.msra.mxu0 0.0
          %2072 = vmatprep.subr.mxu0 0.0
          %2073 = vmatpush1.msra.mxu0 0.0
          %2074 = vmatprep.subr.mxu0 0.0
          %2075 = vmatpush1.msra.mxu0 0.0
          %2076 = vmatprep.subr.mxu0 0.0
          %2077 = vmatpush1.msra.mxu0 0.0
          %2078 = vmatprep.subr.mxu0 0.0
          %2079 = vmatpush1.msra.mxu0 0.0
          %2080 = vmatprep.subr.mxu0 0.0
          %2081 = vmatpush1.msra.mxu0 0.0
          %2082 = vmatprep.subr.mxu0 0.0
          %2083 = vmatpush1.msra.mxu0 0.0
          %2084 = vmatprep.subr.mxu0 0.0
          %2085 = vmatpush1.msra.mxu0 0.0
          %2086 = vmatprep.subr.mxu0 0.0
          %2087 = vmatpush1.msra.mxu0 0.0
          %2088 = vmatprep.subr.mxu0 0.0
          %2089 = vmatpush1.msra.mxu0 0.0
          %2090 = vmatprep.subr.mxu0 0.0
          %v2091 = vand.u32 %v2052, 4294901760
          %2092 = vmatpush1.msra.mxu0 %v2091
          %2093 = vmatprep.subr.mxu0 0.0
          %v2094 = vand.u32 %v2051, 4294901760
          %2095 = vmatpush1.msra.mxu0 %v2094
          %2096 = vmatprep.subr.mxu0 0.0
          %2097 = vmatpush2.msra.mxu0 0.0
          %2098 = vmatprep.subr.mxu0 0.0
          %2099 = vmatpush2.msra.mxu0 0.0
          %2100 = vmatprep.subr.mxu0 0.0
          %2101 = vmatpush2.msra.mxu0 0.0
          %2102 = vmatprep.subr.mxu0 0.0
          %2103 = vmatpush2.msra.mxu0 0.0
          %2104 = vmatprep.subr.mxu0 0.0
          %2105 = vmatpush2.msra.mxu0 0.0
          %2106 = vmatprep.subr.mxu0 0.0
          %2107 = vmatpush2.msra.mxu0 0.0
          %2108 = vmatprep.subr.mxu0 0.0
          %2109 = vmatpush2.msra.mxu0 0.0
          %2110 = vmatprep.subr.mxu0 0.0
          %2111 = vmatpush2.msra.mxu0 0.0
          %2112 = vmatprep.subr.mxu0 0.0
          %2113 = vmatpush2.msra.mxu0 0.0
          %2114 = vmatprep.subr.mxu0 0.0
          %2115 = vmatpush2.msra.mxu0 0.0
          %2116 = vmatprep.subr.mxu0 0.0
          %2117 = vmatpush2.msra.mxu0 0.0
          %2118 = vmatprep.subr.mxu0 0.0
          %2119 = vmatpush2.msra.mxu0 0.0
          %2120 = vmatprep.subr.mxu0 0.0
          %2121 = vmatpush2.msra.mxu0 0.0
          %2122 = vmatprep.subr.mxu0 0.0
          %2123 = vmatpush2.msra.mxu0 0.0
          %2124 = vmatprep.subr.mxu0 0.0
          %2125 = vmatpush2.msra.mxu0 0.0
          %2126 = vmatprep.subr.mxu0 0.0
          %2127 = vmatpush2.msra.mxu0 0.0
          %2128 = vmatprep.mubr.f32.mxu0 0.0
          %v2129 = vand.u32 %v2060, 4294901760
          %v2130 = vsub.f32 %v2060, %v2129
          %v2131 = vand.u32 %v2130, 4294901760
          %v2132 = vsub.f32 %v2130, %v2131
          %v2133 = vand.u32 %v2132, 4294901760
          %2134 = vmatmul.mubr.f32.gmra.mxu0 %v2133
          %v2135 = vpop.f32.mrf.mxu0
          %v2136 = vadd.f32 %v2057, %v2135
          %v2137 = vpop.f32.mrf.mxu0
          %2138 = vdwg.mxu0
          %2139 = vmatprep.subr.mxu0 0.0
          %2140 = vmatpush1.msra.mxu0 0.0
          %2141 = vmatprep.subr.mxu0 0.0
          %2142 = vmatpush1.msra.mxu0 0.0
          %2143 = vmatprep.subr.mxu0 0.0
          %2144 = vmatpush1.msra.mxu0 0.0
          %2145 = vmatprep.subr.mxu0 0.0
          %2146 = vmatpush1.msra.mxu0 0.0
          %2147 = vmatprep.subr.mxu0 0.0
          %2148 = vmatpush1.msra.mxu0 0.0
          %2149 = vmatprep.subr.mxu0 0.0
          %2150 = vmatpush1.msra.mxu0 0.0
          %2151 = vmatprep.subr.mxu0 0.0
          %2152 = vmatpush1.msra.mxu0 0.0
          %2153 = vmatprep.subr.mxu0 0.0
          %2154 = vmatpush1.msra.mxu0 0.0
          %2155 = vmatprep.subr.mxu0 0.0
          %2156 = vmatpush1.msra.mxu0 0.0
          %2157 = vmatprep.subr.mxu0 0.0
          %2158 = vmatpush1.msra.mxu0 0.0
          %2159 = vmatprep.subr.mxu0 0.0
          %2160 = vmatpush1.msra.mxu0 0.0
          %2161 = vmatprep.subr.mxu0 0.0
          %2162 = vmatpush1.msra.mxu0 0.0
          %2163 = vmatprep.subr.mxu0 0.0
          %2164 = vmatpush1.msra.mxu0 0.0
          %2165 = vmatprep.subr.mxu0 0.0
          %2166 = vmatpush1.msra.mxu0 0.0
          %2167 = vmatprep.subr.mxu0 0.0
          %v2168 = vand.u32 %v2052, 4294901760
          %v2169 = vsub.f32 %v2052, %v2168
          %v2170 = vand.u32 %v2169, 4294901760
          %v2171 = vsub.f32 %v2169, %v2170
          %v2172 = vand.u32 %v2171, 4294901760
          %2173 = vmatpush1.msra.mxu0 %v2172
          %2174 = vmatprep.subr.mxu0 0.0
          %v2175 = vand.u32 %v2051, 4294901760
          %v2176 = vsub.f32 %v2051, %v2175
          %v2177 = vand.u32 %v2176, 4294901760
          %v2178 = vsub.f32 %v2176, %v2177
          %v2179 = vand.u32 %v2178, 4294901760
          %2180 = vmatpush1.msra.mxu0 %v2179
          %2181 = vmatprep.subr.mxu0 0.0
          %2182 = vmatpush2.msra.mxu0 0.0
          %2183 = vmatprep.subr.mxu0 0.0
          %2184 = vmatpush2.msra.mxu0 0.0
          %2185 = vmatprep.subr.mxu0 0.0
          %2186 = vmatpush2.msra.mxu0 0.0
          %2187 = vmatprep.subr.mxu0 0.0
          %2188 = vmatpush2.msra.mxu0 0.0
          %2189 = vmatprep.subr.mxu0 0.0
          %2190 = vmatpush2.msra.mxu0 0.0
          %2191 = vmatprep.subr.mxu0 0.0
          %2192 = vmatpush2.msra.mxu0 0.0
          %2193 = vmatprep.subr.mxu0 0.0
          %2194 = vmatpush2.msra.mxu0 0.0
          %2195 = vmatprep.subr.mxu0 0.0
          %2196 = vmatpush2.msra.mxu0 0.0
          %2197 = vmatprep.subr.mxu0 0.0
          %2198 = vmatpush2.msra.mxu0 0.0
          %2199 = vmatprep.subr.mxu0 0.0
          %2200 = vmatpush2.msra.mxu0 0.0
          %2201 = vmatprep.subr.mxu0 0.0
          %2202 = vmatpush2.msra.mxu0 0.0
          %2203 = vmatprep.subr.mxu0 0.0
          %2204 = vmatpush2.msra.mxu0 0.0
          %2205 = vmatprep.subr.mxu0 0.0
          %2206 = vmatpush2.msra.mxu0 0.0
          %2207 = vmatprep.subr.mxu0 0.0
          %2208 = vmatpush2.msra.mxu0 0.0
          %2209 = vmatprep.subr.mxu0 0.0
          %2210 = vmatpush2.msra.mxu0 0.0
          %2211 = vmatprep.subr.mxu0 0.0
          %2212 = vmatpush2.msra.mxu0 0.0
          %2213 = vmatprep.mubr.f32.mxu0 0.0
          %v2214 = vand.u32 %v2060, 4294901760
          %2215 = vmatmul.mubr.f32.gmra.mxu0 %v2214
          %v2216 = vpop.f32.mrf.mxu0
          %v2217 = vadd.f32 %v2136, %v2216
          %v2218 = vpop.f32.mrf.mxu0
          %2219 = vdwg.mxu0
          %2220 = vmatprep.subr.mxu0 0.0
          %2221 = vmatpush1.msra.mxu0 0.0
          %2222 = vmatprep.subr.mxu0 0.0
          %2223 = vmatpush1.msra.mxu0 0.0
          %2224 = vmatprep.subr.mxu0 0.0
          %2225 = vmatpush1.msra.mxu0 0.0
          %2226 = vmatprep.subr.mxu0 0.0
          %2227 = vmatpush1.msra.mxu0 0.0
          %2228 = vmatprep.subr.mxu0 0.0
          %2229 = vmatpush1.msra.mxu0 0.0
          %2230 = vmatprep.subr.mxu0 0.0
          %2231 = vmatpush1.msra.mxu0 0.0
          %2232 = vmatprep.subr.mxu0 0.0
          %2233 = vmatpush1.msra.mxu0 0.0
          %2234 = vmatprep.subr.mxu0 0.0
          %2235 = vmatpush1.msra.mxu0 0.0
          %2236 = vmatprep.subr.mxu0 0.0
          %2237 = vmatpush1.msra.mxu0 0.0
          %2238 = vmatprep.subr.mxu0 0.0
          %2239 = vmatpush1.msra.mxu0 0.0
          %2240 = vmatprep.subr.mxu0 0.0
          %2241 = vmatpush1.msra.mxu0 0.0
          %2242 = vmatprep.subr.mxu0 0.0
          %2243 = vmatpush1.msra.mxu0 0.0
          %2244 = vmatprep.subr.mxu0 0.0
          %2245 = vmatpush1.msra.mxu0 0.0
          %2246 = vmatprep.subr.mxu0 0.0
          %2247 = vmatpush1.msra.mxu0 0.0
          %2248 = vmatprep.subr.mxu0 0.0
          %v2249 = vand.u32 %v2052, 4294901760
          %v2250 = vsub.f32 %v2052, %v2249
          %2251 = vmatpush1.msra.mxu0 %v2250
          %2252 = vmatprep.subr.mxu0 0.0
          %v2253 = vand.u32 %v2051, 4294901760
          %v2254 = vsub.f32 %v2051, %v2253
          %2255 = vmatpush1.msra.mxu0 %v2254
          %2256 = vmatprep.subr.mxu0 0.0
          %2257 = vmatpush2.msra.mxu0 0.0
          %2258 = vmatprep.subr.mxu0 0.0
          %2259 = vmatpush2.msra.mxu0 0.0
          %2260 = vmatprep.subr.mxu0 0.0
          %2261 = vmatpush2.msra.mxu0 0.0
          %2262 = vmatprep.subr.mxu0 0.0
          %2263 = vmatpush2.msra.mxu0 0.0
          %2264 = vmatprep.subr.mxu0 0.0
          %2265 = vmatpush2.msra.mxu0 0.0
          %2266 = vmatprep.subr.mxu0 0.0
          %2267 = vmatpush2.msra.mxu0 0.0
          %2268 = vmatprep.subr.mxu0 0.0
          %2269 = vmatpush2.msra.mxu0 0.0
          %2270 = vmatprep.subr.mxu0 0.0
          %2271 = vmatpush2.msra.mxu0 0.0
          %2272 = vmatprep.subr.mxu0 0.0
          %2273 = vmatpush2.msra.mxu0 0.0
          %2274 = vmatprep.subr.mxu0 0.0
          %2275 = vmatpush2.msra.mxu0 0.0
          %2276 = vmatprep.subr.mxu0 0.0
          %2277 = vmatpush2.msra.mxu0 0.0
          %2278 = vmatprep.subr.mxu0 0.0
          %2279 = vmatpush2.msra.mxu0 0.0
          %2280 = vmatprep.subr.mxu0 0.0
          %2281 = vmatpush2.msra.mxu0 0.0
          %2282 = vmatprep.subr.mxu0 0.0
          %2283 = vmatpush2.msra.mxu0 0.0
          %2284 = vmatprep.subr.mxu0 0.0
          %2285 = vmatpush2.msra.mxu0 0.0
          %2286 = vmatprep.subr.mxu0 0.0
          %2287 = vmatpush2.msra.mxu0 0.0
          %2288 = vmatprep.mubr.f32.mxu0 0.0
          %v2289 = vand.u32 %v2060, 4294901760
          %v2290 = vsub.f32 %v2060, %v2289
          %2291 = vmatmul.mubr.f32.gmra.mxu0 %v2290
          %v2292 = vpop.f32.mrf.mxu0
          %v2293 = vadd.f32 %v2217, %v2292
          %v2294 = vpop.f32.mrf.mxu0
          %2295 = vdwg.mxu0
          %2296 = vmatprep.subr.mxu0 0.0
          %2297 = vmatpush1.msra.mxu0 0.0
          %2298 = vmatprep.subr.mxu0 0.0
          %2299 = vmatpush1.msra.mxu0 0.0
          %2300 = vmatprep.subr.mxu0 0.0
          %2301 = vmatpush1.msra.mxu0 0.0
          %2302 = vmatprep.subr.mxu0 0.0
          %2303 = vmatpush1.msra.mxu0 0.0
          %2304 = vmatprep.subr.mxu0 0.0
          %2305 = vmatpush1.msra.mxu0 0.0
          %2306 = vmatprep.subr.mxu0 0.0
          %2307 = vmatpush1.msra.mxu0 0.0
          %2308 = vmatprep.subr.mxu0 0.0
          %2309 = vmatpush1.msra.mxu0 0.0
          %2310 = vmatprep.subr.mxu0 0.0
          %2311 = vmatpush1.msra.mxu0 0.0
          %2312 = vmatprep.subr.mxu0 0.0
          %2313 = vmatpush1.msra.mxu0 0.0
          %2314 = vmatprep.subr.mxu0 0.0
          %2315 = vmatpush1.msra.mxu0 0.0
          %2316 = vmatprep.subr.mxu0 0.0
          %2317 = vmatpush1.msra.mxu0 0.0
          %2318 = vmatprep.subr.mxu0 0.0
          %2319 = vmatpush1.msra.mxu0 0.0
          %2320 = vmatprep.subr.mxu0 0.0
          %2321 = vmatpush1.msra.mxu0 0.0
          %2322 = vmatprep.subr.mxu0 0.0
          %2323 = vmatpush1.msra.mxu0 0.0
          %2324 = vmatprep.subr.mxu0 0.0
          %v2325 = vand.u32 %v2052, 4294901760
          %2326 = vmatpush1.msra.mxu0 %v2325
          %2327 = vmatprep.subr.mxu0 0.0
          %v2328 = vand.u32 %v2051, 4294901760
          %2329 = vmatpush1.msra.mxu0 %v2328
          %2330 = vmatprep.subr.mxu0 0.0
          %2331 = vmatpush2.msra.mxu0 0.0
          %2332 = vmatprep.subr.mxu0 0.0
          %2333 = vmatpush2.msra.mxu0 0.0
          %2334 = vmatprep.subr.mxu0 0.0
          %2335 = vmatpush2.msra.mxu0 0.0
          %2336 = vmatprep.subr.mxu0 0.0
          %2337 = vmatpush2.msra.mxu0 0.0
          %2338 = vmatprep.subr.mxu0 0.0
          %2339 = vmatpush2.msra.mxu0 0.0
          %2340 = vmatprep.subr.mxu0 0.0
          %2341 = vmatpush2.msra.mxu0 0.0
          %2342 = vmatprep.subr.mxu0 0.0
          %2343 = vmatpush2.msra.mxu0 0.0
          %2344 = vmatprep.subr.mxu0 0.0
          %2345 = vmatpush2.msra.mxu0 0.0
          %2346 = vmatprep.subr.mxu0 0.0
          %2347 = vmatpush2.msra.mxu0 0.0
          %2348 = vmatprep.subr.mxu0 0.0
          %2349 = vmatpush2.msra.mxu0 0.0
          %2350 = vmatprep.subr.mxu0 0.0
          %2351 = vmatpush2.msra.mxu0 0.0
          %2352 = vmatprep.subr.mxu0 0.0
          %2353 = vmatpush2.msra.mxu0 0.0
          %2354 = vmatprep.subr.mxu0 0.0
          %2355 = vmatpush2.msra.mxu0 0.0
          %2356 = vmatprep.subr.mxu0 0.0
          %2357 = vmatpush2.msra.mxu0 0.0
          %2358 = vmatprep.subr.mxu0 0.0
          %2359 = vmatpush2.msra.mxu0 0.0
          %2360 = vmatprep.subr.mxu0 0.0
          %2361 = vmatpush2.msra.mxu0 0.0
          %2362 = vmatprep.mubr.f32.mxu0 0.0
          %v2363 = vand.u32 %v2060, 4294901760
          %v2364 = vsub.f32 %v2060, %v2363
          %v2365 = vand.u32 %v2364, 4294901760
          %2366 = vmatmul.mubr.f32.gmra.mxu0 %v2365
          %v2367 = vpop.f32.mrf.mxu0
          %v2368 = vadd.f32 %v2293, %v2367
          %v2369 = vpop.f32.mrf.mxu0
          %2370 = vdwg.mxu0
          %2371 = vmatprep.subr.mxu0 0.0
          %2372 = vmatpush1.msra.mxu0 0.0
          %2373 = vmatprep.subr.mxu0 0.0
          %2374 = vmatpush1.msra.mxu0 0.0
          %2375 = vmatprep.subr.mxu0 0.0
          %2376 = vmatpush1.msra.mxu0 0.0
          %2377 = vmatprep.subr.mxu0 0.0
          %2378 = vmatpush1.msra.mxu0 0.0
          %2379 = vmatprep.subr.mxu0 0.0
          %2380 = vmatpush1.msra.mxu0 0.0
          %2381 = vmatprep.subr.mxu0 0.0
          %2382 = vmatpush1.msra.mxu0 0.0
          %2383 = vmatprep.subr.mxu0 0.0
          %2384 = vmatpush1.msra.mxu0 0.0
          %2385 = vmatprep.subr.mxu0 0.0
          %2386 = vmatpush1.msra.mxu0 0.0
          %2387 = vmatprep.subr.mxu0 0.0
          %2388 = vmatpush1.msra.mxu0 0.0
          %2389 = vmatprep.subr.mxu0 0.0
          %2390 = vmatpush1.msra.mxu0 0.0
          %2391 = vmatprep.subr.mxu0 0.0
          %2392 = vmatpush1.msra.mxu0 0.0
          %2393 = vmatprep.subr.mxu0 0.0
          %2394 = vmatpush1.msra.mxu0 0.0
          %2395 = vmatprep.subr.mxu0 0.0
          %2396 = vmatpush1.msra.mxu0 0.0
          %2397 = vmatprep.subr.mxu0 0.0
          %2398 = vmatpush1.msra.mxu0 0.0
          %2399 = vmatprep.subr.mxu0 0.0
          %v2400 = vand.u32 %v2052, 4294901760
          %v2401 = vsub.f32 %v2052, %v2400
          %v2402 = vand.u32 %v2401, 4294901760
          %2403 = vmatpush1.msra.mxu0 %v2402
          %2404 = vmatprep.subr.mxu0 0.0
          %v2405 = vand.u32 %v2051, 4294901760
          %v2406 = vsub.f32 %v2051, %v2405
          %v2407 = vand.u32 %v2406, 4294901760
          %2408 = vmatpush1.msra.mxu0 %v2407
          %2409 = vmatprep.subr.mxu0 0.0
          %2410 = vmatpush2.msra.mxu0 0.0
          %2411 = vmatprep.subr.mxu0 0.0
          %2412 = vmatpush2.msra.mxu0 0.0
          %2413 = vmatprep.subr.mxu0 0.0
          %2414 = vmatpush2.msra.mxu0 0.0
          %2415 = vmatprep.subr.mxu0 0.0
          %2416 = vmatpush2.msra.mxu0 0.0
          %2417 = vmatprep.subr.mxu0 0.0
          %2418 = vmatpush2.msra.mxu0 0.0
          %2419 = vmatprep.subr.mxu0 0.0
          %2420 = vmatpush2.msra.mxu0 0.0
          %2421 = vmatprep.subr.mxu0 0.0
          %2422 = vmatpush2.msra.mxu0 0.0
          %2423 = vmatprep.subr.mxu0 0.0
          %2424 = vmatpush2.msra.mxu0 0.0
          %2425 = vmatprep.subr.mxu0 0.0
          %2426 = vmatpush2.msra.mxu0 0.0
          %2427 = vmatprep.subr.mxu0 0.0
          %2428 = vmatpush2.msra.mxu0 0.0
          %2429 = vmatprep.subr.mxu0 0.0
          %2430 = vmatpush2.msra.mxu0 0.0
          %2431 = vmatprep.subr.mxu0 0.0
          %2432 = vmatpush2.msra.mxu0 0.0
          %2433 = vmatprep.subr.mxu0 0.0
          %2434 = vmatpush2.msra.mxu0 0.0
          %2435 = vmatprep.subr.mxu0 0.0
          %2436 = vmatpush2.msra.mxu0 0.0
          %2437 = vmatprep.subr.mxu0 0.0
          %2438 = vmatpush2.msra.mxu0 0.0
          %2439 = vmatprep.subr.mxu0 0.0
          %2440 = vmatpush2.msra.mxu0 0.0
          %2441 = vmatprep.mubr.f32.mxu0 0.0
          %v2442 = vand.u32 %v2060, 4294901760
          %2443 = vmatmul.mubr.f32.gmra.mxu0 %v2442
          %v2444 = vpop.f32.mrf.mxu0
          %v2445 = vadd.f32 %v2368, %v2444
          %v2446 = vpop.f32.mrf.mxu0
          %2447 = vdwg.mxu0
          %2448 = vmatprep.subr.mxu0 0.0
          %2449 = vmatpush1.msra.mxu0 0.0
          %2450 = vmatprep.subr.mxu0 0.0
          %2451 = vmatpush1.msra.mxu0 0.0
          %2452 = vmatprep.subr.mxu0 0.0
          %2453 = vmatpush1.msra.mxu0 0.0
          %2454 = vmatprep.subr.mxu0 0.0
          %2455 = vmatpush1.msra.mxu0 0.0
          %2456 = vmatprep.subr.mxu0 0.0
          %2457 = vmatpush1.msra.mxu0 0.0
          %2458 = vmatprep.subr.mxu0 0.0
          %2459 = vmatpush1.msra.mxu0 0.0
          %2460 = vmatprep.subr.mxu0 0.0
          %2461 = vmatpush1.msra.mxu0 0.0
          %2462 = vmatprep.subr.mxu0 0.0
          %2463 = vmatpush1.msra.mxu0 0.0
          %2464 = vmatprep.subr.mxu0 0.0
          %2465 = vmatpush1.msra.mxu0 0.0
          %2466 = vmatprep.subr.mxu0 0.0
          %2467 = vmatpush1.msra.mxu0 0.0
          %2468 = vmatprep.subr.mxu0 0.0
          %2469 = vmatpush1.msra.mxu0 0.0
          %2470 = vmatprep.subr.mxu0 0.0
          %2471 = vmatpush1.msra.mxu0 0.0
          %2472 = vmatprep.subr.mxu0 0.0
          %2473 = vmatpush1.msra.mxu0 0.0
          %2474 = vmatprep.subr.mxu0 0.0
          %2475 = vmatpush1.msra.mxu0 0.0
          %2476 = vmatprep.subr.mxu0 0.0
          %v2477 = vand.u32 %v2052, 4294901760
          %2478 = vmatpush1.msra.mxu0 %v2477
          %2479 = vmatprep.subr.mxu0 0.0
          %v2480 = vand.u32 %v2051, 4294901760
          %2481 = vmatpush1.msra.mxu0 %v2480
          %2482 = vmatprep.subr.mxu0 0.0
          %2483 = vmatpush2.msra.mxu0 0.0
          %2484 = vmatprep.subr.mxu0 0.0
          %2485 = vmatpush2.msra.mxu0 0.0
          %2486 = vmatprep.subr.mxu0 0.0
          %2487 = vmatpush2.msra.mxu0 0.0
          %2488 = vmatprep.subr.mxu0 0.0
          %2489 = vmatpush2.msra.mxu0 0.0
          %2490 = vmatprep.subr.mxu0 0.0
          %2491 = vmatpush2.msra.mxu0 0.0
          %2492 = vmatprep.subr.mxu0 0.0
          %2493 = vmatpush2.msra.mxu0 0.0
          %2494 = vmatprep.subr.mxu0 0.0
          %2495 = vmatpush2.msra.mxu0 0.0
          %2496 = vmatprep.subr.mxu0 0.0
          %2497 = vmatpush2.msra.mxu0 0.0
          %2498 = vmatprep.subr.mxu0 0.0
          %2499 = vmatpush2.msra.mxu0 0.0
          %2500 = vmatprep.subr.mxu0 0.0
          %2501 = vmatpush2.msra.mxu0 0.0
          %2502 = vmatprep.subr.mxu0 0.0
          %2503 = vmatpush2.msra.mxu0 0.0
          %2504 = vmatprep.subr.mxu0 0.0
          %2505 = vmatpush2.msra.mxu0 0.0
          %2506 = vmatprep.subr.mxu0 0.0
          %2507 = vmatpush2.msra.mxu0 0.0
          %2508 = vmatprep.subr.mxu0 0.0
          %2509 = vmatpush2.msra.mxu0 0.0
          %2510 = vmatprep.subr.mxu0 0.0
          %2511 = vmatpush2.msra.mxu0 0.0
          %2512 = vmatprep.subr.mxu0 0.0
          %2513 = vmatpush2.msra.mxu0 0.0
          %2514 = vmatprep.mubr.f32.mxu0 0.0
          %v2515 = vand.u32 %v2060, 4294901760
          %2516 = vmatmul.mubr.f32.gmra.mxu0 %v2515
          %v2517 = vpop.f32.mrf.mxu0
          %v2518 = vadd.f32 %v2445, %v2517
          %v2519 = vpop.f32.mrf.mxu0
          %2520 = vdwg.mxu0
          %v2521 = vld [vmem:[%s5] sm:$0xff]
          %v2522 = vld [vmem:[%s5 + $0x8] sm:$0xff]
          %v2523 = vld [vmem:[%s5 + $0x10] sm:$0xff]
          %v2524 = vld [vmem:[%s5 + $0x18] sm:$0xff]
          %v2525 = vld [vmem:[%s5 + $0x20] sm:$0xff]
          %v2526 = vld [vmem:[%s5 + $0x28] sm:$0xff]
          %v2527 = vld [vmem:[%s5 + $0x30] sm:$0xff]
          %v2528 = vld [vmem:[%s5 + $0x38] sm:$0xff]
          %v2529 = vld [vmem:[%s6 + $0x5] sm:$0x1]
          %v2530 = vlaneseq
          %v2531 = vshrl.u32 %v2530, 7
          %v2532 = vsub.s32 0, %v2531
          %v2533 = vrot.slane %v2529, %v2532
          %v2535 = vsel %vm1500, %v2518, 0
          %2537 = vmatprep.subr.mxu0 0.0
          %2538 = vmatpush1.msra.mxu0 0.0
          %2539 = vmatprep.subr.mxu0 0.0
          %2540 = vmatpush1.msra.mxu0 0.0
          %2541 = vmatprep.subr.mxu0 0.0
          %2542 = vmatpush1.msra.mxu0 0.0
          %2543 = vmatprep.subr.mxu0 0.0
          %2544 = vmatpush1.msra.mxu0 0.0
          %2545 = vmatprep.subr.mxu0 0.0
          %2546 = vmatpush1.msra.mxu0 0.0
          %2547 = vmatprep.subr.mxu0 0.0
          %2548 = vmatpush1.msra.mxu0 0.0
          %2549 = vmatprep.subr.mxu0 0.0
          %2550 = vmatpush1.msra.mxu0 0.0
          %2551 = vmatprep.subr.mxu0 0.0
          %2552 = vmatpush1.msra.mxu0 0.0
          %2553 = vmatprep.subr.mxu0 0.0
          %v2554 = vand.u32 %v2528, 4294901760
          %2555 = vmatpush1.msra.mxu0 %v2554
          %2556 = vmatprep.subr.mxu0 0.0
          %v2557 = vand.u32 %v2527, 4294901760
          %2558 = vmatpush1.msra.mxu0 %v2557
          %2559 = vmatprep.subr.mxu0 0.0
          %v2560 = vand.u32 %v2526, 4294901760
          %2561 = vmatpush1.msra.mxu0 %v2560
          %2562 = vmatprep.subr.mxu0 0.0
          %v2563 = vand.u32 %v2525, 4294901760
          %2564 = vmatpush1.msra.mxu0 %v2563
          %2565 = vmatprep.subr.mxu0 0.0
          %v2566 = vand.u32 %v2524, 4294901760
          %2567 = vmatpush1.msra.mxu0 %v2566
          %2568 = vmatprep.subr.mxu0 0.0
          %v2569 = vand.u32 %v2523, 4294901760
          %2570 = vmatpush1.msra.mxu0 %v2569
          %2571 = vmatprep.subr.mxu0 0.0
          %v2572 = vand.u32 %v2522, 4294901760
          %2573 = vmatpush1.msra.mxu0 %v2572
          %2574 = vmatprep.subr.mxu0 0.0
          %v2575 = vand.u32 %v2521, 4294901760
          %2576 = vmatpush1.msra.mxu0 %v2575
          %2577 = vmatprep.subr.mxu0 0.0
          %2578 = vmatpush2.msra.mxu0 0.0
          %2579 = vmatprep.subr.mxu0 0.0
          %2580 = vmatpush2.msra.mxu0 0.0
          %2581 = vmatprep.subr.mxu0 0.0
          %2582 = vmatpush2.msra.mxu0 0.0
          %2583 = vmatprep.subr.mxu0 0.0
          %2584 = vmatpush2.msra.mxu0 0.0
          %2585 = vmatprep.subr.mxu0 0.0
          %2586 = vmatpush2.msra.mxu0 0.0
          %2587 = vmatprep.subr.mxu0 0.0
          %2588 = vmatpush2.msra.mxu0 0.0
          %2589 = vmatprep.subr.mxu0 0.0
          %2590 = vmatpush2.msra.mxu0 0.0
          %2591 = vmatprep.subr.mxu0 0.0
          %2592 = vmatpush2.msra.mxu0 0.0
          %2593 = vmatprep.subr.mxu0 0.0
          %2594 = vmatpush2.msra.mxu0 0.0
          %2595 = vmatprep.subr.mxu0 0.0
          %2596 = vmatpush2.msra.mxu0 0.0
          %2597 = vmatprep.subr.mxu0 0.0
          %2598 = vmatpush2.msra.mxu0 0.0
          %2599 = vmatprep.subr.mxu0 0.0
          %2600 = vmatpush2.msra.mxu0 0.0
          %2601 = vmatprep.subr.mxu0 0.0
          %2602 = vmatpush2.msra.mxu0 0.0
          %2603 = vmatprep.subr.mxu0 0.0
          %2604 = vmatpush2.msra.mxu0 0.0
          %2605 = vmatprep.subr.mxu0 0.0
          %2606 = vmatpush2.msra.mxu0 0.0
          %2607 = vmatprep.subr.mxu0 0.0
          %2608 = vmatpush2.msra.mxu0 0.0
          %2609 = vmatprep.mubr.f32.mxu0 0.0
          %v2610 = vand.u32 %v2535, 4294901760
          %v2611 = vsub.f32 %v2535, %v2610
          %v2612 = vand.u32 %v2611, 4294901760
          %v2613 = vsub.f32 %v2611, %v2612
          %v2614 = vand.u32 %v2613, 4294901760
          %2615 = vmatmul.mubr.f32.gmra.mxu0 %v2614
          %v2616 = vpop.f32.mrf.mxu0
          %v2617 = vadd.f32 %v2533, %v2616
          %v2618 = vpop.f32.mrf.mxu0
          %2619 = vdwg.mxu0
          %2620 = vmatprep.subr.mxu0 0.0
          %2621 = vmatpush1.msra.mxu0 0.0
          %2622 = vmatprep.subr.mxu0 0.0
          %2623 = vmatpush1.msra.mxu0 0.0
          %2624 = vmatprep.subr.mxu0 0.0
          %2625 = vmatpush1.msra.mxu0 0.0
          %2626 = vmatprep.subr.mxu0 0.0
          %2627 = vmatpush1.msra.mxu0 0.0
          %2628 = vmatprep.subr.mxu0 0.0
          %2629 = vmatpush1.msra.mxu0 0.0
          %2630 = vmatprep.subr.mxu0 0.0
          %2631 = vmatpush1.msra.mxu0 0.0
          %2632 = vmatprep.subr.mxu0 0.0
          %2633 = vmatpush1.msra.mxu0 0.0
          %2634 = vmatprep.subr.mxu0 0.0
          %2635 = vmatpush1.msra.mxu0 0.0
          %2636 = vmatprep.subr.mxu0 0.0
          %v2637 = vand.u32 %v2528, 4294901760
          %v2638 = vsub.f32 %v2528, %v2637
          %v2639 = vand.u32 %v2638, 4294901760
          %v2640 = vsub.f32 %v2638, %v2639
          %v2641 = vand.u32 %v2640, 4294901760
          %2642 = vmatpush1.msra.mxu0 %v2641
          %2643 = vmatprep.subr.mxu0 0.0
          %v2644 = vand.u32 %v2527, 4294901760
          %v2645 = vsub.f32 %v2527, %v2644
          %v2646 = vand.u32 %v2645, 4294901760
          %v2647 = vsub.f32 %v2645, %v2646
          %v2648 = vand.u32 %v2647, 4294901760
          %2649 = vmatpush1.msra.mxu0 %v2648
          %2650 = vmatprep.subr.mxu0 0.0
          %v2651 = vand.u32 %v2526, 4294901760
          %v2652 = vsub.f32 %v2526, %v2651
          %v2653 = vand.u32 %v2652, 4294901760
          %v2654 = vsub.f32 %v2652, %v2653
          %v2655 = vand.u32 %v2654, 4294901760
          %2656 = vmatpush1.msra.mxu0 %v2655
          %2657 = vmatprep.subr.mxu0 0.0
          %v2658 = vand.u32 %v2525, 4294901760
          %v2659 = vsub.f32 %v2525, %v2658
          %v2660 = vand.u32 %v2659, 4294901760
          %v2661 = vsub.f32 %v2659, %v2660
          %v2662 = vand.u32 %v2661, 4294901760
          %2663 = vmatpush1.msra.mxu0 %v2662
          %2664 = vmatprep.subr.mxu0 0.0
          %v2665 = vand.u32 %v2524, 4294901760
          %v2666 = vsub.f32 %v2524, %v2665
          %v2667 = vand.u32 %v2666, 4294901760
          %v2668 = vsub.f32 %v2666, %v2667
          %v2669 = vand.u32 %v2668, 4294901760
          %2670 = vmatpush1.msra.mxu0 %v2669
          %2671 = vmatprep.subr.mxu0 0.0
          %v2672 = vand.u32 %v2523, 4294901760
          %v2673 = vsub.f32 %v2523, %v2672
          %v2674 = vand.u32 %v2673, 4294901760
          %v2675 = vsub.f32 %v2673, %v2674
          %v2676 = vand.u32 %v2675, 4294901760
          %2677 = vmatpush1.msra.mxu0 %v2676
          %2678 = vmatprep.subr.mxu0 0.0
          %v2679 = vand.u32 %v2522, 4294901760
          %v2680 = vsub.f32 %v2522, %v2679
          %v2681 = vand.u32 %v2680, 4294901760
          %v2682 = vsub.f32 %v2680, %v2681
          %v2683 = vand.u32 %v2682, 4294901760
          %2684 = vmatpush1.msra.mxu0 %v2683
          %2685 = vmatprep.subr.mxu0 0.0
          %v2686 = vand.u32 %v2521, 4294901760
          %v2687 = vsub.f32 %v2521, %v2686
          %v2688 = vand.u32 %v2687, 4294901760
          %v2689 = vsub.f32 %v2687, %v2688
          %v2690 = vand.u32 %v2689, 4294901760
          %2691 = vmatpush1.msra.mxu0 %v2690
          %2692 = vmatprep.subr.mxu0 0.0
          %2693 = vmatpush2.msra.mxu0 0.0
          %2694 = vmatprep.subr.mxu0 0.0
          %2695 = vmatpush2.msra.mxu0 0.0
          %2696 = vmatprep.subr.mxu0 0.0
          %2697 = vmatpush2.msra.mxu0 0.0
          %2698 = vmatprep.subr.mxu0 0.0
          %2699 = vmatpush2.msra.mxu0 0.0
          %2700 = vmatprep.subr.mxu0 0.0
          %2701 = vmatpush2.msra.mxu0 0.0
          %2702 = vmatprep.subr.mxu0 0.0
          %2703 = vmatpush2.msra.mxu0 0.0
          %2704 = vmatprep.subr.mxu0 0.0
          %2705 = vmatpush2.msra.mxu0 0.0
          %2706 = vmatprep.subr.mxu0 0.0
          %2707 = vmatpush2.msra.mxu0 0.0
          %2708 = vmatprep.subr.mxu0 0.0
          %2709 = vmatpush2.msra.mxu0 0.0
          %2710 = vmatprep.subr.mxu0 0.0
          %2711 = vmatpush2.msra.mxu0 0.0
          %2712 = vmatprep.subr.mxu0 0.0
          %2713 = vmatpush2.msra.mxu0 0.0
          %2714 = vmatprep.subr.mxu0 0.0
          %2715 = vmatpush2.msra.mxu0 0.0
          %2716 = vmatprep.subr.mxu0 0.0
          %2717 = vmatpush2.msra.mxu0 0.0
          %2718 = vmatprep.subr.mxu0 0.0
          %2719 = vmatpush2.msra.mxu0 0.0
          %2720 = vmatprep.subr.mxu0 0.0
          %2721 = vmatpush2.msra.mxu0 0.0
          %2722 = vmatprep.subr.mxu0 0.0
          %2723 = vmatpush2.msra.mxu0 0.0
          %2724 = vmatprep.mubr.f32.mxu0 0.0
          %v2725 = vand.u32 %v2535, 4294901760
          %2726 = vmatmul.mubr.f32.gmra.mxu0 %v2725
          %v2727 = vpop.f32.mrf.mxu0
          %v2728 = vadd.f32 %v2617, %v2727
          %v2729 = vpop.f32.mrf.mxu0
          %2730 = vdwg.mxu0
          %2731 = vmatprep.subr.mxu0 0.0
          %2732 = vmatpush1.msra.mxu0 0.0
          %2733 = vmatprep.subr.mxu0 0.0
          %2734 = vmatpush1.msra.mxu0 0.0
          %2735 = vmatprep.subr.mxu0 0.0
          %2736 = vmatpush1.msra.mxu0 0.0
          %2737 = vmatprep.subr.mxu0 0.0
          %2738 = vmatpush1.msra.mxu0 0.0
          %2739 = vmatprep.subr.mxu0 0.0
          %2740 = vmatpush1.msra.mxu0 0.0
          %2741 = vmatprep.subr.mxu0 0.0
          %2742 = vmatpush1.msra.mxu0 0.0
          %2743 = vmatprep.subr.mxu0 0.0
          %2744 = vmatpush1.msra.mxu0 0.0
          %2745 = vmatprep.subr.mxu0 0.0
          %2746 = vmatpush1.msra.mxu0 0.0
          %2747 = vmatprep.subr.mxu0 0.0
          %v2748 = vand.u32 %v2528, 4294901760
          %v2749 = vsub.f32 %v2528, %v2748
          %2750 = vmatpush1.msra.mxu0 %v2749
          %2751 = vmatprep.subr.mxu0 0.0
          %v2752 = vand.u32 %v2527, 4294901760
          %v2753 = vsub.f32 %v2527, %v2752
          %2754 = vmatpush1.msra.mxu0 %v2753
          %2755 = vmatprep.subr.mxu0 0.0
          %v2756 = vand.u32 %v2526, 4294901760
          %v2757 = vsub.f32 %v2526, %v2756
          %2758 = vmatpush1.msra.mxu0 %v2757
          %2759 = vmatprep.subr.mxu0 0.0
          %v2760 = vand.u32 %v2525, 4294901760
          %v2761 = vsub.f32 %v2525, %v2760
          %2762 = vmatpush1.msra.mxu0 %v2761
          %2763 = vmatprep.subr.mxu0 0.0
          %v2764 = vand.u32 %v2524, 4294901760
          %v2765 = vsub.f32 %v2524, %v2764
          %2766 = vmatpush1.msra.mxu0 %v2765
          %2767 = vmatprep.subr.mxu0 0.0
          %v2768 = vand.u32 %v2523, 4294901760
          %v2769 = vsub.f32 %v2523, %v2768
          %2770 = vmatpush1.msra.mxu0 %v2769
          %2771 = vmatprep.subr.mxu0 0.0
          %v2772 = vand.u32 %v2522, 4294901760
          %v2773 = vsub.f32 %v2522, %v2772
          %2774 = vmatpush1.msra.mxu0 %v2773
          %2775 = vmatprep.subr.mxu0 0.0
          %v2776 = vand.u32 %v2521, 4294901760
          %v2777 = vsub.f32 %v2521, %v2776
          %2778 = vmatpush1.msra.mxu0 %v2777
          %2779 = vmatprep.subr.mxu0 0.0
          %2780 = vmatpush2.msra.mxu0 0.0
          %2781 = vmatprep.subr.mxu0 0.0
          %2782 = vmatpush2.msra.mxu0 0.0
          %2783 = vmatprep.subr.mxu0 0.0
          %2784 = vmatpush2.msra.mxu0 0.0
          %2785 = vmatprep.subr.mxu0 0.0
          %2786 = vmatpush2.msra.mxu0 0.0
          %2787 = vmatprep.subr.mxu0 0.0
          %2788 = vmatpush2.msra.mxu0 0.0
          %2789 = vmatprep.subr.mxu0 0.0
          %2790 = vmatpush2.msra.mxu0 0.0
          %2791 = vmatprep.subr.mxu0 0.0
          %2792 = vmatpush2.msra.mxu0 0.0
          %2793 = vmatprep.subr.mxu0 0.0
          %2794 = vmatpush2.msra.mxu0 0.0
          %2795 = vmatprep.subr.mxu0 0.0
          %2796 = vmatpush2.msra.mxu0 0.0
          %2797 = vmatprep.subr.mxu0 0.0
          %2798 = vmatpush2.msra.mxu0 0.0
          %2799 = vmatprep.subr.mxu0 0.0
          %2800 = vmatpush2.msra.mxu0 0.0
          %2801 = vmatprep.subr.mxu0 0.0
          %2802 = vmatpush2.msra.mxu0 0.0
          %2803 = vmatprep.subr.mxu0 0.0
          %2804 = vmatpush2.msra.mxu0 0.0
          %2805 = vmatprep.subr.mxu0 0.0
          %2806 = vmatpush2.msra.mxu0 0.0
          %2807 = vmatprep.subr.mxu0 0.0
          %2808 = vmatpush2.msra.mxu0 0.0
          %2809 = vmatprep.subr.mxu0 0.0
          %2810 = vmatpush2.msra.mxu0 0.0
          %2811 = vmatprep.mubr.f32.mxu0 0.0
          %v2812 = vand.u32 %v2535, 4294901760
          %v2813 = vsub.f32 %v2535, %v2812
          %2814 = vmatmul.mubr.f32.gmra.mxu0 %v2813
          %v2815 = vpop.f32.mrf.mxu0
          %v2816 = vadd.f32 %v2728, %v2815
          %v2817 = vpop.f32.mrf.mxu0
          %2818 = vdwg.mxu0
          %2819 = vmatprep.subr.mxu0 0.0
          %2820 = vmatpush1.msra.mxu0 0.0
          %2821 = vmatprep.subr.mxu0 0.0
          %2822 = vmatpush1.msra.mxu0 0.0
          %2823 = vmatprep.subr.mxu0 0.0
          %2824 = vmatpush1.msra.mxu0 0.0
          %2825 = vmatprep.subr.mxu0 0.0
          %2826 = vmatpush1.msra.mxu0 0.0
          %2827 = vmatprep.subr.mxu0 0.0
          %2828 = vmatpush1.msra.mxu0 0.0
          %2829 = vmatprep.subr.mxu0 0.0
          %2830 = vmatpush1.msra.mxu0 0.0
          %2831 = vmatprep.subr.mxu0 0.0
          %2832 = vmatpush1.msra.mxu0 0.0
          %2833 = vmatprep.subr.mxu0 0.0
          %2834 = vmatpush1.msra.mxu0 0.0
          %2835 = vmatprep.subr.mxu0 0.0
          %v2836 = vand.u32 %v2528, 4294901760
          %2837 = vmatpush1.msra.mxu0 %v2836
          %2838 = vmatprep.subr.mxu0 0.0
          %v2839 = vand.u32 %v2527, 4294901760
          %2840 = vmatpush1.msra.mxu0 %v2839
          %2841 = vmatprep.subr.mxu0 0.0
          %v2842 = vand.u32 %v2526, 4294901760
          %2843 = vmatpush1.msra.mxu0 %v2842
          %2844 = vmatprep.subr.mxu0 0.0
          %v2845 = vand.u32 %v2525, 4294901760
          %2846 = vmatpush1.msra.mxu0 %v2845
          %2847 = vmatprep.subr.mxu0 0.0
          %v2848 = vand.u32 %v2524, 4294901760
          %2849 = vmatpush1.msra.mxu0 %v2848
          %2850 = vmatprep.subr.mxu0 0.0
          %v2851 = vand.u32 %v2523, 4294901760
          %2852 = vmatpush1.msra.mxu0 %v2851
          %2853 = vmatprep.subr.mxu0 0.0
          %v2854 = vand.u32 %v2522, 4294901760
          %2855 = vmatpush1.msra.mxu0 %v2854
          %2856 = vmatprep.subr.mxu0 0.0
          %v2857 = vand.u32 %v2521, 4294901760
          %2858 = vmatpush1.msra.mxu0 %v2857
          %2859 = vmatprep.subr.mxu0 0.0
          %2860 = vmatpush2.msra.mxu0 0.0
          %2861 = vmatprep.subr.mxu0 0.0
          %2862 = vmatpush2.msra.mxu0 0.0
          %2863 = vmatprep.subr.mxu0 0.0
          %2864 = vmatpush2.msra.mxu0 0.0
          %2865 = vmatprep.subr.mxu0 0.0
          %2866 = vmatpush2.msra.mxu0 0.0
          %2867 = vmatprep.subr.mxu0 0.0
          %2868 = vmatpush2.msra.mxu0 0.0
          %2869 = vmatprep.subr.mxu0 0.0
          %2870 = vmatpush2.msra.mxu0 0.0
          %2871 = vmatprep.subr.mxu0 0.0
          %2872 = vmatpush2.msra.mxu0 0.0
          %2873 = vmatprep.subr.mxu0 0.0
          %2874 = vmatpush2.msra.mxu0 0.0
          %2875 = vmatprep.subr.mxu0 0.0
          %2876 = vmatpush2.msra.mxu0 0.0
          %2877 = vmatprep.subr.mxu0 0.0
          %2878 = vmatpush2.msra.mxu0 0.0
          %2879 = vmatprep.subr.mxu0 0.0
          %2880 = vmatpush2.msra.mxu0 0.0
          %2881 = vmatprep.subr.mxu0 0.0
          %2882 = vmatpush2.msra.mxu0 0.0
          %2883 = vmatprep.subr.mxu0 0.0
          %2884 = vmatpush2.msra.mxu0 0.0
          %2885 = vmatprep.subr.mxu0 0.0
          %2886 = vmatpush2.msra.mxu0 0.0
          %2887 = vmatprep.subr.mxu0 0.0
          %2888 = vmatpush2.msra.mxu0 0.0
          %2889 = vmatprep.subr.mxu0 0.0
          %2890 = vmatpush2.msra.mxu0 0.0
          %2891 = vmatprep.mubr.f32.mxu0 0.0
          %v2892 = vand.u32 %v2535, 4294901760
          %v2893 = vsub.f32 %v2535, %v2892
          %v2894 = vand.u32 %v2893, 4294901760
          %2895 = vmatmul.mubr.f32.gmra.mxu0 %v2894
          %v2896 = vpop.f32.mrf.mxu0
          %v2897 = vadd.f32 %v2816, %v2896
          %v2898 = vpop.f32.mrf.mxu0
          %2899 = vdwg.mxu0
          %2900 = vmatprep.subr.mxu0 0.0
          %2901 = vmatpush1.msra.mxu0 0.0
          %2902 = vmatprep.subr.mxu0 0.0
          %2903 = vmatpush1.msra.mxu0 0.0
          %2904 = vmatprep.subr.mxu0 0.0
          %2905 = vmatpush1.msra.mxu0 0.0
          %2906 = vmatprep.subr.mxu0 0.0
          %2907 = vmatpush1.msra.mxu0 0.0
          %2908 = vmatprep.subr.mxu0 0.0
          %2909 = vmatpush1.msra.mxu0 0.0
          %2910 = vmatprep.subr.mxu0 0.0
          %2911 = vmatpush1.msra.mxu0 0.0
          %2912 = vmatprep.subr.mxu0 0.0
          %2913 = vmatpush1.msra.mxu0 0.0
          %2914 = vmatprep.subr.mxu0 0.0
          %2915 = vmatpush1.msra.mxu0 0.0
          %2916 = vmatprep.subr.mxu0 0.0
          %v2917 = vand.u32 %v2528, 4294901760
          %v2918 = vsub.f32 %v2528, %v2917
          %v2919 = vand.u32 %v2918, 4294901760
          %2920 = vmatpush1.msra.mxu0 %v2919
          %2921 = vmatprep.subr.mxu0 0.0
          %v2922 = vand.u32 %v2527, 4294901760
          %v2923 = vsub.f32 %v2527, %v2922
          %v2924 = vand.u32 %v2923, 4294901760
          %2925 = vmatpush1.msra.mxu0 %v2924
          %2926 = vmatprep.subr.mxu0 0.0
          %v2927 = vand.u32 %v2526, 4294901760
          %v2928 = vsub.f32 %v2526, %v2927
          %v2929 = vand.u32 %v2928, 4294901760
          %2930 = vmatpush1.msra.mxu0 %v2929
          %2931 = vmatprep.subr.mxu0 0.0
          %v2932 = vand.u32 %v2525, 4294901760
          %v2933 = vsub.f32 %v2525, %v2932
          %v2934 = vand.u32 %v2933, 4294901760
          %2935 = vmatpush1.msra.mxu0 %v2934
          %2936 = vmatprep.subr.mxu0 0.0
          %v2937 = vand.u32 %v2524, 4294901760
          %v2938 = vsub.f32 %v2524, %v2937
          %v2939 = vand.u32 %v2938, 4294901760
          %2940 = vmatpush1.msra.mxu0 %v2939
          %2941 = vmatprep.subr.mxu0 0.0
          %v2942 = vand.u32 %v2523, 4294901760
          %v2943 = vsub.f32 %v2523, %v2942
          %v2944 = vand.u32 %v2943, 4294901760
          %2945 = vmatpush1.msra.mxu0 %v2944
          %2946 = vmatprep.subr.mxu0 0.0
          %v2947 = vand.u32 %v2522, 4294901760
          %v2948 = vsub.f32 %v2522, %v2947
          %v2949 = vand.u32 %v2948, 4294901760
          %2950 = vmatpush1.msra.mxu0 %v2949
          %2951 = vmatprep.subr.mxu0 0.0
          %v2952 = vand.u32 %v2521, 4294901760
          %v2953 = vsub.f32 %v2521, %v2952
          %v2954 = vand.u32 %v2953, 4294901760
          %2955 = vmatpush1.msra.mxu0 %v2954
          %2956 = vmatprep.subr.mxu0 0.0
          %2957 = vmatpush2.msra.mxu0 0.0
          %2958 = vmatprep.subr.mxu0 0.0
          %2959 = vmatpush2.msra.mxu0 0.0
          %2960 = vmatprep.subr.mxu0 0.0
          %2961 = vmatpush2.msra.mxu0 0.0
          %2962 = vmatprep.subr.mxu0 0.0
          %2963 = vmatpush2.msra.mxu0 0.0
          %2964 = vmatprep.subr.mxu0 0.0
          %2965 = vmatpush2.msra.mxu0 0.0
          %2966 = vmatprep.subr.mxu0 0.0
          %2967 = vmatpush2.msra.mxu0 0.0
          %2968 = vmatprep.subr.mxu0 0.0
          %2969 = vmatpush2.msra.mxu0 0.0
          %2970 = vmatprep.subr.mxu0 0.0
          %2971 = vmatpush2.msra.mxu0 0.0
          %2972 = vmatprep.subr.mxu0 0.0
          %2973 = vmatpush2.msra.mxu0 0.0
          %2974 = vmatprep.subr.mxu0 0.0
          %2975 = vmatpush2.msra.mxu0 0.0
          %2976 = vmatprep.subr.mxu0 0.0
          %2977 = vmatpush2.msra.mxu0 0.0
          %2978 = vmatprep.subr.mxu0 0.0
          %2979 = vmatpush2.msra.mxu0 0.0
          %2980 = vmatprep.subr.mxu0 0.0
          %2981 = vmatpush2.msra.mxu0 0.0
          %2982 = vmatprep.subr.mxu0 0.0
          %2983 = vmatpush2.msra.mxu0 0.0
          %2984 = vmatprep.subr.mxu0 0.0
          %2985 = vmatpush2.msra.mxu0 0.0
          %2986 = vmatprep.subr.mxu0 0.0
          %2987 = vmatpush2.msra.mxu0 0.0
          %2988 = vmatprep.mubr.f32.mxu0 0.0
          %v2989 = vand.u32 %v2535, 4294901760
          %2990 = vmatmul.mubr.f32.gmra.mxu0 %v2989
          %v2991 = vpop.f32.mrf.mxu0
          %v2992 = vadd.f32 %v2897, %v2991
          %v2993 = vpop.f32.mrf.mxu0
          %2994 = vdwg.mxu0
          %2995 = vmatprep.subr.mxu0 0.0
          %2996 = vmatpush1.msra.mxu0 0.0
          %2997 = vmatprep.subr.mxu0 0.0
          %2998 = vmatpush1.msra.mxu0 0.0
          %2999 = vmatprep.subr.mxu0 0.0
          %3000 = vmatpush1.msra.mxu0 0.0
          %3001 = vmatprep.subr.mxu0 0.0
          %3002 = vmatpush1.msra.mxu0 0.0
          %3003 = vmatprep.subr.mxu0 0.0
          %3004 = vmatpush1.msra.mxu0 0.0
          %3005 = vmatprep.subr.mxu0 0.0
          %3006 = vmatpush1.msra.mxu0 0.0
          %3007 = vmatprep.subr.mxu0 0.0
          %3008 = vmatpush1.msra.mxu0 0.0
          %3009 = vmatprep.subr.mxu0 0.0
          %3010 = vmatpush1.msra.mxu0 0.0
          %3011 = vmatprep.subr.mxu0 0.0
          %v3012 = vand.u32 %v2528, 4294901760
          %3013 = vmatpush1.msra.mxu0 %v3012
          %3014 = vmatprep.subr.mxu0 0.0
          %v3015 = vand.u32 %v2527, 4294901760
          %3016 = vmatpush1.msra.mxu0 %v3015
          %3017 = vmatprep.subr.mxu0 0.0
          %v3018 = vand.u32 %v2526, 4294901760
          %3019 = vmatpush1.msra.mxu0 %v3018
          %3020 = vmatprep.subr.mxu0 0.0
          %v3021 = vand.u32 %v2525, 4294901760
          %3022 = vmatpush1.msra.mxu0 %v3021
          %3023 = vmatprep.subr.mxu0 0.0
          %v3024 = vand.u32 %v2524, 4294901760
          %3025 = vmatpush1.msra.mxu0 %v3024
          %3026 = vmatprep.subr.mxu0 0.0
          %v3027 = vand.u32 %v2523, 4294901760
          %3028 = vmatpush1.msra.mxu0 %v3027
          %3029 = vmatprep.subr.mxu0 0.0
          %v3030 = vand.u32 %v2522, 4294901760
          %3031 = vmatpush1.msra.mxu0 %v3030
          %3032 = vmatprep.subr.mxu0 0.0
          %v3033 = vand.u32 %v2521, 4294901760
          %3034 = vmatpush1.msra.mxu0 %v3033
          %3035 = vmatprep.subr.mxu0 0.0
          %3036 = vmatpush2.msra.mxu0 0.0
          %3037 = vmatprep.subr.mxu0 0.0
          %3038 = vmatpush2.msra.mxu0 0.0
          %3039 = vmatprep.subr.mxu0 0.0
          %3040 = vmatpush2.msra.mxu0 0.0
          %3041 = vmatprep.subr.mxu0 0.0
          %3042 = vmatpush2.msra.mxu0 0.0
          %3043 = vmatprep.subr.mxu0 0.0
          %3044 = vmatpush2.msra.mxu0 0.0
          %3045 = vmatprep.subr.mxu0 0.0
          %3046 = vmatpush2.msra.mxu0 0.0
          %3047 = vmatprep.subr.mxu0 0.0
          %3048 = vmatpush2.msra.mxu0 0.0
          %3049 = vmatprep.subr.mxu0 0.0
          %3050 = vmatpush2.msra.mxu0 0.0
          %3051 = vmatprep.subr.mxu0 0.0
          %3052 = vmatpush2.msra.mxu0 0.0
          %3053 = vmatprep.subr.mxu0 0.0
          %3054 = vmatpush2.msra.mxu0 0.0
          %3055 = vmatprep.subr.mxu0 0.0
          %3056 = vmatpush2.msra.mxu0 0.0
          %3057 = vmatprep.subr.mxu0 0.0
          %3058 = vmatpush2.msra.mxu0 0.0
          %3059 = vmatprep.subr.mxu0 0.0
          %3060 = vmatpush2.msra.mxu0 0.0
          %3061 = vmatprep.subr.mxu0 0.0
          %3062 = vmatpush2.msra.mxu0 0.0
          %3063 = vmatprep.subr.mxu0 0.0
          %3064 = vmatpush2.msra.mxu0 0.0
          %3065 = vmatprep.subr.mxu0 0.0
          %3066 = vmatpush2.msra.mxu0 0.0
          %3067 = vmatprep.mubr.f32.mxu0 0.0
          %v3068 = vand.u32 %v2535, 4294901760
          %3069 = vmatmul.mubr.f32.gmra.mxu0 %v3068
          %v3070 = vpop.f32.mrf.mxu0
          %v3071 = vadd.f32 %v2992, %v3070
          %v3072 = vpop.f32.mrf.mxu0
          %3073 = vdwg.mxu0
          %v3074 = vld [vmem:[#allocation3] sm:$0x1]
          %v3075 = vsel %vm983, %v3071, 0.0
          %v3076 = vrot.slane %v3075, 4
          %v3077 = vadd.f32 %v3075, %v3076
          %v3078 = vrot.slane %v3077, 2
          %v3079 = vadd.f32 %v3077, %v3078
          %v3080 = vrot.slane %v3079, 1
          %v3081 = vadd.f32 %v3079, %v3080
          %v3082 = vadd.f32 %v3074, %v3081
          %vm3083 = vcmask 253952
          %3084 = vst.msk [vmem:[#allocation3] sm:$0x1] %vm3083, %v3082
          %v3085 = vld [vmem:[#allocation3 + $0x1] sm:$0x1]
          %v3086 = vmul.f32 %v3071, %v3071
          %v3087 = vsel %vm983, %v3086, 0.0
          %v3088 = vrot.slane %v3087, 4
          %v3089 = vadd.f32 %v3087, %v3088
          %v3090 = vrot.slane %v3089, 2
          %v3091 = vadd.f32 %v3089, %v3090
          %v3092 = vrot.slane %v3091, 1
          %v3093 = vadd.f32 %v3091, %v3092
          %v3094 = vadd.f32 %v3085, %v3093
          %3095 = vst.msk [vmem:[#allocation3 + $0x1] sm:$0x1] %vm3083, %v3094
          %p3096 = scmp.eq.s32.totalorder %s36, 1
          // Predicated region
          $region69: #{tpu_custom_call.1} parent=63 // pred_check
            %p3097 = pneg %p3096
          $region70: #{tpu_custom_call.1} parent=63 // pred_check_branch
            %3099 = sbr.rel (%p3097) target = $region72
          $region71: #{tpu_custom_call.1} parent=63 // pred_region
            %v3100 = vld [vmem:[#allocation3] sm:$0x1]
            %v3101 = vmul.f32 %v3100, 0.0625
            %v3102 = vld [vmem:[#allocation3 + $0x1] sm:$0x1]
            %v3103 = vmul.f32 %v3102, 0.0625
            %v3104 = vmul.f32 %v3101, %v3101
            %v3105 = vsub.f32 %v3103, %v3104
            %v3106 = vadd.f32 %v3105, 1e-05
            %v3107 = vrsqrt.pop %v3106
            %v3108 = vld [vmem:[%s6 + $0x6] sm:$0x1]
            %v3109 = vmul.f32 %v3108, %v3107
            %v3110 = vld [vmem:[%s6 + $0x7] sm:$0x1]
            %v3111 = vmul.f32 %v3101, %v3109
            %v3112 = vsub.f32 %v3110, %v3111
            %3113 = vst.msk [vmem:[#allocation3] sm:$0x1] %vm3083, %v3109
            %3114 = vst.msk [vmem:[#allocation3 + $0x1] sm:$0x1] %vm3083, %v3112
          $region72: #{tpu_custom_call.1} parent=63 // pred_fallthru
            _
        $region64: #{tpu_custom_call.1} parent=47 // pred_fallthru
          _
        %p3115 = scmp.eq.s32.totalorder %s35, 2
        // Predicated region
        $region73: #{tpu_custom_call.1} parent=47 // pred_check
          %p3116 = pneg %p3115
        $region74: #{tpu_custom_call.1} parent=47 // pred_check_branch
          %3118 = sbr.rel (%p3116) target = $region76
        $region75: #{tpu_custom_call.1} parent=47 // pred_region
          %v3119 = vld [vmem:[%s407] sm:$0xff]
          %v3120 = vld [vmem:[%s2] sm:$0xff]
          %v3121 = vld [vmem:[%s2 + $0x8] sm:$0xff]
          %v3122 = vld [vmem:[%s2 + $0x10] sm:$0xff]
          %v3123 = vld [vmem:[%s2 + $0x18] sm:$0xff]
          %v3124 = vld [vmem:[%s6] sm:$0x1]
          %v3125 = vlaneseq
          %v3126 = vshrl.u32 %v3125, 7
          %v3127 = vsub.s32 0, %v3126
          %v3128 = vrot.slane %v3124, %v3127
          %vm3129 = vcmask 261120
          %v3131 = vsel %vm3129, %v3119, 0
          %3133 = vmatprep.subr.mxu0 0.0
          %3134 = vmatpush1.msra.mxu0 0.0
          %3135 = vmatprep.subr.mxu0 0.0
          %3136 = vmatpush1.msra.mxu0 0.0
          %3137 = vmatprep.subr.mxu0 0.0
          %3138 = vmatpush1.msra.mxu0 0.0
          %3139 = vmatprep.subr.mxu0 0.0
          %3140 = vmatpush1.msra.mxu0 0.0
          %3141 = vmatprep.subr.mxu0 0.0
          %3142 = vmatpush1.msra.mxu0 0.0
          %3143 = vmatprep.subr.mxu0 0.0
          %3144 = vmatpush1.msra.mxu0 0.0
          %3145 = vmatprep.subr.mxu0 0.0
          %3146 = vmatpush1.msra.mxu0 0.0
          %3147 = vmatprep.subr.mxu0 0.0
          %3148 = vmatpush1.msra.mxu0 0.0
          %3149 = vmatprep.subr.mxu0 0.0
          %3150 = vmatpush1.msra.mxu0 0.0
          %3151 = vmatprep.subr.mxu0 0.0
          %3152 = vmatpush1.msra.mxu0 0.0
          %3153 = vmatprep.subr.mxu0 0.0
          %3154 = vmatpush1.msra.mxu0 0.0
          %3155 = vmatprep.subr.mxu0 0.0
          %3156 = vmatpush1.msra.mxu0 0.0
          %3157 = vmatprep.subr.mxu0 0.0
          %v3158 = vand.u32 %v3123, 4294901760
          %3159 = vmatpush1.msra.mxu0 %v3158
          %3160 = vmatprep.subr.mxu0 0.0
          %v3161 = vand.u32 %v3122, 4294901760
          %3162 = vmatpush1.msra.mxu0 %v3161
          %3163 = vmatprep.subr.mxu0 0.0
          %v3164 = vand.u32 %v3121, 4294901760
          %3165 = vmatpush1.msra.mxu0 %v3164
          %3166 = vmatprep.subr.mxu0 0.0
          %v3167 = vand.u32 %v3120, 4294901760
          %3168 = vmatpush1.msra.mxu0 %v3167
          %3169 = vmatprep.subr.mxu0 0.0
          %3170 = vmatpush2.msra.mxu0 0.0
          %3171 = vmatprep.subr.mxu0 0.0
          %3172 = vmatpush2.msra.mxu0 0.0
          %3173 = vmatprep.subr.mxu0 0.0
          %3174 = vmatpush2.msra.mxu0 0.0
          %3175 = vmatprep.subr.mxu0 0.0
          %3176 = vmatpush2.msra.mxu0 0.0
          %3177 = vmatprep.subr.mxu0 0.0
          %3178 = vmatpush2.msra.mxu0 0.0
          %3179 = vmatprep.subr.mxu0 0.0
          %3180 = vmatpush2.msra.mxu0 0.0
          %3181 = vmatprep.subr.mxu0 0.0
          %3182 = vmatpush2.msra.mxu0 0.0
          %3183 = vmatprep.subr.mxu0 0.0
          %3184 = vmatpush2.msra.mxu0 0.0
          %3185 = vmatprep.subr.mxu0 0.0
          %3186 = vmatpush2.msra.mxu0 0.0
          %3187 = vmatprep.subr.mxu0 0.0
          %3188 = vmatpush2.msra.mxu0 0.0
          %3189 = vmatprep.subr.mxu0 0.0
          %3190 = vmatpush2.msra.mxu0 0.0
          %3191 = vmatprep.subr.mxu0 0.0
          %3192 = vmatpush2.msra.mxu0 0.0
          %3193 = vmatprep.subr.mxu0 0.0
          %3194 = vmatpush2.msra.mxu0 0.0
          %3195 = vmatprep.subr.mxu0 0.0
          %3196 = vmatpush2.msra.mxu0 0.0
          %3197 = vmatprep.subr.mxu0 0.0
          %3198 = vmatpush2.msra.mxu0 0.0
          %3199 = vmatprep.subr.mxu0 0.0
          %3200 = vmatpush2.msra.mxu0 0.0
          %3201 = vmatprep.mubr.f32.mxu0 0.0
          %v3202 = vand.u32 %v3131, 4294901760
          %v3203 = vsub.f32 %v3131, %v3202
          %v3204 = vand.u32 %v3203, 4294901760
          %v3205 = vsub.f32 %v3203, %v3204
          %v3206 = vand.u32 %v3205, 4294901760
          %3207 = vmatmul.mubr.f32.gmra.mxu0 %v3206
          %v3208 = vpop.f32.mrf.mxu0
          %v3209 = vadd.f32 %v3128, %v3208
          %v3210 = vpop.f32.mrf.mxu0
          %3211 = vdwg.mxu0
          %3212 = vmatprep.subr.mxu0 0.0
          %3213 = vmatpush1.msra.mxu0 0.0
          %3214 = vmatprep.subr.mxu0 0.0
          %3215 = vmatpush1.msra.mxu0 0.0
          %3216 = vmatprep.subr.mxu0 0.0
          %3217 = vmatpush1.msra.mxu0 0.0
          %3218 = vmatprep.subr.mxu0 0.0
          %3219 = vmatpush1.msra.mxu0 0.0
          %3220 = vmatprep.subr.mxu0 0.0
          %3221 = vmatpush1.msra.mxu0 0.0
          %3222 = vmatprep.subr.mxu0 0.0
          %3223 = vmatpush1.msra.mxu0 0.0
          %3224 = vmatprep.subr.mxu0 0.0
          %3225 = vmatpush1.msra.mxu0 0.0
          %3226 = vmatprep.subr.mxu0 0.0
          %3227 = vmatpush1.msra.mxu0 0.0
          %3228 = vmatprep.subr.mxu0 0.0
          %3229 = vmatpush1.msra.mxu0 0.0
          %3230 = vmatprep.subr.mxu0 0.0
          %3231 = vmatpush1.msra.mxu0 0.0
          %3232 = vmatprep.subr.mxu0 0.0
          %3233 = vmatpush1.msra.mxu0 0.0
          %3234 = vmatprep.subr.mxu0 0.0
          %3235 = vmatpush1.msra.mxu0 0.0
          %3236 = vmatprep.subr.mxu0 0.0
          %v3237 = vand.u32 %v3123, 4294901760
          %v3238 = vsub.f32 %v3123, %v3237
          %v3239 = vand.u32 %v3238, 4294901760
          %v3240 = vsub.f32 %v3238, %v3239
          %v3241 = vand.u32 %v3240, 4294901760
          %3242 = vmatpush1.msra.mxu0 %v3241
          %3243 = vmatprep.subr.mxu0 0.0
          %v3244 = vand.u32 %v3122, 4294901760
          %v3245 = vsub.f32 %v3122, %v3244
          %v3246 = vand.u32 %v3245, 4294901760
          %v3247 = vsub.f32 %v3245, %v3246
          %v3248 = vand.u32 %v3247, 4294901760
          %3249 = vmatpush1.msra.mxu0 %v3248
          %3250 = vmatprep.subr.mxu0 0.0
          %v3251 = vand.u32 %v3121, 4294901760
          %v3252 = vsub.f32 %v3121, %v3251
          %v3253 = vand.u32 %v3252, 4294901760
          %v3254 = vsub.f32 %v3252, %v3253
          %v3255 = vand.u32 %v3254, 4294901760
          %3256 = vmatpush1.msra.mxu0 %v3255
          %3257 = vmatprep.subr.mxu0 0.0
          %v3258 = vand.u32 %v3120, 4294901760
          %v3259 = vsub.f32 %v3120, %v3258
          %v3260 = vand.u32 %v3259, 4294901760
          %v3261 = vsub.f32 %v3259, %v3260
          %v3262 = vand.u32 %v3261, 4294901760
          %3263 = vmatpush1.msra.mxu0 %v3262
          %3264 = vmatprep.subr.mxu0 0.0
          %3265 = vmatpush2.msra.mxu0 0.0
          %3266 = vmatprep.subr.mxu0 0.0
          %3267 = vmatpush2.msra.mxu0 0.0
          %3268 = vmatprep.subr.mxu0 0.0
          %3269 = vmatpush2.msra.mxu0 0.0
          %3270 = vmatprep.subr.mxu0 0.0
          %3271 = vmatpush2.msra.mxu0 0.0
          %3272 = vmatprep.subr.mxu0 0.0
          %3273 = vmatpush2.msra.mxu0 0.0
          %3274 = vmatprep.subr.mxu0 0.0
          %3275 = vmatpush2.msra.mxu0 0.0
          %3276 = vmatprep.subr.mxu0 0.0
          %3277 = vmatpush2.msra.mxu0 0.0
          %3278 = vmatprep.subr.mxu0 0.0
          %3279 = vmatpush2.msra.mxu0 0.0
          %3280 = vmatprep.subr.mxu0 0.0
          %3281 = vmatpush2.msra.mxu0 0.0
          %3282 = vmatprep.subr.mxu0 0.0
          %3283 = vmatpush2.msra.mxu0 0.0
          %3284 = vmatprep.subr.mxu0 0.0
          %3285 = vmatpush2.msra.mxu0 0.0
          %3286 = vmatprep.subr.mxu0 0.0
          %3287 = vmatpush2.msra.mxu0 0.0
          %3288 = vmatprep.subr.mxu0 0.0
          %3289 = vmatpush2.msra.mxu0 0.0
          %3290 = vmatprep.subr.mxu0 0.0
          %3291 = vmatpush2.msra.mxu0 0.0
          %3292 = vmatprep.subr.mxu0 0.0
          %3293 = vmatpush2.msra.mxu0 0.0
          %3294 = vmatprep.subr.mxu0 0.0
          %3295 = vmatpush2.msra.mxu0 0.0
          %3296 = vmatprep.mubr.f32.mxu0 0.0
          %v3297 = vand.u32 %v3131, 4294901760
          %3298 = vmatmul.mubr.f32.gmra.mxu0 %v3297
          %v3299 = vpop.f32.mrf.mxu0
          %v3300 = vadd.f32 %v3209, %v3299
          %v3301 = vpop.f32.mrf.mxu0
          %3302 = vdwg.mxu0
          %3303 = vmatprep.subr.mxu0 0.0
          %3304 = vmatpush1.msra.mxu0 0.0
          %3305 = vmatprep.subr.mxu0 0.0
          %3306 = vmatpush1.msra.mxu0 0.0
          %3307 = vmatprep.subr.mxu0 0.0
          %3308 = vmatpush1.msra.mxu0 0.0
          %3309 = vmatprep.subr.mxu0 0.0
          %3310 = vmatpush1.msra.mxu0 0.0
          %3311 = vmatprep.subr.mxu0 0.0
          %3312 = vmatpush1.msra.mxu0 0.0
          %3313 = vmatprep.subr.mxu0 0.0
          %3314 = vmatpush1.msra.mxu0 0.0
          %3315 = vmatprep.subr.mxu0 0.0
          %3316 = vmatpush1.msra.mxu0 0.0
          %3317 = vmatprep.subr.mxu0 0.0
          %3318 = vmatpush1.msra.mxu0 0.0
          %3319 = vmatprep.subr.mxu0 0.0
          %3320 = vmatpush1.msra.mxu0 0.0
          %3321 = vmatprep.subr.mxu0 0.0
          %3322 = vmatpush1.msra.mxu0 0.0
          %3323 = vmatprep.subr.mxu0 0.0
          %3324 = vmatpush1.msra.mxu0 0.0
          %3325 = vmatprep.subr.mxu0 0.0
          %3326 = vmatpush1.msra.mxu0 0.0
          %3327 = vmatprep.subr.mxu0 0.0
          %v3328 = vand.u32 %v3123, 4294901760
          %v3329 = vsub.f32 %v3123, %v3328
          %3330 = vmatpush1.msra.mxu0 %v3329
          %3331 = vmatprep.subr.mxu0 0.0
          %v3332 = vand.u32 %v3122, 4294901760
          %v3333 = vsub.f32 %v3122, %v3332
          %3334 = vmatpush1.msra.mxu0 %v3333
          %3335 = vmatprep.subr.mxu0 0.0
          %v3336 = vand.u32 %v3121, 4294901760
          %v3337 = vsub.f32 %v3121, %v3336
          %3338 = vmatpush1.msra.mxu0 %v3337
          %3339 = vmatprep.subr.mxu0 0.0
          %v3340 = vand.u32 %v3120, 4294901760
          %v3341 = vsub.f32 %v3120, %v3340
          %3342 = vmatpush1.msra.mxu0 %v3341
          %3343 = vmatprep.subr.mxu0 0.0
          %3344 = vmatpush2.msra.mxu0 0.0
          %3345 = vmatprep.subr.mxu0 0.0
          %3346 = vmatpush2.msra.mxu0 0.0
          %3347 = vmatprep.subr.mxu0 0.0
          %3348 = vmatpush2.msra.mxu0 0.0
          %3349 = vmatprep.subr.mxu0 0.0
          %3350 = vmatpush2.msra.mxu0 0.0
          %3351 = vmatprep.subr.mxu0 0.0
          %3352 = vmatpush2.msra.mxu0 0.0
          %3353 = vmatprep.subr.mxu0 0.0
          %3354 = vmatpush2.msra.mxu0 0.0
          %3355 = vmatprep.subr.mxu0 0.0
          %3356 = vmatpush2.msra.mxu0 0.0
          %3357 = vmatprep.subr.mxu0 0.0
          %3358 = vmatpush2.msra.mxu0 0.0
          %3359 = vmatprep.subr.mxu0 0.0
          %3360 = vmatpush2.msra.mxu0 0.0
          %3361 = vmatprep.subr.mxu0 0.0
          %3362 = vmatpush2.msra.mxu0 0.0
          %3363 = vmatprep.subr.mxu0 0.0
          %3364 = vmatpush2.msra.mxu0 0.0
          %3365 = vmatprep.subr.mxu0 0.0
          %3366 = vmatpush2.msra.mxu0 0.0
          %3367 = vmatprep.subr.mxu0 0.0
          %3368 = vmatpush2.msra.mxu0 0.0
          %3369 = vmatprep.subr.mxu0 0.0
          %3370 = vmatpush2.msra.mxu0 0.0
          %3371 = vmatprep.subr.mxu0 0.0
          %3372 = vmatpush2.msra.mxu0 0.0
          %3373 = vmatprep.subr.mxu0 0.0
          %3374 = vmatpush2.msra.mxu0 0.0
          %3375 = vmatprep.mubr.f32.mxu0 0.0
          %v3376 = vand.u32 %v3131, 4294901760
          %v3377 = vsub.f32 %v3131, %v3376
          %3378 = vmatmul.mubr.f32.gmra.mxu0 %v3377
          %v3379 = vpop.f32.mrf.mxu0
          %v3380 = vadd.f32 %v3300, %v3379
          %v3381 = vpop.f32.mrf.mxu0
          %3382 = vdwg.mxu0
          %3383 = vmatprep.subr.mxu0 0.0
          %3384 = vmatpush1.msra.mxu0 0.0
          %3385 = vmatprep.subr.mxu0 0.0
          %3386 = vmatpush1.msra.mxu0 0.0
          %3387 = vmatprep.subr.mxu0 0.0
          %3388 = vmatpush1.msra.mxu0 0.0
          %3389 = vmatprep.subr.mxu0 0.0
          %3390 = vmatpush1.msra.mxu0 0.0
          %3391 = vmatprep.subr.mxu0 0.0
          %3392 = vmatpush1.msra.mxu0 0.0
          %3393 = vmatprep.subr.mxu0 0.0
          %3394 = vmatpush1.msra.mxu0 0.0
          %3395 = vmatprep.subr.mxu0 0.0
          %3396 = vmatpush1.msra.mxu0 0.0
          %3397 = vmatprep.subr.mxu0 0.0
          %3398 = vmatpush1.msra.mxu0 0.0
          %3399 = vmatprep.subr.mxu0 0.0
          %3400 = vmatpush1.msra.mxu0 0.0
          %3401 = vmatprep.subr.mxu0 0.0
          %3402 = vmatpush1.msra.mxu0 0.0
          %3403 = vmatprep.subr.mxu0 0.0
          %3404 = vmatpush1.msra.mxu0 0.0
          %3405 = vmatprep.subr.mxu0 0.0
          %3406 = vmatpush1.msra.mxu0 0.0
          %3407 = vmatprep.subr.mxu0 0.0
          %v3408 = vand.u32 %v3123, 4294901760
          %3409 = vmatpush1.msra.mxu0 %v3408
          %3410 = vmatprep.subr.mxu0 0.0
          %v3411 = vand.u32 %v3122, 4294901760
          %3412 = vmatpush1.msra.mxu0 %v3411
          %3413 = vmatprep.subr.mxu0 0.0
          %v3414 = vand.u32 %v3121, 4294901760
          %3415 = vmatpush1.msra.mxu0 %v3414
          %3416 = vmatprep.subr.mxu0 0.0
          %v3417 = vand.u32 %v3120, 4294901760
          %3418 = vmatpush1.msra.mxu0 %v3417
          %3419 = vmatprep.subr.mxu0 0.0
          %3420 = vmatpush2.msra.mxu0 0.0
          %3421 = vmatprep.subr.mxu0 0.0
          %3422 = vmatpush2.msra.mxu0 0.0
          %3423 = vmatprep.subr.mxu0 0.0
          %3424 = vmatpush2.msra.mxu0 0.0
          %3425 = vmatprep.subr.mxu0 0.0
          %3426 = vmatpush2.msra.mxu0 0.0
          %3427 = vmatprep.subr.mxu0 0.0
          %3428 = vmatpush2.msra.mxu0 0.0
          %3429 = vmatprep.subr.mxu0 0.0
          %3430 = vmatpush2.msra.mxu0 0.0
          %3431 = vmatprep.subr.mxu0 0.0
          %3432 = vmatpush2.msra.mxu0 0.0
          %3433 = vmatprep.subr.mxu0 0.0
          %3434 = vmatpush2.msra.mxu0 0.0
          %3435 = vmatprep.subr.mxu0 0.0
          %3436 = vmatpush2.msra.mxu0 0.0
          %3437 = vmatprep.subr.mxu0 0.0
          %3438 = vmatpush2.msra.mxu0 0.0
          %3439 = vmatprep.subr.mxu0 0.0
          %3440 = vmatpush2.msra.mxu0 0.0
          %3441 = vmatprep.subr.mxu0 0.0
          %3442 = vmatpush2.msra.mxu0 0.0
          %3443 = vmatprep.subr.mxu0 0.0
          %3444 = vmatpush2.msra.mxu0 0.0
          %3445 = vmatprep.subr.mxu0 0.0
          %3446 = vmatpush2.msra.mxu0 0.0
          %3447 = vmatprep.subr.mxu0 0.0
          %3448 = vmatpush2.msra.mxu0 0.0
          %3449 = vmatprep.subr.mxu0 0.0
          %3450 = vmatpush2.msra.mxu0 0.0
          %3451 = vmatprep.mubr.f32.mxu0 0.0
          %v3452 = vand.u32 %v3131, 4294901760
          %v3453 = vsub.f32 %v3131, %v3452
          %v3454 = vand.u32 %v3453, 4294901760
          %3455 = vmatmul.mubr.f32.gmra.mxu0 %v3454
          %v3456 = vpop.f32.mrf.mxu0
          %v3457 = vadd.f32 %v3380, %v3456
          %v3458 = vpop.f32.mrf.mxu0
          %3459 = vdwg.mxu0
          %3460 = vmatprep.subr.mxu0 0.0
          %3461 = vmatpush1.msra.mxu0 0.0
          %3462 = vmatprep.subr.mxu0 0.0
          %3463 = vmatpush1.msra.mxu0 0.0
          %3464 = vmatprep.subr.mxu0 0.0
          %3465 = vmatpush1.msra.mxu0 0.0
          %3466 = vmatprep.subr.mxu0 0.0
          %3467 = vmatpush1.msra.mxu0 0.0
          %3468 = vmatprep.subr.mxu0 0.0
          %3469 = vmatpush1.msra.mxu0 0.0
          %3470 = vmatprep.subr.mxu0 0.0
          %3471 = vmatpush1.msra.mxu0 0.0
          %3472 = vmatprep.subr.mxu0 0.0
          %3473 = vmatpush1.msra.mxu0 0.0
          %3474 = vmatprep.subr.mxu0 0.0
          %3475 = vmatpush1.msra.mxu0 0.0
          %3476 = vmatprep.subr.mxu0 0.0
          %3477 = vmatpush1.msra.mxu0 0.0
          %3478 = vmatprep.subr.mxu0 0.0
          %3479 = vmatpush1.msra.mxu0 0.0
          %3480 = vmatprep.subr.mxu0 0.0
          %3481 = vmatpush1.msra.mxu0 0.0
          %3482 = vmatprep.subr.mxu0 0.0
          %3483 = vmatpush1.msra.mxu0 0.0
          %3484 = vmatprep.subr.mxu0 0.0
          %v3485 = vand.u32 %v3123, 4294901760
          %v3486 = vsub.f32 %v3123, %v3485
          %v3487 = vand.u32 %v3486, 4294901760
          %3488 = vmatpush1.msra.mxu0 %v3487
          %3489 = vmatprep.subr.mxu0 0.0
          %v3490 = vand.u32 %v3122, 4294901760
          %v3491 = vsub.f32 %v3122, %v3490
          %v3492 = vand.u32 %v3491, 4294901760
          %3493 = vmatpush1.msra.mxu0 %v3492
          %3494 = vmatprep.subr.mxu0 0.0
          %v3495 = vand.u32 %v3121, 4294901760
          %v3496 = vsub.f32 %v3121, %v3495
          %v3497 = vand.u32 %v3496, 4294901760
          %3498 = vmatpush1.msra.mxu0 %v3497
          %3499 = vmatprep.subr.mxu0 0.0
          %v3500 = vand.u32 %v3120, 4294901760
          %v3501 = vsub.f32 %v3120, %v3500
          %v3502 = vand.u32 %v3501, 4294901760
          %3503 = vmatpush1.msra.mxu0 %v3502
          %3504 = vmatprep.subr.mxu0 0.0
          %3505 = vmatpush2.msra.mxu0 0.0
          %3506 = vmatprep.subr.mxu0 0.0
          %3507 = vmatpush2.msra.mxu0 0.0
          %3508 = vmatprep.subr.mxu0 0.0
          %3509 = vmatpush2.msra.mxu0 0.0
          %3510 = vmatprep.subr.mxu0 0.0
          %3511 = vmatpush2.msra.mxu0 0.0
          %3512 = vmatprep.subr.mxu0 0.0
          %3513 = vmatpush2.msra.mxu0 0.0
          %3514 = vmatprep.subr.mxu0 0.0
          %3515 = vmatpush2.msra.mxu0 0.0
          %3516 = vmatprep.subr.mxu0 0.0
          %3517 = vmatpush2.msra.mxu0 0.0
          %3518 = vmatprep.subr.mxu0 0.0
          %3519 = vmatpush2.msra.mxu0 0.0
          %3520 = vmatprep.subr.mxu0 0.0
          %3521 = vmatpush2.msra.mxu0 0.0
          %3522 = vmatprep.subr.mxu0 0.0
          %3523 = vmatpush2.msra.mxu0 0.0
          %3524 = vmatprep.subr.mxu0 0.0
          %3525 = vmatpush2.msra.mxu0 0.0
          %3526 = vmatprep.subr.mxu0 0.0
          %3527 = vmatpush2.msra.mxu0 0.0
          %3528 = vmatprep.subr.mxu0 0.0
          %3529 = vmatpush2.msra.mxu0 0.0
          %3530 = vmatprep.subr.mxu0 0.0
          %3531 = vmatpush2.msra.mxu0 0.0
          %3532 = vmatprep.subr.mxu0 0.0
          %3533 = vmatpush2.msra.mxu0 0.0
          %3534 = vmatprep.subr.mxu0 0.0
          %3535 = vmatpush2.msra.mxu0 0.0
          %3536 = vmatprep.mubr.f32.mxu0 0.0
          %v3537 = vand.u32 %v3131, 4294901760
          %3538 = vmatmul.mubr.f32.gmra.mxu0 %v3537
          %v3539 = vpop.f32.mrf.mxu0
          %v3540 = vadd.f32 %v3457, %v3539
          %v3541 = vpop.f32.mrf.mxu0
          %3542 = vdwg.mxu0
          %3543 = vmatprep.subr.mxu0 0.0
          %3544 = vmatpush1.msra.mxu0 0.0
          %3545 = vmatprep.subr.mxu0 0.0
          %3546 = vmatpush1.msra.mxu0 0.0
          %3547 = vmatprep.subr.mxu0 0.0
          %3548 = vmatpush1.msra.mxu0 0.0
          %3549 = vmatprep.subr.mxu0 0.0
          %3550 = vmatpush1.msra.mxu0 0.0
          %3551 = vmatprep.subr.mxu0 0.0
          %3552 = vmatpush1.msra.mxu0 0.0
          %3553 = vmatprep.subr.mxu0 0.0
          %3554 = vmatpush1.msra.mxu0 0.0
          %3555 = vmatprep.subr.mxu0 0.0
          %3556 = vmatpush1.msra.mxu0 0.0
          %3557 = vmatprep.subr.mxu0 0.0
          %3558 = vmatpush1.msra.mxu0 0.0
          %3559 = vmatprep.subr.mxu0 0.0
          %3560 = vmatpush1.msra.mxu0 0.0
          %3561 = vmatprep.subr.mxu0 0.0
          %3562 = vmatpush1.msra.mxu0 0.0
          %3563 = vmatprep.subr.mxu0 0.0
          %3564 = vmatpush1.msra.mxu0 0.0
          %3565 = vmatprep.subr.mxu0 0.0
          %3566 = vmatpush1.msra.mxu0 0.0
          %3567 = vmatprep.subr.mxu0 0.0
          %v3568 = vand.u32 %v3123, 4294901760
          %3569 = vmatpush1.msra.mxu0 %v3568
          %3570 = vmatprep.subr.mxu0 0.0
          %v3571 = vand.u32 %v3122, 4294901760
          %3572 = vmatpush1.msra.mxu0 %v3571
          %3573 = vmatprep.subr.mxu0 0.0
          %v3574 = vand.u32 %v3121, 4294901760
          %3575 = vmatpush1.msra.mxu0 %v3574
          %3576 = vmatprep.subr.mxu0 0.0
          %v3577 = vand.u32 %v3120, 4294901760
          %3578 = vmatpush1.msra.mxu0 %v3577
          %3579 = vmatprep.subr.mxu0 0.0
          %3580 = vmatpush2.msra.mxu0 0.0
          %3581 = vmatprep.subr.mxu0 0.0
          %3582 = vmatpush2.msra.mxu0 0.0
          %3583 = vmatprep.subr.mxu0 0.0
          %3584 = vmatpush2.msra.mxu0 0.0
          %3585 = vmatprep.subr.mxu0 0.0
          %3586 = vmatpush2.msra.mxu0 0.0
          %3587 = vmatprep.subr.mxu0 0.0
          %3588 = vmatpush2.msra.mxu0 0.0
          %3589 = vmatprep.subr.mxu0 0.0
          %3590 = vmatpush2.msra.mxu0 0.0
          %3591 = vmatprep.subr.mxu0 0.0
          %3592 = vmatpush2.msra.mxu0 0.0
          %3593 = vmatprep.subr.mxu0 0.0
          %3594 = vmatpush2.msra.mxu0 0.0
          %3595 = vmatprep.subr.mxu0 0.0
          %3596 = vmatpush2.msra.mxu0 0.0
          %3597 = vmatprep.subr.mxu0 0.0
          %3598 = vmatpush2.msra.mxu0 0.0
          %3599 = vmatprep.subr.mxu0 0.0
          %3600 = vmatpush2.msra.mxu0 0.0
          %3601 = vmatprep.subr.mxu0 0.0
          %3602 = vmatpush2.msra.mxu0 0.0
          %3603 = vmatprep.subr.mxu0 0.0
          %3604 = vmatpush2.msra.mxu0 0.0
          %3605 = vmatprep.subr.mxu0 0.0
          %3606 = vmatpush2.msra.mxu0 0.0
          %3607 = vmatprep.subr.mxu0 0.0
          %3608 = vmatpush2.msra.mxu0 0.0
          %3609 = vmatprep.subr.mxu0 0.0
          %3610 = vmatpush2.msra.mxu0 0.0
          %3611 = vmatprep.mubr.f32.mxu0 0.0
          %v3612 = vand.u32 %v3131, 4294901760
          %3613 = vmatmul.mubr.f32.gmra.mxu0 %v3612
          %v3614 = vpop.f32.mrf.mxu0
          %v3615 = vadd.f32 %v3540, %v3614
          %v3616 = vpop.f32.mrf.mxu0
          %3617 = vdwg.mxu0
          %v3618 = vld [vmem:[#allocation2] sm:$0x1]
          %v3619 = vlaneseq
          %v3620 = vshrl.u32 %v3619, 7
          %v3621 = vsub.s32 0, %v3620
          %v3622 = vrot.slane %v3618, %v3621
          %v3623 = vmul.f32 %v3615, %v3622
          %v3624 = vld [vmem:[#allocation2 + $0x1] sm:$0x1]
          %v3625 = vlaneseq
          %v3626 = vshrl.u32 %v3625, 7
          %v3627 = vsub.s32 0, %v3626
          %v3628 = vrot.slane %v3624, %v3627
          %v3629 = vadd.f32 %v3623, %v3628
          %vm3630 = vcmp.ge.f32.partialorder %v3629, 0.0
          %v3631 = vmul.f32 %v3629, 0.01
          %v3632 = vsel %vm3630, %v3629, %v3631
          %v3633 = vld [vmem:[%s3] sm:$0xff]
          %v3634 = vld [vmem:[%s3 + $0x8] sm:$0xff]
          %v3635 = vld [vmem:[%s3 + $0x10] sm:$0xff]
          %v3636 = vld [vmem:[%s3 + $0x18] sm:$0xff]
          %v3637 = vld [vmem:[%s3 + $0x20] sm:$0xff]
          %v3638 = vld [vmem:[%s3 + $0x28] sm:$0xff]
          %v3639 = vld [vmem:[%s3 + $0x30] sm:$0xff]
          %v3640 = vld [vmem:[%s3 + $0x38] sm:$0xff]
          %v3641 = vld [vmem:[%s6 + $0x3] sm:$0x1]
          %v3642 = vlaneseq
          %v3643 = vshrl.u32 %v3642, 7
          %v3644 = vsub.s32 0, %v3643
          %v3645 = vrot.slane %v3641, %v3644
          %vm3646 = vcmask 523264
          %v3648 = vsel %vm3646, %v3632, 0
          %3650 = vmatprep.subr.mxu0 0.0
          %3651 = vmatpush1.msra.mxu0 0.0
          %3652 = vmatprep.subr.mxu0 0.0
          %3653 = vmatpush1.msra.mxu0 0.0
          %3654 = vmatprep.subr.mxu0 0.0
          %3655 = vmatpush1.msra.mxu0 0.0
          %3656 = vmatprep.subr.mxu0 0.0
          %3657 = vmatpush1.msra.mxu0 0.0
          %3658 = vmatprep.subr.mxu0 0.0
          %3659 = vmatpush1.msra.mxu0 0.0
          %3660 = vmatprep.subr.mxu0 0.0
          %3661 = vmatpush1.msra.mxu0 0.0
          %3662 = vmatprep.subr.mxu0 0.0
          %3663 = vmatpush1.msra.mxu0 0.0
          %3664 = vmatprep.subr.mxu0 0.0
          %3665 = vmatpush1.msra.mxu0 0.0
          %3666 = vmatprep.subr.mxu0 0.0
          %v3667 = vand.u32 %v3640, 4294901760
          %3668 = vmatpush1.msra.mxu0 %v3667
          %3669 = vmatprep.subr.mxu0 0.0
          %v3670 = vand.u32 %v3639, 4294901760
          %3671 = vmatpush1.msra.mxu0 %v3670
          %3672 = vmatprep.subr.mxu0 0.0
          %v3673 = vand.u32 %v3638, 4294901760
          %3674 = vmatpush1.msra.mxu0 %v3673
          %3675 = vmatprep.subr.mxu0 0.0
          %v3676 = vand.u32 %v3637, 4294901760
          %3677 = vmatpush1.msra.mxu0 %v3676
          %3678 = vmatprep.subr.mxu0 0.0
          %v3679 = vand.u32 %v3636, 4294901760
          %3680 = vmatpush1.msra.mxu0 %v3679
          %3681 = vmatprep.subr.mxu0 0.0
          %v3682 = vand.u32 %v3635, 4294901760
          %3683 = vmatpush1.msra.mxu0 %v3682
          %3684 = vmatprep.subr.mxu0 0.0
          %v3685 = vand.u32 %v3634, 4294901760
          %3686 = vmatpush1.msra.mxu0 %v3685
          %3687 = vmatprep.subr.mxu0 0.0
          %v3688 = vand.u32 %v3633, 4294901760
          %3689 = vmatpush1.msra.mxu0 %v3688
          %3690 = vmatprep.subr.mxu0 0.0
          %3691 = vmatpush2.msra.mxu0 0.0
          %3692 = vmatprep.subr.mxu0 0.0
          %3693 = vmatpush2.msra.mxu0 0.0
          %3694 = vmatprep.subr.mxu0 0.0
          %3695 = vmatpush2.msra.mxu0 0.0
          %3696 = vmatprep.subr.mxu0 0.0
          %3697 = vmatpush2.msra.mxu0 0.0
          %3698 = vmatprep.subr.mxu0 0.0
          %3699 = vmatpush2.msra.mxu0 0.0
          %3700 = vmatprep.subr.mxu0 0.0
          %3701 = vmatpush2.msra.mxu0 0.0
          %3702 = vmatprep.subr.mxu0 0.0
          %3703 = vmatpush2.msra.mxu0 0.0
          %3704 = vmatprep.subr.mxu0 0.0
          %3705 = vmatpush2.msra.mxu0 0.0
          %3706 = vmatprep.subr.mxu0 0.0
          %3707 = vmatpush2.msra.mxu0 0.0
          %3708 = vmatprep.subr.mxu0 0.0
          %3709 = vmatpush2.msra.mxu0 0.0
          %3710 = vmatprep.subr.mxu0 0.0
          %3711 = vmatpush2.msra.mxu0 0.0
          %3712 = vmatprep.subr.mxu0 0.0
          %3713 = vmatpush2.msra.mxu0 0.0
          %3714 = vmatprep.subr.mxu0 0.0
          %3715 = vmatpush2.msra.mxu0 0.0
          %3716 = vmatprep.subr.mxu0 0.0
          %3717 = vmatpush2.msra.mxu0 0.0
          %3718 = vmatprep.subr.mxu0 0.0
          %3719 = vmatpush2.msra.mxu0 0.0
          %3720 = vmatprep.subr.mxu0 0.0
          %3721 = vmatpush2.msra.mxu0 0.0
          %3722 = vmatprep.mubr.f32.mxu0 0.0
          %v3723 = vand.u32 %v3648, 4294901760
          %v3724 = vsub.f32 %v3648, %v3723
          %v3725 = vand.u32 %v3724, 4294901760
          %v3726 = vsub.f32 %v3724, %v3725
          %v3727 = vand.u32 %v3726, 4294901760
          %3728 = vmatmul.mubr.f32.gmra.mxu0 %v3727
          %v3729 = vpop.f32.mrf.mxu0
          %v3730 = vadd.f32 %v3645, %v3729
          %v3731 = vpop.f32.mrf.mxu0
          %3732 = vdwg.mxu0
          %3733 = vmatprep.subr.mxu0 0.0
          %3734 = vmatpush1.msra.mxu0 0.0
          %3735 = vmatprep.subr.mxu0 0.0
          %3736 = vmatpush1.msra.mxu0 0.0
          %3737 = vmatprep.subr.mxu0 0.0
          %3738 = vmatpush1.msra.mxu0 0.0
          %3739 = vmatprep.subr.mxu0 0.0
          %3740 = vmatpush1.msra.mxu0 0.0
          %3741 = vmatprep.subr.mxu0 0.0
          %3742 = vmatpush1.msra.mxu0 0.0
          %3743 = vmatprep.subr.mxu0 0.0
          %3744 = vmatpush1.msra.mxu0 0.0
          %3745 = vmatprep.subr.mxu0 0.0
          %3746 = vmatpush1.msra.mxu0 0.0
          %3747 = vmatprep.subr.mxu0 0.0
          %3748 = vmatpush1.msra.mxu0 0.0
          %3749 = vmatprep.subr.mxu0 0.0
          %v3750 = vand.u32 %v3640, 4294901760
          %v3751 = vsub.f32 %v3640, %v3750
          %v3752 = vand.u32 %v3751, 4294901760
          %v3753 = vsub.f32 %v3751, %v3752
          %v3754 = vand.u32 %v3753, 4294901760
          %3755 = vmatpush1.msra.mxu0 %v3754
          %3756 = vmatprep.subr.mxu0 0.0
          %v3757 = vand.u32 %v3639, 4294901760
          %v3758 = vsub.f32 %v3639, %v3757
          %v3759 = vand.u32 %v3758, 4294901760
          %v3760 = vsub.f32 %v3758, %v3759
          %v3761 = vand.u32 %v3760, 4294901760
          %3762 = vmatpush1.msra.mxu0 %v3761
          %3763 = vmatprep.subr.mxu0 0.0
          %v3764 = vand.u32 %v3638, 4294901760
          %v3765 = vsub.f32 %v3638, %v3764
          %v3766 = vand.u32 %v3765, 4294901760
          %v3767 = vsub.f32 %v3765, %v3766
          %v3768 = vand.u32 %v3767, 4294901760
          %3769 = vmatpush1.msra.mxu0 %v3768
          %3770 = vmatprep.subr.mxu0 0.0
          %v3771 = vand.u32 %v3637, 4294901760
          %v3772 = vsub.f32 %v3637, %v3771
          %v3773 = vand.u32 %v3772, 4294901760
          %v3774 = vsub.f32 %v3772, %v3773
          %v3775 = vand.u32 %v3774, 4294901760
          %3776 = vmatpush1.msra.mxu0 %v3775
          %3777 = vmatprep.subr.mxu0 0.0
          %v3778 = vand.u32 %v3636, 4294901760
          %v3779 = vsub.f32 %v3636, %v3778
          %v3780 = vand.u32 %v3779, 4294901760
          %v3781 = vsub.f32 %v3779, %v3780
          %v3782 = vand.u32 %v3781, 4294901760
          %3783 = vmatpush1.msra.mxu0 %v3782
          %3784 = vmatprep.subr.mxu0 0.0
          %v3785 = vand.u32 %v3635, 4294901760
          %v3786 = vsub.f32 %v3635, %v3785
          %v3787 = vand.u32 %v3786, 4294901760
          %v3788 = vsub.f32 %v3786, %v3787
          %v3789 = vand.u32 %v3788, 4294901760
          %3790 = vmatpush1.msra.mxu0 %v3789
          %3791 = vmatprep.subr.mxu0 0.0
          %v3792 = vand.u32 %v3634, 4294901760
          %v3793 = vsub.f32 %v3634, %v3792
          %v3794 = vand.u32 %v3793, 4294901760
          %v3795 = vsub.f32 %v3793, %v3794
          %v3796 = vand.u32 %v3795, 4294901760
          %3797 = vmatpush1.msra.mxu0 %v3796
          %3798 = vmatprep.subr.mxu0 0.0
          %v3799 = vand.u32 %v3633, 4294901760
          %v3800 = vsub.f32 %v3633, %v3799
          %v3801 = vand.u32 %v3800, 4294901760
          %v3802 = vsub.f32 %v3800, %v3801
          %v3803 = vand.u32 %v3802, 4294901760
          %3804 = vmatpush1.msra.mxu0 %v3803
          %3805 = vmatprep.subr.mxu0 0.0
          %3806 = vmatpush2.msra.mxu0 0.0
          %3807 = vmatprep.subr.mxu0 0.0
          %3808 = vmatpush2.msra.mxu0 0.0
          %3809 = vmatprep.subr.mxu0 0.0
          %3810 = vmatpush2.msra.mxu0 0.0
          %3811 = vmatprep.subr.mxu0 0.0
          %3812 = vmatpush2.msra.mxu0 0.0
          %3813 = vmatprep.subr.mxu0 0.0
          %3814 = vmatpush2.msra.mxu0 0.0
          %3815 = vmatprep.subr.mxu0 0.0
          %3816 = vmatpush2.msra.mxu0 0.0
          %3817 = vmatprep.subr.mxu0 0.0
          %3818 = vmatpush2.msra.mxu0 0.0
          %3819 = vmatprep.subr.mxu0 0.0
          %3820 = vmatpush2.msra.mxu0 0.0
          %3821 = vmatprep.subr.mxu0 0.0
          %3822 = vmatpush2.msra.mxu0 0.0
          %3823 = vmatprep.subr.mxu0 0.0
          %3824 = vmatpush2.msra.mxu0 0.0
          %3825 = vmatprep.subr.mxu0 0.0
          %3826 = vmatpush2.msra.mxu0 0.0
          %3827 = vmatprep.subr.mxu0 0.0
          %3828 = vmatpush2.msra.mxu0 0.0
          %3829 = vmatprep.subr.mxu0 0.0
          %3830 = vmatpush2.msra.mxu0 0.0
          %3831 = vmatprep.subr.mxu0 0.0
          %3832 = vmatpush2.msra.mxu0 0.0
          %3833 = vmatprep.subr.mxu0 0.0
          %3834 = vmatpush2.msra.mxu0 0.0
          %3835 = vmatprep.subr.mxu0 0.0
          %3836 = vmatpush2.msra.mxu0 0.0
          %3837 = vmatprep.mubr.f32.mxu0 0.0
          %v3838 = vand.u32 %v3648, 4294901760
          %3839 = vmatmul.mubr.f32.gmra.mxu0 %v3838
          %v3840 = vpop.f32.mrf.mxu0
          %v3841 = vadd.f32 %v3730, %v3840
          %v3842 = vpop.f32.mrf.mxu0
          %3843 = vdwg.mxu0
          %3844 = vmatprep.subr.mxu0 0.0
          %3845 = vmatpush1.msra.mxu0 0.0
          %3846 = vmatprep.subr.mxu0 0.0
          %3847 = vmatpush1.msra.mxu0 0.0
          %3848 = vmatprep.subr.mxu0 0.0
          %3849 = vmatpush1.msra.mxu0 0.0
          %3850 = vmatprep.subr.mxu0 0.0
          %3851 = vmatpush1.msra.mxu0 0.0
          %3852 = vmatprep.subr.mxu0 0.0
          %3853 = vmatpush1.msra.mxu0 0.0
          %3854 = vmatprep.subr.mxu0 0.0
          %3855 = vmatpush1.msra.mxu0 0.0
          %3856 = vmatprep.subr.mxu0 0.0
          %3857 = vmatpush1.msra.mxu0 0.0
          %3858 = vmatprep.subr.mxu0 0.0
          %3859 = vmatpush1.msra.mxu0 0.0
          %3860 = vmatprep.subr.mxu0 0.0
          %v3861 = vand.u32 %v3640, 4294901760
          %v3862 = vsub.f32 %v3640, %v3861
          %3863 = vmatpush1.msra.mxu0 %v3862
          %3864 = vmatprep.subr.mxu0 0.0
          %v3865 = vand.u32 %v3639, 4294901760
          %v3866 = vsub.f32 %v3639, %v3865
          %3867 = vmatpush1.msra.mxu0 %v3866
          %3868 = vmatprep.subr.mxu0 0.0
          %v3869 = vand.u32 %v3638, 4294901760
          %v3870 = vsub.f32 %v3638, %v3869
          %3871 = vmatpush1.msra.mxu0 %v3870
          %3872 = vmatprep.subr.mxu0 0.0
          %v3873 = vand.u32 %v3637, 4294901760
          %v3874 = vsub.f32 %v3637, %v3873
          %3875 = vmatpush1.msra.mxu0 %v3874
          %3876 = vmatprep.subr.mxu0 0.0
          %v3877 = vand.u32 %v3636, 4294901760
          %v3878 = vsub.f32 %v3636, %v3877
          %3879 = vmatpush1.msra.mxu0 %v3878
          %3880 = vmatprep.subr.mxu0 0.0
          %v3881 = vand.u32 %v3635, 4294901760
          %v3882 = vsub.f32 %v3635, %v3881
          %3883 = vmatpush1.msra.mxu0 %v3882
          %3884 = vmatprep.subr.mxu0 0.0
          %v3885 = vand.u32 %v3634, 4294901760
          %v3886 = vsub.f32 %v3634, %v3885
          %3887 = vmatpush1.msra.mxu0 %v3886
          %3888 = vmatprep.subr.mxu0 0.0
          %v3889 = vand.u32 %v3633, 4294901760
          %v3890 = vsub.f32 %v3633, %v3889
          %3891 = vmatpush1.msra.mxu0 %v3890
          %3892 = vmatprep.subr.mxu0 0.0
          %3893 = vmatpush2.msra.mxu0 0.0
          %3894 = vmatprep.subr.mxu0 0.0
          %3895 = vmatpush2.msra.mxu0 0.0
          %3896 = vmatprep.subr.mxu0 0.0
          %3897 = vmatpush2.msra.mxu0 0.0
          %3898 = vmatprep.subr.mxu0 0.0
          %3899 = vmatpush2.msra.mxu0 0.0
          %3900 = vmatprep.subr.mxu0 0.0
          %3901 = vmatpush2.msra.mxu0 0.0
          %3902 = vmatprep.subr.mxu0 0.0
          %3903 = vmatpush2.msra.mxu0 0.0
          %3904 = vmatprep.subr.mxu0 0.0
          %3905 = vmatpush2.msra.mxu0 0.0
          %3906 = vmatprep.subr.mxu0 0.0
          %3907 = vmatpush2.msra.mxu0 0.0
          %3908 = vmatprep.subr.mxu0 0.0
          %3909 = vmatpush2.msra.mxu0 0.0
          %3910 = vmatprep.subr.mxu0 0.0
          %3911 = vmatpush2.msra.mxu0 0.0
          %3912 = vmatprep.subr.mxu0 0.0
          %3913 = vmatpush2.msra.mxu0 0.0
          %3914 = vmatprep.subr.mxu0 0.0
          %3915 = vmatpush2.msra.mxu0 0.0
          %3916 = vmatprep.subr.mxu0 0.0
          %3917 = vmatpush2.msra.mxu0 0.0
          %3918 = vmatprep.subr.mxu0 0.0
          %3919 = vmatpush2.msra.mxu0 0.0
          %3920 = vmatprep.subr.mxu0 0.0
          %3921 = vmatpush2.msra.mxu0 0.0
          %3922 = vmatprep.subr.mxu0 0.0
          %3923 = vmatpush2.msra.mxu0 0.0
          %3924 = vmatprep.mubr.f32.mxu0 0.0
          %v3925 = vand.u32 %v3648, 4294901760
          %v3926 = vsub.f32 %v3648, %v3925
          %3927 = vmatmul.mubr.f32.gmra.mxu0 %v3926
          %v3928 = vpop.f32.mrf.mxu0
          %v3929 = vadd.f32 %v3841, %v3928
          %v3930 = vpop.f32.mrf.mxu0
          %3931 = vdwg.mxu0
          %3932 = vmatprep.subr.mxu0 0.0
          %3933 = vmatpush1.msra.mxu0 0.0
          %3934 = vmatprep.subr.mxu0 0.0
          %3935 = vmatpush1.msra.mxu0 0.0
          %3936 = vmatprep.subr.mxu0 0.0
          %3937 = vmatpush1.msra.mxu0 0.0
          %3938 = vmatprep.subr.mxu0 0.0
          %3939 = vmatpush1.msra.mxu0 0.0
          %3940 = vmatprep.subr.mxu0 0.0
          %3941 = vmatpush1.msra.mxu0 0.0
          %3942 = vmatprep.subr.mxu0 0.0
          %3943 = vmatpush1.msra.mxu0 0.0
          %3944 = vmatprep.subr.mxu0 0.0
          %3945 = vmatpush1.msra.mxu0 0.0
          %3946 = vmatprep.subr.mxu0 0.0
          %3947 = vmatpush1.msra.mxu0 0.0
          %3948 = vmatprep.subr.mxu0 0.0
          %v3949 = vand.u32 %v3640, 4294901760
          %3950 = vmatpush1.msra.mxu0 %v3949
          %3951 = vmatprep.subr.mxu0 0.0
          %v3952 = vand.u32 %v3639, 4294901760
          %3953 = vmatpush1.msra.mxu0 %v3952
          %3954 = vmatprep.subr.mxu0 0.0
          %v3955 = vand.u32 %v3638, 4294901760
          %3956 = vmatpush1.msra.mxu0 %v3955
          %3957 = vmatprep.subr.mxu0 0.0
          %v3958 = vand.u32 %v3637, 4294901760
          %3959 = vmatpush1.msra.mxu0 %v3958
          %3960 = vmatprep.subr.mxu0 0.0
          %v3961 = vand.u32 %v3636, 4294901760
          %3962 = vmatpush1.msra.mxu0 %v3961
          %3963 = vmatprep.subr.mxu0 0.0
          %v3964 = vand.u32 %v3635, 4294901760
          %3965 = vmatpush1.msra.mxu0 %v3964
          %3966 = vmatprep.subr.mxu0 0.0
          %v3967 = vand.u32 %v3634, 4294901760
          %3968 = vmatpush1.msra.mxu0 %v3967
          %3969 = vmatprep.subr.mxu0 0.0
          %v3970 = vand.u32 %v3633, 4294901760
          %3971 = vmatpush1.msra.mxu0 %v3970
          %3972 = vmatprep.subr.mxu0 0.0
          %3973 = vmatpush2.msra.mxu0 0.0
          %3974 = vmatprep.subr.mxu0 0.0
          %3975 = vmatpush2.msra.mxu0 0.0
          %3976 = vmatprep.subr.mxu0 0.0
          %3977 = vmatpush2.msra.mxu0 0.0
          %3978 = vmatprep.subr.mxu0 0.0
          %3979 = vmatpush2.msra.mxu0 0.0
          %3980 = vmatprep.subr.mxu0 0.0
          %3981 = vmatpush2.msra.mxu0 0.0
          %3982 = vmatprep.subr.mxu0 0.0
          %3983 = vmatpush2.msra.mxu0 0.0
          %3984 = vmatprep.subr.mxu0 0.0
          %3985 = vmatpush2.msra.mxu0 0.0
          %3986 = vmatprep.subr.mxu0 0.0
          %3987 = vmatpush2.msra.mxu0 0.0
          %3988 = vmatprep.subr.mxu0 0.0
          %3989 = vmatpush2.msra.mxu0 0.0
          %3990 = vmatprep.subr.mxu0 0.0
          %3991 = vmatpush2.msra.mxu0 0.0
          %3992 = vmatprep.subr.mxu0 0.0
          %3993 = vmatpush2.msra.mxu0 0.0
          %3994 = vmatprep.subr.mxu0 0.0
          %3995 = vmatpush2.msra.mxu0 0.0
          %3996 = vmatprep.subr.mxu0 0.0
          %3997 = vmatpush2.msra.mxu0 0.0
          %3998 = vmatprep.subr.mxu0 0.0
          %3999 = vmatpush2.msra.mxu0 0.0
          %4000 = vmatprep.subr.mxu0 0.0
          %4001 = vmatpush2.msra.mxu0 0.0
          %4002 = vmatprep.subr.mxu0 0.0
          %4003 = vmatpush2.msra.mxu0 0.0
          %4004 = vmatprep.mubr.f32.mxu0 0.0
          %v4005 = vand.u32 %v3648, 4294901760
          %v4006 = vsub.f32 %v3648, %v4005
          %v4007 = vand.u32 %v4006, 4294901760
          %4008 = vmatmul.mubr.f32.gmra.mxu0 %v4007
          %v4009 = vpop.f32.mrf.mxu0
          %v4010 = vadd.f32 %v3929, %v4009
          %v4011 = vpop.f32.mrf.mxu0
          %4012 = vdwg.mxu0
          %4013 = vmatprep.subr.mxu0 0.0
          %4014 = vmatpush1.msra.mxu0 0.0
          %4015 = vmatprep.subr.mxu0 0.0
          %4016 = vmatpush1.msra.mxu0 0.0
          %4017 = vmatprep.subr.mxu0 0.0
          %4018 = vmatpush1.msra.mxu0 0.0
          %4019 = vmatprep.subr.mxu0 0.0
          %4020 = vmatpush1.msra.mxu0 0.0
          %4021 = vmatprep.subr.mxu0 0.0
          %4022 = vmatpush1.msra.mxu0 0.0
          %4023 = vmatprep.subr.mxu0 0.0
          %4024 = vmatpush1.msra.mxu0 0.0
          %4025 = vmatprep.subr.mxu0 0.0
          %4026 = vmatpush1.msra.mxu0 0.0
          %4027 = vmatprep.subr.mxu0 0.0
          %4028 = vmatpush1.msra.mxu0 0.0
          %4029 = vmatprep.subr.mxu0 0.0
          %v4030 = vand.u32 %v3640, 4294901760
          %v4031 = vsub.f32 %v3640, %v4030
          %v4032 = vand.u32 %v4031, 4294901760
          %4033 = vmatpush1.msra.mxu0 %v4032
          %4034 = vmatprep.subr.mxu0 0.0
          %v4035 = vand.u32 %v3639, 4294901760
          %v4036 = vsub.f32 %v3639, %v4035
          %v4037 = vand.u32 %v4036, 4294901760
          %4038 = vmatpush1.msra.mxu0 %v4037
          %4039 = vmatprep.subr.mxu0 0.0
          %v4040 = vand.u32 %v3638, 4294901760
          %v4041 = vsub.f32 %v3638, %v4040
          %v4042 = vand.u32 %v4041, 4294901760
          %4043 = vmatpush1.msra.mxu0 %v4042
          %4044 = vmatprep.subr.mxu0 0.0
          %v4045 = vand.u32 %v3637, 4294901760
          %v4046 = vsub.f32 %v3637, %v4045
          %v4047 = vand.u32 %v4046, 4294901760
          %4048 = vmatpush1.msra.mxu0 %v4047
          %4049 = vmatprep.subr.mxu0 0.0
          %v4050 = vand.u32 %v3636, 4294901760
          %v4051 = vsub.f32 %v3636, %v4050
          %v4052 = vand.u32 %v4051, 4294901760
          %4053 = vmatpush1.msra.mxu0 %v4052
          %4054 = vmatprep.subr.mxu0 0.0
          %v4055 = vand.u32 %v3635, 4294901760
          %v4056 = vsub.f32 %v3635, %v4055
          %v4057 = vand.u32 %v4056, 4294901760
          %4058 = vmatpush1.msra.mxu0 %v4057
          %4059 = vmatprep.subr.mxu0 0.0
          %v4060 = vand.u32 %v3634, 4294901760
          %v4061 = vsub.f32 %v3634, %v4060
          %v4062 = vand.u32 %v4061, 4294901760
          %4063 = vmatpush1.msra.mxu0 %v4062
          %4064 = vmatprep.subr.mxu0 0.0
          %v4065 = vand.u32 %v3633, 4294901760
          %v4066 = vsub.f32 %v3633, %v4065
          %v4067 = vand.u32 %v4066, 4294901760
          %4068 = vmatpush1.msra.mxu0 %v4067
          %4069 = vmatprep.subr.mxu0 0.0
          %4070 = vmatpush2.msra.mxu0 0.0
          %4071 = vmatprep.subr.mxu0 0.0
          %4072 = vmatpush2.msra.mxu0 0.0
          %4073 = vmatprep.subr.mxu0 0.0
          %4074 = vmatpush2.msra.mxu0 0.0
          %4075 = vmatprep.subr.mxu0 0.0
          %4076 = vmatpush2.msra.mxu0 0.0
          %4077 = vmatprep.subr.mxu0 0.0
          %4078 = vmatpush2.msra.mxu0 0.0
          %4079 = vmatprep.subr.mxu0 0.0
          %4080 = vmatpush2.msra.mxu0 0.0
          %4081 = vmatprep.subr.mxu0 0.0
          %4082 = vmatpush2.msra.mxu0 0.0
          %4083 = vmatprep.subr.mxu0 0.0
          %4084 = vmatpush2.msra.mxu0 0.0
          %4085 = vmatprep.subr.mxu0 0.0
          %4086 = vmatpush2.msra.mxu0 0.0
          %4087 = vmatprep.subr.mxu0 0.0
          %4088 = vmatpush2.msra.mxu0 0.0
          %4089 = vmatprep.subr.mxu0 0.0
          %4090 = vmatpush2.msra.mxu0 0.0
          %4091 = vmatprep.subr.mxu0 0.0
          %4092 = vmatpush2.msra.mxu0 0.0
          %4093 = vmatprep.subr.mxu0 0.0
          %4094 = vmatpush2.msra.mxu0 0.0
          %4095 = vmatprep.subr.mxu0 0.0
          %4096 = vmatpush2.msra.mxu0 0.0
          %4097 = vmatprep.subr.mxu0 0.0
          %4098 = vmatpush2.msra.mxu0 0.0
          %4099 = vmatprep.subr.mxu0 0.0
          %4100 = vmatpush2.msra.mxu0 0.0
          %4101 = vmatprep.mubr.f32.mxu0 0.0
          %v4102 = vand.u32 %v3648, 4294901760
          %4103 = vmatmul.mubr.f32.gmra.mxu0 %v4102
          %v4104 = vpop.f32.mrf.mxu0
          %v4105 = vadd.f32 %v4010, %v4104
          %v4106 = vpop.f32.mrf.mxu0
          %4107 = vdwg.mxu0
          %4108 = vmatprep.subr.mxu0 0.0
          %4109 = vmatpush1.msra.mxu0 0.0
          %4110 = vmatprep.subr.mxu0 0.0
          %4111 = vmatpush1.msra.mxu0 0.0
          %4112 = vmatprep.subr.mxu0 0.0
          %4113 = vmatpush1.msra.mxu0 0.0
          %4114 = vmatprep.subr.mxu0 0.0
          %4115 = vmatpush1.msra.mxu0 0.0
          %4116 = vmatprep.subr.mxu0 0.0
          %4117 = vmatpush1.msra.mxu0 0.0
          %4118 = vmatprep.subr.mxu0 0.0
          %4119 = vmatpush1.msra.mxu0 0.0
          %4120 = vmatprep.subr.mxu0 0.0
          %4121 = vmatpush1.msra.mxu0 0.0
          %4122 = vmatprep.subr.mxu0 0.0
          %4123 = vmatpush1.msra.mxu0 0.0
          %4124 = vmatprep.subr.mxu0 0.0
          %v4125 = vand.u32 %v3640, 4294901760
          %4126 = vmatpush1.msra.mxu0 %v4125
          %4127 = vmatprep.subr.mxu0 0.0
          %v4128 = vand.u32 %v3639, 4294901760
          %4129 = vmatpush1.msra.mxu0 %v4128
          %4130 = vmatprep.subr.mxu0 0.0
          %v4131 = vand.u32 %v3638, 4294901760
          %4132 = vmatpush1.msra.mxu0 %v4131
          %4133 = vmatprep.subr.mxu0 0.0
          %v4134 = vand.u32 %v3637, 4294901760
          %4135 = vmatpush1.msra.mxu0 %v4134
          %4136 = vmatprep.subr.mxu0 0.0
          %v4137 = vand.u32 %v3636, 4294901760
          %4138 = vmatpush1.msra.mxu0 %v4137
          %4139 = vmatprep.subr.mxu0 0.0
          %v4140 = vand.u32 %v3635, 4294901760
          %4141 = vmatpush1.msra.mxu0 %v4140
          %4142 = vmatprep.subr.mxu0 0.0
          %v4143 = vand.u32 %v3634, 4294901760
          %4144 = vmatpush1.msra.mxu0 %v4143
          %4145 = vmatprep.subr.mxu0 0.0
          %v4146 = vand.u32 %v3633, 4294901760
          %4147 = vmatpush1.msra.mxu0 %v4146
          %4148 = vmatprep.subr.mxu0 0.0
          %4149 = vmatpush2.msra.mxu0 0.0
          %4150 = vmatprep.subr.mxu0 0.0
          %4151 = vmatpush2.msra.mxu0 0.0
          %4152 = vmatprep.subr.mxu0 0.0
          %4153 = vmatpush2.msra.mxu0 0.0
          %4154 = vmatprep.subr.mxu0 0.0
          %4155 = vmatpush2.msra.mxu0 0.0
          %4156 = vmatprep.subr.mxu0 0.0
          %4157 = vmatpush2.msra.mxu0 0.0
          %4158 = vmatprep.subr.mxu0 0.0
          %4159 = vmatpush2.msra.mxu0 0.0
          %4160 = vmatprep.subr.mxu0 0.0
          %4161 = vmatpush2.msra.mxu0 0.0
          %4162 = vmatprep.subr.mxu0 0.0
          %4163 = vmatpush2.msra.mxu0 0.0
          %4164 = vmatprep.subr.mxu0 0.0
          %4165 = vmatpush2.msra.mxu0 0.0
          %4166 = vmatprep.subr.mxu0 0.0
          %4167 = vmatpush2.msra.mxu0 0.0
          %4168 = vmatprep.subr.mxu0 0.0
          %4169 = vmatpush2.msra.mxu0 0.0
          %4170 = vmatprep.subr.mxu0 0.0
          %4171 = vmatpush2.msra.mxu0 0.0
          %4172 = vmatprep.subr.mxu0 0.0
          %4173 = vmatpush2.msra.mxu0 0.0
          %4174 = vmatprep.subr.mxu0 0.0
          %4175 = vmatpush2.msra.mxu0 0.0
          %4176 = vmatprep.subr.mxu0 0.0
          %4177 = vmatpush2.msra.mxu0 0.0
          %4178 = vmatprep.subr.mxu0 0.0
          %4179 = vmatpush2.msra.mxu0 0.0
          %4180 = vmatprep.mubr.f32.mxu0 0.0
          %v4181 = vand.u32 %v3648, 4294901760
          %4182 = vmatmul.mubr.f32.gmra.mxu0 %v4181
          %v4183 = vpop.f32.mrf.mxu0
          %v4184 = vadd.f32 %v4105, %v4183
          %v4185 = vpop.f32.mrf.mxu0
          %4186 = vdwg.mxu0
          %v4187 = vmul.f32 %v4184, 0.5
          %v4188 = vmul.f32 %v4187, 1.442695
          %v4189 = vpow.pop %v4188
          %v4190 = vld [vmem:[%s411] sm:$0xff]
          %4192 = vrot.lane.b32.xlu0 %v4189, 112
          %v4193 = vpop.permute.xlu0 %4192
          %v4195 = vmul.f32 %v4190, %v4193
          %v4196 = vadd.f32 %v4195, %v4184
          %4198 = vrot.lane.b32.xlu0 %v4184, 16
          %v4199 = vpop.permute.xlu0 %4198
          %v4201 = vadd.f32 %v4189, %v4199
          %v4202 = vld [vmem:[%s4] sm:$0xff]
          %v4203 = vld [vmem:[%s4 + $0x8] sm:$0xff]
          %v4204 = vld [vmem:[%s6 + $0x4] sm:$0x1]
          %v4205 = vlaneseq
          %v4206 = vshrl.u32 %v4205, 7
          %v4207 = vsub.s32 0, %v4206
          %v4208 = vrot.slane %v4204, %v4207
          %vm4209 = vcmask 130048
          %v4211 = vsel %vm4209, %v4196, 0
          %4213 = vmatprep.subr.mxu0 0.0
          %4214 = vmatpush1.msra.mxu0 0.0
          %4215 = vmatprep.subr.mxu0 0.0
          %4216 = vmatpush1.msra.mxu0 0.0
          %4217 = vmatprep.subr.mxu0 0.0
          %4218 = vmatpush1.msra.mxu0 0.0
          %4219 = vmatprep.subr.mxu0 0.0
          %4220 = vmatpush1.msra.mxu0 0.0
          %4221 = vmatprep.subr.mxu0 0.0
          %4222 = vmatpush1.msra.mxu0 0.0
          %4223 = vmatprep.subr.mxu0 0.0
          %4224 = vmatpush1.msra.mxu0 0.0
          %4225 = vmatprep.subr.mxu0 0.0
          %4226 = vmatpush1.msra.mxu0 0.0
          %4227 = vmatprep.subr.mxu0 0.0
          %4228 = vmatpush1.msra.mxu0 0.0
          %4229 = vmatprep.subr.mxu0 0.0
          %4230 = vmatpush1.msra.mxu0 0.0
          %4231 = vmatprep.subr.mxu0 0.0
          %4232 = vmatpush1.msra.mxu0 0.0
          %4233 = vmatprep.subr.mxu0 0.0
          %4234 = vmatpush1.msra.mxu0 0.0
          %4235 = vmatprep.subr.mxu0 0.0
          %4236 = vmatpush1.msra.mxu0 0.0
          %4237 = vmatprep.subr.mxu0 0.0
          %4238 = vmatpush1.msra.mxu0 0.0
          %4239 = vmatprep.subr.mxu0 0.0
          %4240 = vmatpush1.msra.mxu0 0.0
          %4241 = vmatprep.subr.mxu0 0.0
          %v4242 = vand.u32 %v4203, 4294901760
          %4243 = vmatpush1.msra.mxu0 %v4242
          %4244 = vmatprep.subr.mxu0 0.0
          %v4245 = vand.u32 %v4202, 4294901760
          %4246 = vmatpush1.msra.mxu0 %v4245
          %4247 = vmatprep.subr.mxu0 0.0
          %4248 = vmatpush2.msra.mxu0 0.0
          %4249 = vmatprep.subr.mxu0 0.0
          %4250 = vmatpush2.msra.mxu0 0.0
          %4251 = vmatprep.subr.mxu0 0.0
          %4252 = vmatpush2.msra.mxu0 0.0
          %4253 = vmatprep.subr.mxu0 0.0
          %4254 = vmatpush2.msra.mxu0 0.0
          %4255 = vmatprep.subr.mxu0 0.0
          %4256 = vmatpush2.msra.mxu0 0.0
          %4257 = vmatprep.subr.mxu0 0.0
          %4258 = vmatpush2.msra.mxu0 0.0
          %4259 = vmatprep.subr.mxu0 0.0
          %4260 = vmatpush2.msra.mxu0 0.0
          %4261 = vmatprep.subr.mxu0 0.0
          %4262 = vmatpush2.msra.mxu0 0.0
          %4263 = vmatprep.subr.mxu0 0.0
          %4264 = vmatpush2.msra.mxu0 0.0
          %4265 = vmatprep.subr.mxu0 0.0
          %4266 = vmatpush2.msra.mxu0 0.0
          %4267 = vmatprep.subr.mxu0 0.0
          %4268 = vmatpush2.msra.mxu0 0.0
          %4269 = vmatprep.subr.mxu0 0.0
          %4270 = vmatpush2.msra.mxu0 0.0
          %4271 = vmatprep.subr.mxu0 0.0
          %4272 = vmatpush2.msra.mxu0 0.0
          %4273 = vmatprep.subr.mxu0 0.0
          %4274 = vmatpush2.msra.mxu0 0.0
          %4275 = vmatprep.subr.mxu0 0.0
          %4276 = vmatpush2.msra.mxu0 0.0
          %4277 = vmatprep.subr.mxu0 0.0
          %4278 = vmatpush2.msra.mxu0 0.0
          %4279 = vmatprep.mubr.f32.mxu0 0.0
          %v4280 = vand.u32 %v4211, 4294901760
          %v4281 = vsub.f32 %v4211, %v4280
          %v4282 = vand.u32 %v4281, 4294901760
          %v4283 = vsub.f32 %v4281, %v4282
          %v4284 = vand.u32 %v4283, 4294901760
          %4285 = vmatmul.mubr.f32.gmra.mxu0 %v4284
          %v4286 = vpop.f32.mrf.mxu0
          %v4287 = vadd.f32 %v4208, %v4286
          %v4288 = vpop.f32.mrf.mxu0
          %4289 = vdwg.mxu0
          %4290 = vmatprep.subr.mxu0 0.0
          %4291 = vmatpush1.msra.mxu0 0.0
          %4292 = vmatprep.subr.mxu0 0.0
          %4293 = vmatpush1.msra.mxu0 0.0
          %4294 = vmatprep.subr.mxu0 0.0
          %4295 = vmatpush1.msra.mxu0 0.0
          %4296 = vmatprep.subr.mxu0 0.0
          %4297 = vmatpush1.msra.mxu0 0.0
          %4298 = vmatprep.subr.mxu0 0.0
          %4299 = vmatpush1.msra.mxu0 0.0
          %4300 = vmatprep.subr.mxu0 0.0
          %4301 = vmatpush1.msra.mxu0 0.0
          %4302 = vmatprep.subr.mxu0 0.0
          %4303 = vmatpush1.msra.mxu0 0.0
          %4304 = vmatprep.subr.mxu0 0.0
          %4305 = vmatpush1.msra.mxu0 0.0
          %4306 = vmatprep.subr.mxu0 0.0
          %4307 = vmatpush1.msra.mxu0 0.0
          %4308 = vmatprep.subr.mxu0 0.0
          %4309 = vmatpush1.msra.mxu0 0.0
          %4310 = vmatprep.subr.mxu0 0.0
          %4311 = vmatpush1.msra.mxu0 0.0
          %4312 = vmatprep.subr.mxu0 0.0
          %4313 = vmatpush1.msra.mxu0 0.0
          %4314 = vmatprep.subr.mxu0 0.0
          %4315 = vmatpush1.msra.mxu0 0.0
          %4316 = vmatprep.subr.mxu0 0.0
          %4317 = vmatpush1.msra.mxu0 0.0
          %4318 = vmatprep.subr.mxu0 0.0
          %v4319 = vand.u32 %v4203, 4294901760
          %v4320 = vsub.f32 %v4203, %v4319
          %v4321 = vand.u32 %v4320, 4294901760
          %v4322 = vsub.f32 %v4320, %v4321
          %v4323 = vand.u32 %v4322, 4294901760
          %4324 = vmatpush1.msra.mxu0 %v4323
          %4325 = vmatprep.subr.mxu0 0.0
          %v4326 = vand.u32 %v4202, 4294901760
          %v4327 = vsub.f32 %v4202, %v4326
          %v4328 = vand.u32 %v4327, 4294901760
          %v4329 = vsub.f32 %v4327, %v4328
          %v4330 = vand.u32 %v4329, 4294901760
          %4331 = vmatpush1.msra.mxu0 %v4330
          %4332 = vmatprep.subr.mxu0 0.0
          %4333 = vmatpush2.msra.mxu0 0.0
          %4334 = vmatprep.subr.mxu0 0.0
          %4335 = vmatpush2.msra.mxu0 0.0
          %4336 = vmatprep.subr.mxu0 0.0
          %4337 = vmatpush2.msra.mxu0 0.0
          %4338 = vmatprep.subr.mxu0 0.0
          %4339 = vmatpush2.msra.mxu0 0.0
          %4340 = vmatprep.subr.mxu0 0.0
          %4341 = vmatpush2.msra.mxu0 0.0
          %4342 = vmatprep.subr.mxu0 0.0
          %4343 = vmatpush2.msra.mxu0 0.0
          %4344 = vmatprep.subr.mxu0 0.0
          %4345 = vmatpush2.msra.mxu0 0.0
          %4346 = vmatprep.subr.mxu0 0.0
          %4347 = vmatpush2.msra.mxu0 0.0
          %4348 = vmatprep.subr.mxu0 0.0
          %4349 = vmatpush2.msra.mxu0 0.0
          %4350 = vmatprep.subr.mxu0 0.0
          %4351 = vmatpush2.msra.mxu0 0.0
          %4352 = vmatprep.subr.mxu0 0.0
          %4353 = vmatpush2.msra.mxu0 0.0
          %4354 = vmatprep.subr.mxu0 0.0
          %4355 = vmatpush2.msra.mxu0 0.0
          %4356 = vmatprep.subr.mxu0 0.0
          %4357 = vmatpush2.msra.mxu0 0.0
          %4358 = vmatprep.subr.mxu0 0.0
          %4359 = vmatpush2.msra.mxu0 0.0
          %4360 = vmatprep.subr.mxu0 0.0
          %4361 = vmatpush2.msra.mxu0 0.0
          %4362 = vmatprep.subr.mxu0 0.0
          %4363 = vmatpush2.msra.mxu0 0.0
          %4364 = vmatprep.mubr.f32.mxu0 0.0
          %v4365 = vand.u32 %v4211, 4294901760
          %4366 = vmatmul.mubr.f32.gmra.mxu0 %v4365
          %v4367 = vpop.f32.mrf.mxu0
          %v4368 = vadd.f32 %v4287, %v4367
          %v4369 = vpop.f32.mrf.mxu0
          %4370 = vdwg.mxu0
          %4371 = vmatprep.subr.mxu0 0.0
          %4372 = vmatpush1.msra.mxu0 0.0
          %4373 = vmatprep.subr.mxu0 0.0
          %4374 = vmatpush1.msra.mxu0 0.0
          %4375 = vmatprep.subr.mxu0 0.0
          %4376 = vmatpush1.msra.mxu0 0.0
          %4377 = vmatprep.subr.mxu0 0.0
          %4378 = vmatpush1.msra.mxu0 0.0
          %4379 = vmatprep.subr.mxu0 0.0
          %4380 = vmatpush1.msra.mxu0 0.0
          %4381 = vmatprep.subr.mxu0 0.0
          %4382 = vmatpush1.msra.mxu0 0.0
          %4383 = vmatprep.subr.mxu0 0.0
          %4384 = vmatpush1.msra.mxu0 0.0
          %4385 = vmatprep.subr.mxu0 0.0
          %4386 = vmatpush1.msra.mxu0 0.0
          %4387 = vmatprep.subr.mxu0 0.0
          %4388 = vmatpush1.msra.mxu0 0.0
          %4389 = vmatprep.subr.mxu0 0.0
          %4390 = vmatpush1.msra.mxu0 0.0
          %4391 = vmatprep.subr.mxu0 0.0
          %4392 = vmatpush1.msra.mxu0 0.0
          %4393 = vmatprep.subr.mxu0 0.0
          %4394 = vmatpush1.msra.mxu0 0.0
          %4395 = vmatprep.subr.mxu0 0.0
          %4396 = vmatpush1.msra.mxu0 0.0
          %4397 = vmatprep.subr.mxu0 0.0
          %4398 = vmatpush1.msra.mxu0 0.0
          %4399 = vmatprep.subr.mxu0 0.0
          %v4400 = vand.u32 %v4203, 4294901760
          %v4401 = vsub.f32 %v4203, %v4400
          %4402 = vmatpush1.msra.mxu0 %v4401
          %4403 = vmatprep.subr.mxu0 0.0
          %v4404 = vand.u32 %v4202, 4294901760
          %v4405 = vsub.f32 %v4202, %v4404
          %4406 = vmatpush1.msra.mxu0 %v4405
          %4407 = vmatprep.subr.mxu0 0.0
          %4408 = vmatpush2.msra.mxu0 0.0
          %4409 = vmatprep.subr.mxu0 0.0
          %4410 = vmatpush2.msra.mxu0 0.0
          %4411 = vmatprep.subr.mxu0 0.0
          %4412 = vmatpush2.msra.mxu0 0.0
          %4413 = vmatprep.subr.mxu0 0.0
          %4414 = vmatpush2.msra.mxu0 0.0
          %4415 = vmatprep.subr.mxu0 0.0
          %4416 = vmatpush2.msra.mxu0 0.0
          %4417 = vmatprep.subr.mxu0 0.0
          %4418 = vmatpush2.msra.mxu0 0.0
          %4419 = vmatprep.subr.mxu0 0.0
          %4420 = vmatpush2.msra.mxu0 0.0
          %4421 = vmatprep.subr.mxu0 0.0
          %4422 = vmatpush2.msra.mxu0 0.0
          %4423 = vmatprep.subr.mxu0 0.0
          %4424 = vmatpush2.msra.mxu0 0.0
          %4425 = vmatprep.subr.mxu0 0.0
          %4426 = vmatpush2.msra.mxu0 0.0
          %4427 = vmatprep.subr.mxu0 0.0
          %4428 = vmatpush2.msra.mxu0 0.0
          %4429 = vmatprep.subr.mxu0 0.0
          %4430 = vmatpush2.msra.mxu0 0.0
          %4431 = vmatprep.subr.mxu0 0.0
          %4432 = vmatpush2.msra.mxu0 0.0
          %4433 = vmatprep.subr.mxu0 0.0
          %4434 = vmatpush2.msra.mxu0 0.0
          %4435 = vmatprep.subr.mxu0 0.0
          %4436 = vmatpush2.msra.mxu0 0.0
          %4437 = vmatprep.subr.mxu0 0.0
          %4438 = vmatpush2.msra.mxu0 0.0
          %4439 = vmatprep.mubr.f32.mxu0 0.0
          %v4440 = vand.u32 %v4211, 4294901760
          %v4441 = vsub.f32 %v4211, %v4440
          %4442 = vmatmul.mubr.f32.gmra.mxu0 %v4441
          %v4443 = vpop.f32.mrf.mxu0
          %v4444 = vadd.f32 %v4368, %v4443
          %v4445 = vpop.f32.mrf.mxu0
          %4446 = vdwg.mxu0
          %4447 = vmatprep.subr.mxu0 0.0
          %4448 = vmatpush1.msra.mxu0 0.0
          %4449 = vmatprep.subr.mxu0 0.0
          %4450 = vmatpush1.msra.mxu0 0.0
          %4451 = vmatprep.subr.mxu0 0.0
          %4452 = vmatpush1.msra.mxu0 0.0
          %4453 = vmatprep.subr.mxu0 0.0
          %4454 = vmatpush1.msra.mxu0 0.0
          %4455 = vmatprep.subr.mxu0 0.0
          %4456 = vmatpush1.msra.mxu0 0.0
          %4457 = vmatprep.subr.mxu0 0.0
          %4458 = vmatpush1.msra.mxu0 0.0
          %4459 = vmatprep.subr.mxu0 0.0
          %4460 = vmatpush1.msra.mxu0 0.0
          %4461 = vmatprep.subr.mxu0 0.0
          %4462 = vmatpush1.msra.mxu0 0.0
          %4463 = vmatprep.subr.mxu0 0.0
          %4464 = vmatpush1.msra.mxu0 0.0
          %4465 = vmatprep.subr.mxu0 0.0
          %4466 = vmatpush1.msra.mxu0 0.0
          %4467 = vmatprep.subr.mxu0 0.0
          %4468 = vmatpush1.msra.mxu0 0.0
          %4469 = vmatprep.subr.mxu0 0.0
          %4470 = vmatpush1.msra.mxu0 0.0
          %4471 = vmatprep.subr.mxu0 0.0
          %4472 = vmatpush1.msra.mxu0 0.0
          %4473 = vmatprep.subr.mxu0 0.0
          %4474 = vmatpush1.msra.mxu0 0.0
          %4475 = vmatprep.subr.mxu0 0.0
          %v4476 = vand.u32 %v4203, 4294901760
          %4477 = vmatpush1.msra.mxu0 %v4476
          %4478 = vmatprep.subr.mxu0 0.0
          %v4479 = vand.u32 %v4202, 4294901760
          %4480 = vmatpush1.msra.mxu0 %v4479
          %4481 = vmatprep.subr.mxu0 0.0
          %4482 = vmatpush2.msra.mxu0 0.0
          %4483 = vmatprep.subr.mxu0 0.0
          %4484 = vmatpush2.msra.mxu0 0.0
          %4485 = vmatprep.subr.mxu0 0.0
          %4486 = vmatpush2.msra.mxu0 0.0
          %4487 = vmatprep.subr.mxu0 0.0
          %4488 = vmatpush2.msra.mxu0 0.0
          %4489 = vmatprep.subr.mxu0 0.0
          %4490 = vmatpush2.msra.mxu0 0.0
          %4491 = vmatprep.subr.mxu0 0.0
          %4492 = vmatpush2.msra.mxu0 0.0
          %4493 = vmatprep.subr.mxu0 0.0
          %4494 = vmatpush2.msra.mxu0 0.0
          %4495 = vmatprep.subr.mxu0 0.0
          %4496 = vmatpush2.msra.mxu0 0.0
          %4497 = vmatprep.subr.mxu0 0.0
          %4498 = vmatpush2.msra.mxu0 0.0
          %4499 = vmatprep.subr.mxu0 0.0
          %4500 = vmatpush2.msra.mxu0 0.0
          %4501 = vmatprep.subr.mxu0 0.0
          %4502 = vmatpush2.msra.mxu0 0.0
          %4503 = vmatprep.subr.mxu0 0.0
          %4504 = vmatpush2.msra.mxu0 0.0
          %4505 = vmatprep.subr.mxu0 0.0
          %4506 = vmatpush2.msra.mxu0 0.0
          %4507 = vmatprep.subr.mxu0 0.0
          %4508 = vmatpush2.msra.mxu0 0.0
          %4509 = vmatprep.subr.mxu0 0.0
          %4510 = vmatpush2.msra.mxu0 0.0
          %4511 = vmatprep.subr.mxu0 0.0
          %4512 = vmatpush2.msra.mxu0 0.0
          %4513 = vmatprep.mubr.f32.mxu0 0.0
          %v4514 = vand.u32 %v4211, 4294901760
          %v4515 = vsub.f32 %v4211, %v4514
          %v4516 = vand.u32 %v4515, 4294901760
          %4517 = vmatmul.mubr.f32.gmra.mxu0 %v4516
          %v4518 = vpop.f32.mrf.mxu0
          %v4519 = vadd.f32 %v4444, %v4518
          %v4520 = vpop.f32.mrf.mxu0
          %4521 = vdwg.mxu0
          %4522 = vmatprep.subr.mxu0 0.0
          %4523 = vmatpush1.msra.mxu0 0.0
          %4524 = vmatprep.subr.mxu0 0.0
          %4525 = vmatpush1.msra.mxu0 0.0
          %4526 = vmatprep.subr.mxu0 0.0
          %4527 = vmatpush1.msra.mxu0 0.0
          %4528 = vmatprep.subr.mxu0 0.0
          %4529 = vmatpush1.msra.mxu0 0.0
          %4530 = vmatprep.subr.mxu0 0.0
          %4531 = vmatpush1.msra.mxu0 0.0
          %4532 = vmatprep.subr.mxu0 0.0
          %4533 = vmatpush1.msra.mxu0 0.0
          %4534 = vmatprep.subr.mxu0 0.0
          %4535 = vmatpush1.msra.mxu0 0.0
          %4536 = vmatprep.subr.mxu0 0.0
          %4537 = vmatpush1.msra.mxu0 0.0
          %4538 = vmatprep.subr.mxu0 0.0
          %4539 = vmatpush1.msra.mxu0 0.0
          %4540 = vmatprep.subr.mxu0 0.0
          %4541 = vmatpush1.msra.mxu0 0.0
          %4542 = vmatprep.subr.mxu0 0.0
          %4543 = vmatpush1.msra.mxu0 0.0
          %4544 = vmatprep.subr.mxu0 0.0
          %4545 = vmatpush1.msra.mxu0 0.0
          %4546 = vmatprep.subr.mxu0 0.0
          %4547 = vmatpush1.msra.mxu0 0.0
          %4548 = vmatprep.subr.mxu0 0.0
          %4549 = vmatpush1.msra.mxu0 0.0
          %4550 = vmatprep.subr.mxu0 0.0
          %v4551 = vand.u32 %v4203, 4294901760
          %v4552 = vsub.f32 %v4203, %v4551
          %v4553 = vand.u32 %v4552, 4294901760
          %4554 = vmatpush1.msra.mxu0 %v4553
          %4555 = vmatprep.subr.mxu0 0.0
          %v4556 = vand.u32 %v4202, 4294901760
          %v4557 = vsub.f32 %v4202, %v4556
          %v4558 = vand.u32 %v4557, 4294901760
          %4559 = vmatpush1.msra.mxu0 %v4558
          %4560 = vmatprep.subr.mxu0 0.0
          %4561 = vmatpush2.msra.mxu0 0.0
          %4562 = vmatprep.subr.mxu0 0.0
          %4563 = vmatpush2.msra.mxu0 0.0
          %4564 = vmatprep.subr.mxu0 0.0
          %4565 = vmatpush2.msra.mxu0 0.0
          %4566 = vmatprep.subr.mxu0 0.0
          %4567 = vmatpush2.msra.mxu0 0.0
          %4568 = vmatprep.subr.mxu0 0.0
          %4569 = vmatpush2.msra.mxu0 0.0
          %4570 = vmatprep.subr.mxu0 0.0
          %4571 = vmatpush2.msra.mxu0 0.0
          %4572 = vmatprep.subr.mxu0 0.0
          %4573 = vmatpush2.msra.mxu0 0.0
          %4574 = vmatprep.subr.mxu0 0.0
          %4575 = vmatpush2.msra.mxu0 0.0
          %4576 = vmatprep.subr.mxu0 0.0
          %4577 = vmatpush2.msra.mxu0 0.0
          %4578 = vmatprep.subr.mxu0 0.0
          %4579 = vmatpush2.msra.mxu0 0.0
          %4580 = vmatprep.subr.mxu0 0.0
          %4581 = vmatpush2.msra.mxu0 0.0
          %4582 = vmatprep.subr.mxu0 0.0
          %4583 = vmatpush2.msra.mxu0 0.0
          %4584 = vmatprep.subr.mxu0 0.0
          %4585 = vmatpush2.msra.mxu0 0.0
          %4586 = vmatprep.subr.mxu0 0.0
          %4587 = vmatpush2.msra.mxu0 0.0
          %4588 = vmatprep.subr.mxu0 0.0
          %4589 = vmatpush2.msra.mxu0 0.0
          %4590 = vmatprep.subr.mxu0 0.0
          %4591 = vmatpush2.msra.mxu0 0.0
          %4592 = vmatprep.mubr.f32.mxu0 0.0
          %v4593 = vand.u32 %v4211, 4294901760
          %4594 = vmatmul.mubr.f32.gmra.mxu0 %v4593
          %v4595 = vpop.f32.mrf.mxu0
          %v4596 = vadd.f32 %v4519, %v4595
          %v4597 = vpop.f32.mrf.mxu0
          %4598 = vdwg.mxu0
          %4599 = vmatprep.subr.mxu0 0.0
          %4600 = vmatpush1.msra.mxu0 0.0
          %4601 = vmatprep.subr.mxu0 0.0
          %4602 = vmatpush1.msra.mxu0 0.0
          %4603 = vmatprep.subr.mxu0 0.0
          %4604 = vmatpush1.msra.mxu0 0.0
          %4605 = vmatprep.subr.mxu0 0.0
          %4606 = vmatpush1.msra.mxu0 0.0
          %4607 = vmatprep.subr.mxu0 0.0
          %4608 = vmatpush1.msra.mxu0 0.0
          %4609 = vmatprep.subr.mxu0 0.0
          %4610 = vmatpush1.msra.mxu0 0.0
          %4611 = vmatprep.subr.mxu0 0.0
          %4612 = vmatpush1.msra.mxu0 0.0
          %4613 = vmatprep.subr.mxu0 0.0
          %4614 = vmatpush1.msra.mxu0 0.0
          %4615 = vmatprep.subr.mxu0 0.0
          %4616 = vmatpush1.msra.mxu0 0.0
          %4617 = vmatprep.subr.mxu0 0.0
          %4618 = vmatpush1.msra.mxu0 0.0
          %4619 = vmatprep.subr.mxu0 0.0
          %4620 = vmatpush1.msra.mxu0 0.0
          %4621 = vmatprep.subr.mxu0 0.0
          %4622 = vmatpush1.msra.mxu0 0.0
          %4623 = vmatprep.subr.mxu0 0.0
          %4624 = vmatpush1.msra.mxu0 0.0
          %4625 = vmatprep.subr.mxu0 0.0
          %4626 = vmatpush1.msra.mxu0 0.0
          %4627 = vmatprep.subr.mxu0 0.0
          %v4628 = vand.u32 %v4203, 4294901760
          %4629 = vmatpush1.msra.mxu0 %v4628
          %4630 = vmatprep.subr.mxu0 0.0
          %v4631 = vand.u32 %v4202, 4294901760
          %4632 = vmatpush1.msra.mxu0 %v4631
          %4633 = vmatprep.subr.mxu0 0.0
          %4634 = vmatpush2.msra.mxu0 0.0
          %4635 = vmatprep.subr.mxu0 0.0
          %4636 = vmatpush2.msra.mxu0 0.0
          %4637 = vmatprep.subr.mxu0 0.0
          %4638 = vmatpush2.msra.mxu0 0.0
          %4639 = vmatprep.subr.mxu0 0.0
          %4640 = vmatpush2.msra.mxu0 0.0
          %4641 = vmatprep.subr.mxu0 0.0
          %4642 = vmatpush2.msra.mxu0 0.0
          %4643 = vmatprep.subr.mxu0 0.0
          %4644 = vmatpush2.msra.mxu0 0.0
          %4645 = vmatprep.subr.mxu0 0.0
          %4646 = vmatpush2.msra.mxu0 0.0
          %4647 = vmatprep.subr.mxu0 0.0
          %4648 = vmatpush2.msra.mxu0 0.0
          %4649 = vmatprep.subr.mxu0 0.0
          %4650 = vmatpush2.msra.mxu0 0.0
          %4651 = vmatprep.subr.mxu0 0.0
          %4652 = vmatpush2.msra.mxu0 0.0
          %4653 = vmatprep.subr.mxu0 0.0
          %4654 = vmatpush2.msra.mxu0 0.0
          %4655 = vmatprep.subr.mxu0 0.0
          %4656 = vmatpush2.msra.mxu0 0.0
          %4657 = vmatprep.subr.mxu0 0.0
          %4658 = vmatpush2.msra.mxu0 0.0
          %4659 = vmatprep.subr.mxu0 0.0
          %4660 = vmatpush2.msra.mxu0 0.0
          %4661 = vmatprep.subr.mxu0 0.0
          %4662 = vmatpush2.msra.mxu0 0.0
          %4663 = vmatprep.subr.mxu0 0.0
          %4664 = vmatpush2.msra.mxu0 0.0
          %4665 = vmatprep.mubr.f32.mxu0 0.0
          %v4666 = vand.u32 %v4211, 4294901760
          %4667 = vmatmul.mubr.f32.gmra.mxu0 %v4666
          %v4668 = vpop.f32.mrf.mxu0
          %v4669 = vadd.f32 %v4596, %v4668
          %v4670 = vpop.f32.mrf.mxu0
          %4671 = vdwg.mxu0
          %v4672 = vld [vmem:[%s5] sm:$0xff]
          %v4673 = vld [vmem:[%s5 + $0x8] sm:$0xff]
          %v4674 = vld [vmem:[%s5 + $0x10] sm:$0xff]
          %v4675 = vld [vmem:[%s5 + $0x18] sm:$0xff]
          %v4676 = vld [vmem:[%s5 + $0x20] sm:$0xff]
          %v4677 = vld [vmem:[%s5 + $0x28] sm:$0xff]
          %v4678 = vld [vmem:[%s5 + $0x30] sm:$0xff]
          %v4679 = vld [vmem:[%s5 + $0x38] sm:$0xff]
          %v4680 = vld [vmem:[%s6 + $0x5] sm:$0x1]
          %v4681 = vlaneseq
          %v4682 = vshrl.u32 %v4681, 7
          %v4683 = vsub.s32 0, %v4682
          %v4684 = vrot.slane %v4680, %v4683
          %v4686 = vsel %vm3646, %v4669, 0
          %4688 = vmatprep.subr.mxu0 0.0
          %4689 = vmatpush1.msra.mxu0 0.0
          %4690 = vmatprep.subr.mxu0 0.0
          %4691 = vmatpush1.msra.mxu0 0.0
          %4692 = vmatprep.subr.mxu0 0.0
          %4693 = vmatpush1.msra.mxu0 0.0
          %4694 = vmatprep.subr.mxu0 0.0
          %4695 = vmatpush1.msra.mxu0 0.0
          %4696 = vmatprep.subr.mxu0 0.0
          %4697 = vmatpush1.msra.mxu0 0.0
          %4698 = vmatprep.subr.mxu0 0.0
          %4699 = vmatpush1.msra.mxu0 0.0
          %4700 = vmatprep.subr.mxu0 0.0
          %4701 = vmatpush1.msra.mxu0 0.0
          %4702 = vmatprep.subr.mxu0 0.0
          %4703 = vmatpush1.msra.mxu0 0.0
          %4704 = vmatprep.subr.mxu0 0.0
          %v4705 = vand.u32 %v4679, 4294901760
          %4706 = vmatpush1.msra.mxu0 %v4705
          %4707 = vmatprep.subr.mxu0 0.0
          %v4708 = vand.u32 %v4678, 4294901760
          %4709 = vmatpush1.msra.mxu0 %v4708
          %4710 = vmatprep.subr.mxu0 0.0
          %v4711 = vand.u32 %v4677, 4294901760
          %4712 = vmatpush1.msra.mxu0 %v4711
          %4713 = vmatprep.subr.mxu0 0.0
          %v4714 = vand.u32 %v4676, 4294901760
          %4715 = vmatpush1.msra.mxu0 %v4714
          %4716 = vmatprep.subr.mxu0 0.0
          %v4717 = vand.u32 %v4675, 4294901760
          %4718 = vmatpush1.msra.mxu0 %v4717
          %4719 = vmatprep.subr.mxu0 0.0
          %v4720 = vand.u32 %v4674, 4294901760
          %4721 = vmatpush1.msra.mxu0 %v4720
          %4722 = vmatprep.subr.mxu0 0.0
          %v4723 = vand.u32 %v4673, 4294901760
          %4724 = vmatpush1.msra.mxu0 %v4723
          %4725 = vmatprep.subr.mxu0 0.0
          %v4726 = vand.u32 %v4672, 4294901760
          %4727 = vmatpush1.msra.mxu0 %v4726
          %4728 = vmatprep.subr.mxu0 0.0
          %4729 = vmatpush2.msra.mxu0 0.0
          %4730 = vmatprep.subr.mxu0 0.0
          %4731 = vmatpush2.msra.mxu0 0.0
          %4732 = vmatprep.subr.mxu0 0.0
          %4733 = vmatpush2.msra.mxu0 0.0
          %4734 = vmatprep.subr.mxu0 0.0
          %4735 = vmatpush2.msra.mxu0 0.0
          %4736 = vmatprep.subr.mxu0 0.0
          %4737 = vmatpush2.msra.mxu0 0.0
          %4738 = vmatprep.subr.mxu0 0.0
          %4739 = vmatpush2.msra.mxu0 0.0
          %4740 = vmatprep.subr.mxu0 0.0
          %4741 = vmatpush2.msra.mxu0 0.0
          %4742 = vmatprep.subr.mxu0 0.0
          %4743 = vmatpush2.msra.mxu0 0.0
          %4744 = vmatprep.subr.mxu0 0.0
          %4745 = vmatpush2.msra.mxu0 0.0
          %4746 = vmatprep.subr.mxu0 0.0
          %4747 = vmatpush2.msra.mxu0 0.0
          %4748 = vmatprep.subr.mxu0 0.0
          %4749 = vmatpush2.msra.mxu0 0.0
          %4750 = vmatprep.subr.mxu0 0.0
          %4751 = vmatpush2.msra.mxu0 0.0
          %4752 = vmatprep.subr.mxu0 0.0
          %4753 = vmatpush2.msra.mxu0 0.0
          %4754 = vmatprep.subr.mxu0 0.0
          %4755 = vmatpush2.msra.mxu0 0.0
          %4756 = vmatprep.subr.mxu0 0.0
          %4757 = vmatpush2.msra.mxu0 0.0
          %4758 = vmatprep.subr.mxu0 0.0
          %4759 = vmatpush2.msra.mxu0 0.0
          %4760 = vmatprep.mubr.f32.mxu0 0.0
          %v4761 = vand.u32 %v4686, 4294901760
          %v4762 = vsub.f32 %v4686, %v4761
          %v4763 = vand.u32 %v4762, 4294901760
          %v4764 = vsub.f32 %v4762, %v4763
          %v4765 = vand.u32 %v4764, 4294901760
          %4766 = vmatmul.mubr.f32.gmra.mxu0 %v4765
          %v4767 = vpop.f32.mrf.mxu0
          %v4768 = vadd.f32 %v4684, %v4767
          %v4769 = vpop.f32.mrf.mxu0
          %4770 = vdwg.mxu0
          %4771 = vmatprep.subr.mxu0 0.0
          %4772 = vmatpush1.msra.mxu0 0.0
          %4773 = vmatprep.subr.mxu0 0.0
          %4774 = vmatpush1.msra.mxu0 0.0
          %4775 = vmatprep.subr.mxu0 0.0
          %4776 = vmatpush1.msra.mxu0 0.0
          %4777 = vmatprep.subr.mxu0 0.0
          %4778 = vmatpush1.msra.mxu0 0.0
          %4779 = vmatprep.subr.mxu0 0.0
          %4780 = vmatpush1.msra.mxu0 0.0
          %4781 = vmatprep.subr.mxu0 0.0
          %4782 = vmatpush1.msra.mxu0 0.0
          %4783 = vmatprep.subr.mxu0 0.0
          %4784 = vmatpush1.msra.mxu0 0.0
          %4785 = vmatprep.subr.mxu0 0.0
          %4786 = vmatpush1.msra.mxu0 0.0
          %4787 = vmatprep.subr.mxu0 0.0
          %v4788 = vand.u32 %v4679, 4294901760
          %v4789 = vsub.f32 %v4679, %v4788
          %v4790 = vand.u32 %v4789, 4294901760
          %v4791 = vsub.f32 %v4789, %v4790
          %v4792 = vand.u32 %v4791, 4294901760
          %4793 = vmatpush1.msra.mxu0 %v4792
          %4794 = vmatprep.subr.mxu0 0.0
          %v4795 = vand.u32 %v4678, 4294901760
          %v4796 = vsub.f32 %v4678, %v4795
          %v4797 = vand.u32 %v4796, 4294901760
          %v4798 = vsub.f32 %v4796, %v4797
          %v4799 = vand.u32 %v4798, 4294901760
          %4800 = vmatpush1.msra.mxu0 %v4799
          %4801 = vmatprep.subr.mxu0 0.0
          %v4802 = vand.u32 %v4677, 4294901760
          %v4803 = vsub.f32 %v4677, %v4802
          %v4804 = vand.u32 %v4803, 4294901760
          %v4805 = vsub.f32 %v4803, %v4804
          %v4806 = vand.u32 %v4805, 4294901760
          %4807 = vmatpush1.msra.mxu0 %v4806
          %4808 = vmatprep.subr.mxu0 0.0
          %v4809 = vand.u32 %v4676, 4294901760
          %v4810 = vsub.f32 %v4676, %v4809
          %v4811 = vand.u32 %v4810, 4294901760
          %v4812 = vsub.f32 %v4810, %v4811
          %v4813 = vand.u32 %v4812, 4294901760
          %4814 = vmatpush1.msra.mxu0 %v4813
          %4815 = vmatprep.subr.mxu0 0.0
          %v4816 = vand.u32 %v4675, 4294901760
          %v4817 = vsub.f32 %v4675, %v4816
          %v4818 = vand.u32 %v4817, 4294901760
          %v4819 = vsub.f32 %v4817, %v4818
          %v4820 = vand.u32 %v4819, 4294901760
          %4821 = vmatpush1.msra.mxu0 %v4820
          %4822 = vmatprep.subr.mxu0 0.0
          %v4823 = vand.u32 %v4674, 4294901760
          %v4824 = vsub.f32 %v4674, %v4823
          %v4825 = vand.u32 %v4824, 4294901760
          %v4826 = vsub.f32 %v4824, %v4825
          %v4827 = vand.u32 %v4826, 4294901760
          %4828 = vmatpush1.msra.mxu0 %v4827
          %4829 = vmatprep.subr.mxu0 0.0
          %v4830 = vand.u32 %v4673, 4294901760
          %v4831 = vsub.f32 %v4673, %v4830
          %v4832 = vand.u32 %v4831, 4294901760
          %v4833 = vsub.f32 %v4831, %v4832
          %v4834 = vand.u32 %v4833, 4294901760
          %4835 = vmatpush1.msra.mxu0 %v4834
          %4836 = vmatprep.subr.mxu0 0.0
          %v4837 = vand.u32 %v4672, 4294901760
          %v4838 = vsub.f32 %v4672, %v4837
          %v4839 = vand.u32 %v4838, 4294901760
          %v4840 = vsub.f32 %v4838, %v4839
          %v4841 = vand.u32 %v4840, 4294901760
          %4842 = vmatpush1.msra.mxu0 %v4841
          %4843 = vmatprep.subr.mxu0 0.0
          %4844 = vmatpush2.msra.mxu0 0.0
          %4845 = vmatprep.subr.mxu0 0.0
          %4846 = vmatpush2.msra.mxu0 0.0
          %4847 = vmatprep.subr.mxu0 0.0
          %4848 = vmatpush2.msra.mxu0 0.0
          %4849 = vmatprep.subr.mxu0 0.0
          %4850 = vmatpush2.msra.mxu0 0.0
          %4851 = vmatprep.subr.mxu0 0.0
          %4852 = vmatpush2.msra.mxu0 0.0
          %4853 = vmatprep.subr.mxu0 0.0
          %4854 = vmatpush2.msra.mxu0 0.0
          %4855 = vmatprep.subr.mxu0 0.0
          %4856 = vmatpush2.msra.mxu0 0.0
          %4857 = vmatprep.subr.mxu0 0.0
          %4858 = vmatpush2.msra.mxu0 0.0
          %4859 = vmatprep.subr.mxu0 0.0
          %4860 = vmatpush2.msra.mxu0 0.0
          %4861 = vmatprep.subr.mxu0 0.0
          %4862 = vmatpush2.msra.mxu0 0.0
          %4863 = vmatprep.subr.mxu0 0.0
          %4864 = vmatpush2.msra.mxu0 0.0
          %4865 = vmatprep.subr.mxu0 0.0
          %4866 = vmatpush2.msra.mxu0 0.0
          %4867 = vmatprep.subr.mxu0 0.0
          %4868 = vmatpush2.msra.mxu0 0.0
          %4869 = vmatprep.subr.mxu0 0.0
          %4870 = vmatpush2.msra.mxu0 0.0
          %4871 = vmatprep.subr.mxu0 0.0
          %4872 = vmatpush2.msra.mxu0 0.0
          %4873 = vmatprep.subr.mxu0 0.0
          %4874 = vmatpush2.msra.mxu0 0.0
          %4875 = vmatprep.mubr.f32.mxu0 0.0
          %v4876 = vand.u32 %v4686, 4294901760
          %4877 = vmatmul.mubr.f32.gmra.mxu0 %v4876
          %v4878 = vpop.f32.mrf.mxu0
          %v4879 = vadd.f32 %v4768, %v4878
          %v4880 = vpop.f32.mrf.mxu0
          %4881 = vdwg.mxu0
          %4882 = vmatprep.subr.mxu0 0.0
          %4883 = vmatpush1.msra.mxu0 0.0
          %4884 = vmatprep.subr.mxu0 0.0
          %4885 = vmatpush1.msra.mxu0 0.0
          %4886 = vmatprep.subr.mxu0 0.0
          %4887 = vmatpush1.msra.mxu0 0.0
          %4888 = vmatprep.subr.mxu0 0.0
          %4889 = vmatpush1.msra.mxu0 0.0
          %4890 = vmatprep.subr.mxu0 0.0
          %4891 = vmatpush1.msra.mxu0 0.0
          %4892 = vmatprep.subr.mxu0 0.0
          %4893 = vmatpush1.msra.mxu0 0.0
          %4894 = vmatprep.subr.mxu0 0.0
          %4895 = vmatpush1.msra.mxu0 0.0
          %4896 = vmatprep.subr.mxu0 0.0
          %4897 = vmatpush1.msra.mxu0 0.0
          %4898 = vmatprep.subr.mxu0 0.0
          %v4899 = vand.u32 %v4679, 4294901760
          %v4900 = vsub.f32 %v4679, %v4899
          %4901 = vmatpush1.msra.mxu0 %v4900
          %4902 = vmatprep.subr.mxu0 0.0
          %v4903 = vand.u32 %v4678, 4294901760
          %v4904 = vsub.f32 %v4678, %v4903
          %4905 = vmatpush1.msra.mxu0 %v4904
          %4906 = vmatprep.subr.mxu0 0.0
          %v4907 = vand.u32 %v4677, 4294901760
          %v4908 = vsub.f32 %v4677, %v4907
          %4909 = vmatpush1.msra.mxu0 %v4908
          %4910 = vmatprep.subr.mxu0 0.0
          %v4911 = vand.u32 %v4676, 4294901760
          %v4912 = vsub.f32 %v4676, %v4911
          %4913 = vmatpush1.msra.mxu0 %v4912
          %4914 = vmatprep.subr.mxu0 0.0
          %v4915 = vand.u32 %v4675, 4294901760
          %v4916 = vsub.f32 %v4675, %v4915
          %4917 = vmatpush1.msra.mxu0 %v4916
          %4918 = vmatprep.subr.mxu0 0.0
          %v4919 = vand.u32 %v4674, 4294901760
          %v4920 = vsub.f32 %v4674, %v4919
          %4921 = vmatpush1.msra.mxu0 %v4920
          %4922 = vmatprep.subr.mxu0 0.0
          %v4923 = vand.u32 %v4673, 4294901760
          %v4924 = vsub.f32 %v4673, %v4923
          %4925 = vmatpush1.msra.mxu0 %v4924
          %4926 = vmatprep.subr.mxu0 0.0
          %v4927 = vand.u32 %v4672, 4294901760
          %v4928 = vsub.f32 %v4672, %v4927
          %4929 = vmatpush1.msra.mxu0 %v4928
          %4930 = vmatprep.subr.mxu0 0.0
          %4931 = vmatpush2.msra.mxu0 0.0
          %4932 = vmatprep.subr.mxu0 0.0
          %4933 = vmatpush2.msra.mxu0 0.0
          %4934 = vmatprep.subr.mxu0 0.0
          %4935 = vmatpush2.msra.mxu0 0.0
          %4936 = vmatprep.subr.mxu0 0.0
          %4937 = vmatpush2.msra.mxu0 0.0
          %4938 = vmatprep.subr.mxu0 0.0
          %4939 = vmatpush2.msra.mxu0 0.0
          %4940 = vmatprep.subr.mxu0 0.0
          %4941 = vmatpush2.msra.mxu0 0.0
          %4942 = vmatprep.subr.mxu0 0.0
          %4943 = vmatpush2.msra.mxu0 0.0
          %4944 = vmatprep.subr.mxu0 0.0
          %4945 = vmatpush2.msra.mxu0 0.0
          %4946 = vmatprep.subr.mxu0 0.0
          %4947 = vmatpush2.msra.mxu0 0.0
          %4948 = vmatprep.subr.mxu0 0.0
          %4949 = vmatpush2.msra.mxu0 0.0
          %4950 = vmatprep.subr.mxu0 0.0
          %4951 = vmatpush2.msra.mxu0 0.0
          %4952 = vmatprep.subr.mxu0 0.0
          %4953 = vmatpush2.msra.mxu0 0.0
          %4954 = vmatprep.subr.mxu0 0.0
          %4955 = vmatpush2.msra.mxu0 0.0
          %4956 = vmatprep.subr.mxu0 0.0
          %4957 = vmatpush2.msra.mxu0 0.0
          %4958 = vmatprep.subr.mxu0 0.0
          %4959 = vmatpush2.msra.mxu0 0.0
          %4960 = vmatprep.subr.mxu0 0.0
          %4961 = vmatpush2.msra.mxu0 0.0
          %4962 = vmatprep.mubr.f32.mxu0 0.0
          %v4963 = vand.u32 %v4686, 4294901760
          %v4964 = vsub.f32 %v4686, %v4963
          %4965 = vmatmul.mubr.f32.gmra.mxu0 %v4964
          %v4966 = vpop.f32.mrf.mxu0
          %v4967 = vadd.f32 %v4879, %v4966
          %v4968 = vpop.f32.mrf.mxu0
          %4969 = vdwg.mxu0
          %4970 = vmatprep.subr.mxu0 0.0
          %4971 = vmatpush1.msra.mxu0 0.0
          %4972 = vmatprep.subr.mxu0 0.0
          %4973 = vmatpush1.msra.mxu0 0.0
          %4974 = vmatprep.subr.mxu0 0.0
          %4975 = vmatpush1.msra.mxu0 0.0
          %4976 = vmatprep.subr.mxu0 0.0
          %4977 = vmatpush1.msra.mxu0 0.0
          %4978 = vmatprep.subr.mxu0 0.0
          %4979 = vmatpush1.msra.mxu0 0.0
          %4980 = vmatprep.subr.mxu0 0.0
          %4981 = vmatpush1.msra.mxu0 0.0
          %4982 = vmatprep.subr.mxu0 0.0
          %4983 = vmatpush1.msra.mxu0 0.0
          %4984 = vmatprep.subr.mxu0 0.0
          %4985 = vmatpush1.msra.mxu0 0.0
          %4986 = vmatprep.subr.mxu0 0.0
          %v4987 = vand.u32 %v4679, 4294901760
          %4988 = vmatpush1.msra.mxu0 %v4987
          %4989 = vmatprep.subr.mxu0 0.0
          %v4990 = vand.u32 %v4678, 4294901760
          %4991 = vmatpush1.msra.mxu0 %v4990
          %4992 = vmatprep.subr.mxu0 0.0
          %v4993 = vand.u32 %v4677, 4294901760
          %4994 = vmatpush1.msra.mxu0 %v4993
          %4995 = vmatprep.subr.mxu0 0.0
          %v4996 = vand.u32 %v4676, 4294901760
          %4997 = vmatpush1.msra.mxu0 %v4996
          %4998 = vmatprep.subr.mxu0 0.0
          %v4999 = vand.u32 %v4675, 4294901760
          %5000 = vmatpush1.msra.mxu0 %v4999
          %5001 = vmatprep.subr.mxu0 0.0
          %v5002 = vand.u32 %v4674, 4294901760
          %5003 = vmatpush1.msra.mxu0 %v5002
          %5004 = vmatprep.subr.mxu0 0.0
          %v5005 = vand.u32 %v4673, 4294901760
          %5006 = vmatpush1.msra.mxu0 %v5005
          %5007 = vmatprep.subr.mxu0 0.0
          %v5008 = vand.u32 %v4672, 4294901760
          %5009 = vmatpush1.msra.mxu0 %v5008
          %5010 = vmatprep.subr.mxu0 0.0
          %5011 = vmatpush2.msra.mxu0 0.0
          %5012 = vmatprep.subr.mxu0 0.0
          %5013 = vmatpush2.msra.mxu0 0.0
          %5014 = vmatprep.subr.mxu0 0.0
          %5015 = vmatpush2.msra.mxu0 0.0
          %5016 = vmatprep.subr.mxu0 0.0
          %5017 = vmatpush2.msra.mxu0 0.0
          %5018 = vmatprep.subr.mxu0 0.0
          %5019 = vmatpush2.msra.mxu0 0.0
          %5020 = vmatprep.subr.mxu0 0.0
          %5021 = vmatpush2.msra.mxu0 0.0
          %5022 = vmatprep.subr.mxu0 0.0
          %5023 = vmatpush2.msra.mxu0 0.0
          %5024 = vmatprep.subr.mxu0 0.0
          %5025 = vmatpush2.msra.mxu0 0.0
          %5026 = vmatprep.subr.mxu0 0.0
          %5027 = vmatpush2.msra.mxu0 0.0
          %5028 = vmatprep.subr.mxu0 0.0
          %5029 = vmatpush2.msra.mxu0 0.0
          %5030 = vmatprep.subr.mxu0 0.0
          %5031 = vmatpush2.msra.mxu0 0.0
          %5032 = vmatprep.subr.mxu0 0.0
          %5033 = vmatpush2.msra.mxu0 0.0
          %5034 = vmatprep.subr.mxu0 0.0
          %5035 = vmatpush2.msra.mxu0 0.0
          %5036 = vmatprep.subr.mxu0 0.0
          %5037 = vmatpush2.msra.mxu0 0.0
          %5038 = vmatprep.subr.mxu0 0.0
          %5039 = vmatpush2.msra.mxu0 0.0
          %5040 = vmatprep.subr.mxu0 0.0
          %5041 = vmatpush2.msra.mxu0 0.0
          %5042 = vmatprep.mubr.f32.mxu0 0.0
          %v5043 = vand.u32 %v4686, 4294901760
          %v5044 = vsub.f32 %v4686, %v5043
          %v5045 = vand.u32 %v5044, 4294901760
          %5046 = vmatmul.mubr.f32.gmra.mxu0 %v5045
          %v5047 = vpop.f32.mrf.mxu0
          %v5048 = vadd.f32 %v4967, %v5047
          %v5049 = vpop.f32.mrf.mxu0
          %5050 = vdwg.mxu0
          %5051 = vmatprep.subr.mxu0 0.0
          %5052 = vmatpush1.msra.mxu0 0.0
          %5053 = vmatprep.subr.mxu0 0.0
          %5054 = vmatpush1.msra.mxu0 0.0
          %5055 = vmatprep.subr.mxu0 0.0
          %5056 = vmatpush1.msra.mxu0 0.0
          %5057 = vmatprep.subr.mxu0 0.0
          %5058 = vmatpush1.msra.mxu0 0.0
          %5059 = vmatprep.subr.mxu0 0.0
          %5060 = vmatpush1.msra.mxu0 0.0
          %5061 = vmatprep.subr.mxu0 0.0
          %5062 = vmatpush1.msra.mxu0 0.0
          %5063 = vmatprep.subr.mxu0 0.0
          %5064 = vmatpush1.msra.mxu0 0.0
          %5065 = vmatprep.subr.mxu0 0.0
          %5066 = vmatpush1.msra.mxu0 0.0
          %5067 = vmatprep.subr.mxu0 0.0
          %v5068 = vand.u32 %v4679, 4294901760
          %v5069 = vsub.f32 %v4679, %v5068
          %v5070 = vand.u32 %v5069, 4294901760
          %5071 = vmatpush1.msra.mxu0 %v5070
          %5072 = vmatprep.subr.mxu0 0.0
          %v5073 = vand.u32 %v4678, 4294901760
          %v5074 = vsub.f32 %v4678, %v5073
          %v5075 = vand.u32 %v5074, 4294901760
          %5076 = vmatpush1.msra.mxu0 %v5075
          %5077 = vmatprep.subr.mxu0 0.0
          %v5078 = vand.u32 %v4677, 4294901760
          %v5079 = vsub.f32 %v4677, %v5078
          %v5080 = vand.u32 %v5079, 4294901760
          %5081 = vmatpush1.msra.mxu0 %v5080
          %5082 = vmatprep.subr.mxu0 0.0
          %v5083 = vand.u32 %v4676, 4294901760
          %v5084 = vsub.f32 %v4676, %v5083
          %v5085 = vand.u32 %v5084, 4294901760
          %5086 = vmatpush1.msra.mxu0 %v5085
          %5087 = vmatprep.subr.mxu0 0.0
          %v5088 = vand.u32 %v4675, 4294901760
          %v5089 = vsub.f32 %v4675, %v5088
          %v5090 = vand.u32 %v5089, 4294901760
          %5091 = vmatpush1.msra.mxu0 %v5090
          %5092 = vmatprep.subr.mxu0 0.0
          %v5093 = vand.u32 %v4674, 4294901760
          %v5094 = vsub.f32 %v4674, %v5093
          %v5095 = vand.u32 %v5094, 4294901760
          %5096 = vmatpush1.msra.mxu0 %v5095
          %5097 = vmatprep.subr.mxu0 0.0
          %v5098 = vand.u32 %v4673, 4294901760
          %v5099 = vsub.f32 %v4673, %v5098
          %v5100 = vand.u32 %v5099, 4294901760
          %5101 = vmatpush1.msra.mxu0 %v5100
          %5102 = vmatprep.subr.mxu0 0.0
          %v5103 = vand.u32 %v4672, 4294901760
          %v5104 = vsub.f32 %v4672, %v5103
          %v5105 = vand.u32 %v5104, 4294901760
          %5106 = vmatpush1.msra.mxu0 %v5105
          %5107 = vmatprep.subr.mxu0 0.0
          %5108 = vmatpush2.msra.mxu0 0.0
          %5109 = vmatprep.subr.mxu0 0.0
          %5110 = vmatpush2.msra.mxu0 0.0
          %5111 = vmatprep.subr.mxu0 0.0
          %5112 = vmatpush2.msra.mxu0 0.0
          %5113 = vmatprep.subr.mxu0 0.0
          %5114 = vmatpush2.msra.mxu0 0.0
          %5115 = vmatprep.subr.mxu0 0.0
          %5116 = vmatpush2.msra.mxu0 0.0
          %5117 = vmatprep.subr.mxu0 0.0
          %5118 = vmatpush2.msra.mxu0 0.0
          %5119 = vmatprep.subr.mxu0 0.0
          %5120 = vmatpush2.msra.mxu0 0.0
          %5121 = vmatprep.subr.mxu0 0.0
          %5122 = vmatpush2.msra.mxu0 0.0
          %5123 = vmatprep.subr.mxu0 0.0
          %5124 = vmatpush2.msra.mxu0 0.0
          %5125 = vmatprep.subr.mxu0 0.0
          %5126 = vmatpush2.msra.mxu0 0.0
          %5127 = vmatprep.subr.mxu0 0.0
          %5128 = vmatpush2.msra.mxu0 0.0
          %5129 = vmatprep.subr.mxu0 0.0
          %5130 = vmatpush2.msra.mxu0 0.0
          %5131 = vmatprep.subr.mxu0 0.0
          %5132 = vmatpush2.msra.mxu0 0.0
          %5133 = vmatprep.subr.mxu0 0.0
          %5134 = vmatpush2.msra.mxu0 0.0
          %5135 = vmatprep.subr.mxu0 0.0
          %5136 = vmatpush2.msra.mxu0 0.0
          %5137 = vmatprep.subr.mxu0 0.0
          %5138 = vmatpush2.msra.mxu0 0.0
          %5139 = vmatprep.mubr.f32.mxu0 0.0
          %v5140 = vand.u32 %v4686, 4294901760
          %5141 = vmatmul.mubr.f32.gmra.mxu0 %v5140
          %v5142 = vpop.f32.mrf.mxu0
          %v5143 = vadd.f32 %v5048, %v5142
          %v5144 = vpop.f32.mrf.mxu0
          %5145 = vdwg.mxu0
          %5146 = vmatprep.subr.mxu0 0.0
          %5147 = vmatpush1.msra.mxu0 0.0
          %5148 = vmatprep.subr.mxu0 0.0
          %5149 = vmatpush1.msra.mxu0 0.0
          %5150 = vmatprep.subr.mxu0 0.0
          %5151 = vmatpush1.msra.mxu0 0.0
          %5152 = vmatprep.subr.mxu0 0.0
          %5153 = vmatpush1.msra.mxu0 0.0
          %5154 = vmatprep.subr.mxu0 0.0
          %5155 = vmatpush1.msra.mxu0 0.0
          %5156 = vmatprep.subr.mxu0 0.0
          %5157 = vmatpush1.msra.mxu0 0.0
          %5158 = vmatprep.subr.mxu0 0.0
          %5159 = vmatpush1.msra.mxu0 0.0
          %5160 = vmatprep.subr.mxu0 0.0
          %5161 = vmatpush1.msra.mxu0 0.0
          %5162 = vmatprep.subr.mxu0 0.0
          %v5163 = vand.u32 %v4679, 4294901760
          %5164 = vmatpush1.msra.mxu0 %v5163
          %5165 = vmatprep.subr.mxu0 0.0
          %v5166 = vand.u32 %v4678, 4294901760
          %5167 = vmatpush1.msra.mxu0 %v5166
          %5168 = vmatprep.subr.mxu0 0.0
          %v5169 = vand.u32 %v4677, 4294901760
          %5170 = vmatpush1.msra.mxu0 %v5169
          %5171 = vmatprep.subr.mxu0 0.0
          %v5172 = vand.u32 %v4676, 4294901760
          %5173 = vmatpush1.msra.mxu0 %v5172
          %5174 = vmatprep.subr.mxu0 0.0
          %v5175 = vand.u32 %v4675, 4294901760
          %5176 = vmatpush1.msra.mxu0 %v5175
          %5177 = vmatprep.subr.mxu0 0.0
          %v5178 = vand.u32 %v4674, 4294901760
          %5179 = vmatpush1.msra.mxu0 %v5178
          %5180 = vmatprep.subr.mxu0 0.0
          %v5181 = vand.u32 %v4673, 4294901760
          %5182 = vmatpush1.msra.mxu0 %v5181
          %5183 = vmatprep.subr.mxu0 0.0
          %v5184 = vand.u32 %v4672, 4294901760
          %5185 = vmatpush1.msra.mxu0 %v5184
          %5186 = vmatprep.subr.mxu0 0.0
          %5187 = vmatpush2.msra.mxu0 0.0
          %5188 = vmatprep.subr.mxu0 0.0
          %5189 = vmatpush2.msra.mxu0 0.0
          %5190 = vmatprep.subr.mxu0 0.0
          %5191 = vmatpush2.msra.mxu0 0.0
          %5192 = vmatprep.subr.mxu0 0.0
          %5193 = vmatpush2.msra.mxu0 0.0
          %5194 = vmatprep.subr.mxu0 0.0
          %5195 = vmatpush2.msra.mxu0 0.0
          %5196 = vmatprep.subr.mxu0 0.0
          %5197 = vmatpush2.msra.mxu0 0.0
          %5198 = vmatprep.subr.mxu0 0.0
          %5199 = vmatpush2.msra.mxu0 0.0
          %5200 = vmatprep.subr.mxu0 0.0
          %5201 = vmatpush2.msra.mxu0 0.0
          %5202 = vmatprep.subr.mxu0 0.0
          %5203 = vmatpush2.msra.mxu0 0.0
          %5204 = vmatprep.subr.mxu0 0.0
          %5205 = vmatpush2.msra.mxu0 0.0
          %5206 = vmatprep.subr.mxu0 0.0
          %5207 = vmatpush2.msra.mxu0 0.0
          %5208 = vmatprep.subr.mxu0 0.0
          %5209 = vmatpush2.msra.mxu0 0.0
          %5210 = vmatprep.subr.mxu0 0.0
          %5211 = vmatpush2.msra.mxu0 0.0
          %5212 = vmatprep.subr.mxu0 0.0
          %5213 = vmatpush2.msra.mxu0 0.0
          %5214 = vmatprep.subr.mxu0 0.0
          %5215 = vmatpush2.msra.mxu0 0.0
          %5216 = vmatprep.subr.mxu0 0.0
          %5217 = vmatpush2.msra.mxu0 0.0
          %5218 = vmatprep.mubr.f32.mxu0 0.0
          %v5219 = vand.u32 %v4686, 4294901760
          %5220 = vmatmul.mubr.f32.gmra.mxu0 %v5219
          %v5221 = vpop.f32.mrf.mxu0
          %v5222 = vadd.f32 %v5143, %v5221
          %v5223 = vpop.f32.mrf.mxu0
          %5224 = vdwg.mxu0
          %5225 = vst.msk [vmem:[%s396] sm:$0xff] %vm4209, %v4184
          %5226 = vrot.lane.b32.xlu0 %v4184, 112
          %v5227 = vpop.permute.xlu0 %5226
          %5229 = vst.msk [vmem:[%s403] sm:$0xff] %vm4209, %v5227
          %5231 = vrot.lane.b32.xlu0 %v4201, 112
          %v5232 = vpop.permute.xlu0 %5231
          %5234 = vst.msk [vmem:[%s389] sm:$0xff] %vm4209, %v5232
          %v5235 = vld [vmem:[#allocation3] sm:$0x1]
          %v5236 = vlaneseq
          %v5237 = vshrl.u32 %v5236, 7
          %v5238 = vsub.s32 0, %v5237
          %v5239 = vrot.slane %v5235, %v5238
          %v5240 = vmul.f32 %v5222, %v5239
          %v5241 = vld [vmem:[#allocation3 + $0x1] sm:$0x1]
          %v5242 = vlaneseq
          %v5243 = vshrl.u32 %v5242, 7
          %v5244 = vsub.s32 0, %v5243
          %v5245 = vrot.slane %v5241, %v5244
          %v5246 = vadd.f32 %v5240, %v5245
          %v5247 = vsub.f32 0.0, %v5246
          %v5248 = vmul.f32 %v5247, 1.442695
          %v5249 = vpow.pop %v5248
          %v5250 = vadd.f32 %v5249, 1.0
          %v5251 = vrcp.pop %v5250
          %v5252 = vmul.f32 1.0, %v5251
          %5253 = vst.msk [vmem:[%s382] sm:$0xff] %vm3129, %v5252
        $region76: #{tpu_custom_call.1} parent=47 // pred_fallthru
          _
        %s5254 = sand.u32 %s208, 1
        %s5255 = scalar_lea.sflag [#allocation5], %s5254
        %s5256 = sand.u32 %s208, 1
        %s5257 = smul.addr %s5256, 8
        %s5258 = scalar_lea.vmem [#allocation4], %s5257
        %s5259 = sand.u32 %s31, 1
        %s5260 = scalar_lea.sflag [#allocation7], %s5259
        %s5261 = sand.u32 %s234, 1
        %s5262 = smul.addr %s5261, 8
        %s5263 = scalar_lea.vmem [#allocation6], %s5262
        %s5264 = sand.u32 %s31, 1
        %s5265 = scalar_lea.sflag [#allocation7], %s5264
        %s5266 = sand.u32 %s260, 1
        %s5267 = smul.addr %s5266, 8
        %s5268 = scalar_lea.vmem [#allocation8], %s5267
        %s5269 = sand.u32 %s286, 1
        %s5270 = scalar_lea.sflag [#allocation10], %s5269
        %s5271 = sand.u32 %s286, 1
        %s5272 = smul.addr %s5271, 8
        %s5273 = scalar_lea.vmem [#allocation9], %s5272
        // Predicated region
        $region77: #{tpu_custom_call.1} parent=47 // pred_check
          %p5274 = pneg %p218
        $region78: #{tpu_custom_call.1} parent=47 // pred_check_branch
          %5276 = sbr.rel (%p5274) target = $region80
        $region79: #{tpu_custom_call.1} parent=47 // pred_region
          %s5278 = ssub.s32 128, 128
          %5279 = vsyncadd %s5255, %s5278
          %s5280 = smul.addr %s36, 128
          %s5281 = scalar_lea.hbm %s7, %s5280
          %s5283 = sshll.u32 %s5258, 4
          %s5284 = int_to_ptr.vmem [resolvable:$true] %s5283
          %5286 = dma.vmem_to_hbm [thread:$0]  %s5284, 128, %s5281, %s5255
        $region80: #{tpu_custom_call.1} parent=47 // pred_fallthru
          _
        // Predicated region
        $region81: #{tpu_custom_call.1} parent=47 // pred_check
          %p5287 = pneg %p244
        $region82: #{tpu_custom_call.1} parent=47 // pred_check_branch
          %5289 = sbr.rel (%p5287) target = $region84
        $region83: #{tpu_custom_call.1} parent=47 // pred_region
          %s5291 = ssub.s32 128, 128
          %5292 = vsyncadd %s5260, %s5291
          %s5293 = smul.addr %s36, 128
          %s5294 = scalar_lea.hbm %s8, %s5293
          %s5296 = sshll.u32 %s5263, 4
          %s5297 = int_to_ptr.vmem [resolvable:$true] %s5296
          %5299 = dma.vmem_to_hbm [thread:$0]  %s5297, 128, %s5294, %s5260
        $region84: #{tpu_custom_call.1} parent=47 // pred_fallthru
          _
        // Predicated region
        $region85: #{tpu_custom_call.1} parent=47 // pred_check
          %p5300 = pneg %p270
        $region86: #{tpu_custom_call.1} parent=47 // pred_check_branch
          %5302 = sbr.rel (%p5300) target = $region88
        $region87: #{tpu_custom_call.1} parent=47 // pred_region
          %s5304 = ssub.s32 128, 128
          %5305 = vsyncadd %s5265, %s5304
          %s5306 = smul.addr %s36, 128
          %s5307 = scalar_lea.hbm %s9, %s5306
          %s5309 = sshll.u32 %s5268, 4
          %s5310 = int_to_ptr.vmem [resolvable:$true] %s5309
          %5312 = dma.vmem_to_hbm [thread:$0]  %s5310, 128, %s5307, %s5265
        $region88: #{tpu_custom_call.1} parent=47 // pred_fallthru
          _
        // Predicated region
        $region89: #{tpu_custom_call.1} parent=47 // pred_check
          %p5313 = pneg %p296
        $region90: #{tpu_custom_call.1} parent=47 // pred_check_branch
          %5315 = sbr.rel (%p5313) target = $region92
        $region91: #{tpu_custom_call.1} parent=47 // pred_region
          %s5317 = ssub.s32 128, 128
          %5318 = vsyncadd %s5270, %s5317
          %s5319 = smul.addr %s36, 128
          %s5320 = scalar_lea.hbm %s10, %s5319
          %s5322 = sshll.u32 %s5273, 4
          %s5323 = int_to_ptr.vmem [resolvable:$true] %s5322
          %5325 = dma.vmem_to_hbm [thread:$0]  %s5323, 128, %s5320, %s5270
        $region92: #{tpu_custom_call.1} parent=47 // pred_fallthru
          _
      $region48: #{tpu_custom_call.1} parent=5 // pred_fallthru
        _
      %p5326 = scmp.le.s32.totalorder 2, %s26
      // Predicated region
      $region93: #{tpu_custom_call.1} parent=5 // pred_check
        %p5327 = pneg %p5326
      $region94: #{tpu_custom_call.1} parent=5 // pred_check_branch
        %5329 = sbr.rel (%p5327) target = $region96
      $region95: #{tpu_custom_call.1} parent=5 // pred_region
        %s5330 = ssub.s32 %s26, 2
        // Predicated region
        $region97: #{tpu_custom_call.1} parent=95 // pred_check
          %p5331 = pneg %p224
        $region98: #{tpu_custom_call.1} parent=95 // pred_check_branch
          %5333 = sbr.rel (%p5331) target = $region100
        $region99: #{tpu_custom_call.1} parent=95 // pred_region
          %s5334 = sand.u32 %s209, 1
          %s5335 = scalar_lea.sflag [#allocation5], %s5334
          %s5336 = sand.u32 %s209, 1
          %s5337 = smul.addr %s5336, 8
          %s5338 = scalar_lea.vmem [#allocation4], %s5337
          %5339 = dma.done %s5335, 128
        $region100: #{tpu_custom_call.1} parent=95 // pred_fallthru
          _
        // Predicated region
        $region101: #{tpu_custom_call.1} parent=95 // pred_check
          %p5340 = pneg %p250
        $region102: #{tpu_custom_call.1} parent=95 // pred_check_branch
          %5342 = sbr.rel (%p5340) target = $region104
        $region103: #{tpu_custom_call.1} parent=95 // pred_region
          %s5343 = sand.u32 %s32, 1
          %s5344 = scalar_lea.sflag [#allocation7], %s5343
          %s5345 = sand.u32 %s235, 1
          %s5346 = smul.addr %s5345, 8
          %s5347 = scalar_lea.vmem [#allocation6], %s5346
          %5348 = dma.done %s5344, 128
        $region104: #{tpu_custom_call.1} parent=95 // pred_fallthru
          _
        // Predicated region
        $region105: #{tpu_custom_call.1} parent=95 // pred_check
          %p5349 = pneg %p276
        $region106: #{tpu_custom_call.1} parent=95 // pred_check_branch
          %5351 = sbr.rel (%p5349) target = $region108
        $region107: #{tpu_custom_call.1} parent=95 // pred_region
          %s5352 = sand.u32 %s32, 1
          %s5353 = scalar_lea.sflag [#allocation7], %s5352
          %s5354 = sand.u32 %s261, 1
          %s5355 = smul.addr %s5354, 8
          %s5356 = scalar_lea.vmem [#allocation8], %s5355
          %5357 = dma.done %s5353, 128
        $region108: #{tpu_custom_call.1} parent=95 // pred_fallthru
          _
        // Predicated region
        $region109: #{tpu_custom_call.1} parent=95 // pred_check
          %p5358 = pneg %p302
        $region110: #{tpu_custom_call.1} parent=95 // pred_check_branch
          %5360 = sbr.rel (%p5358) target = $region112
        $region111: #{tpu_custom_call.1} parent=95 // pred_region
          %s5361 = sand.u32 %s287, 1
          %s5362 = scalar_lea.sflag [#allocation10], %s5361
          %s5363 = sand.u32 %s287, 1
          %s5364 = smul.addr %s5363, 8
          %s5365 = scalar_lea.vmem [#allocation9], %s5364
          %5366 = dma.done %s5362, 128
        $region112: #{tpu_custom_call.1} parent=95 // pred_fallthru
          _
      $region96: #{tpu_custom_call.1} parent=5 // pred_fallthru
        _
    $region6: #{tpu_custom_call.1} parent=1 // loop_footer
      %s30 = sadd.s32 1, %s26
    $region7: #{tpu_custom_call.1} parent=1 // loop_footer_branch
      %25 = sbr.rel target = $region3
    $region8: #{tpu_custom_call.1} parent=1 // loop_exit
      _
    %5367 = vsyncpa [#allocation5], 1
    %s5368 = scalar_lea.sflag [#allocation5], 1
    %5369 = vsyncpa %s5368, 1
    %5370 = vsyncpa [#allocation7], 1
    %s5371 = scalar_lea.sflag [#allocation7], 1
    %5372 = vsyncpa %s5371, 1
    %5373 = vsyncpa [#allocation10], 1
    %s5374 = scalar_lea.sflag [#allocation10], 1
    %5375 = vsyncpa %s5374, 1

</llo_original>
